<compile_context>
chip_gen: v5e
topology: v5e:2x2
jax: 0.10.0
libtpu: 0.0.40
codegen_flags: <defaults>
</compile_context>

<pallas_src>
import functools
import math

import jax
import jax.numpy as jnp
import numpy as np
from jax import lax
from jax.experimental import pallas as pl
from jax.experimental.pallas import tpu as pltpu


# ------------------------------ Pallas kernel ------------------------------ #

def _layer_norm(x, gamma, beta, eps=1e-5):
    mean = jnp.mean(x, axis=-1, keepdims=True)
    var = jnp.mean(jnp.square(x - mean), axis=-1, keepdims=True)
    return (x - mean) * lax.rsqrt(var + eps) * gamma + beta


def _encoder_kernel(*refs, num_layers, heads, head_dim, embed_size,
                    batch, seq_len, has_mask):
    if has_mask:
        maskneg_ref, refs = refs[0], refs[1:]
    (x_ref, w_emb_ref, bias_pe_ref,
     wqkv_ref, wfc_ref, bfc_ref,
     g1_ref, beta1_ref,
     w1_ref, b1_ref, w2_ref, b2_ref,
     g2_ref, beta2_ref,
     o_ref) = refs

    B = batch
    L = seq_len
    E = embed_size
    hd = head_dim

    # ---- embedding Linear + (bias + positional encoding), dropout=identity -
    x = x_ref[...]                                                  # (B*L, D_in)
    h = jnp.dot(x, w_emb_ref[...], preferred_element_type=jnp.float32)
    h = h + bias_pe_ref[...]                                        # (B*L, E)

    if has_mask:
        # additive mask (0 / -1e20), broadcast ONCE before the layer/head loops
        neg = jnp.broadcast_to(maskneg_ref[...], (B, L, L))         # (B, L, L)

    for l in range(num_layers):                    # static unroll (small depth)
        # -- fused q/k/v projection: one lane-dense (B*L,E)@(E,3E) matmul.
        #    wqkv is block-diag-per-head, pre-transposed, Q scaled by 1/sqrt(E).
        qkv = jnp.dot(h, wqkv_ref[l], preferred_element_type=jnp.float32)

        # -- per-head attention; fc_out accumulated per head (no concat)
        attn = jnp.zeros((B * L, E), jnp.float32)
        for hh in range(heads):
            q = qkv[:, hh * hd:(hh + 1) * hd].reshape(B, L, hd)
            k = qkv[:, E + hh * hd:E + (hh + 1) * hd].reshape(B, L, hd)
            v = qkv[:, 2 * E + hh * hd:2 * E + (hh + 1) * hd].reshape(B, L, hd)

            energy = jnp.einsum('bqd,bkd->bqk', q, k,
                                preferred_element_type=jnp.float32)  # (B,L,L)
            if has_mask:
                energy = energy + neg
            energy = energy - jnp.max(energy, axis=-1, keepdims=True)
            p = jnp.exp(energy)
            p = p * pl.reciprocal(jnp.sum(p, axis=-1, keepdims=True),
                                  approx=True)
            ctx = jnp.einsum('bqk,bkd->bqd', p, v,
                             preferred_element_type=jnp.float32)     # (B,L,hd)
            ctx = ctx.reshape(B * L, hd)
            attn = attn + jnp.dot(ctx, wfc_ref[l, hh],
                                  preferred_element_type=jnp.float32)
        attn = attn + bfc_ref[l]

        # -- residual + norm1 (dropout = identity)
        x1 = _layer_norm(attn + h, g1_ref[l], beta1_ref[l])

        # -- feed forward: Linear -> ReLU -> Linear
        f = jnp.dot(x1, w1_ref[l], preferred_element_type=jnp.float32) + b1_ref[l]
        f = jnp.maximum(f, jnp.float32(0.0))
        f = jnp.dot(f, w2_ref[l], preferred_element_type=jnp.float32) + b2_ref[l]

        # -- residual + norm2 (dropout = identity)
        h = _layer_norm(f + x1, g2_ref[l], beta2_ref[l])

    o_ref[...] = h.astype(o_ref.dtype)


# ------------------------------ Python wrapper ------------------------------ #

def _full_spec(arr):
    nd = arr.ndim
    return pl.BlockSpec(arr.shape, lambda n: (0,) * nd)


def encoder_forward(x, mask, kparams, *, embed_size, heads, num_layers,
                    batch_block=None):
    """Fused Pallas implementation of Encoder.forward (inference mode).

    batch_block: batch elements processed per grid step.  Default = full batch
    (one grid step; best on single-TC v5e/v6e).  On v7x use N//2 so each of
    the two TensorCores gets half the batch via dimension_semantics=parallel.
    """
    N, L, D_in = x.shape
    E = embed_size
    hd = E // heads
    assert hd * heads == E

    B = N if batch_block is None else batch_block
    assert N % B == 0
    grid = (N // B,)

    # Flatten batch into the M (sublane) dimension outside the kernel.
    x2 = x.reshape(N * L, D_in).astype(jnp.float32)

    # Fold embedding bias + positional encoding into one pre-tiled constant.
    bias_pe = jnp.tile(kparams["b_emb"] + kparams["pe"][:L], (B, 1))  # (B*L, E)

    has_mask = mask is not None

    kernel = functools.partial(
        _encoder_kernel, num_layers=num_layers, heads=heads, head_dim=hd,
        embed_size=E, batch=B, seq_len=L, has_mask=has_mask)

    in_specs = []
    args = []
    if has_mask:
        m = jnp.asarray(mask, jnp.float32)
        if m.ndim == 3:      # same mask assumed for every batch element
            m = m[0]
        # additive mask: masked_fill(-1e20) becomes energy + (-1e20)
        mask_neg = jnp.where(m == 0.0, jnp.float32(-1e20), jnp.float32(0.0))
        in_specs.append(pl.BlockSpec((L, L), lambda i: (0, 0)))
        args.append(mask_neg)

    weight_args = [kparams["w_emb_t"], bias_pe,
                   kparams["wqkv_t"], kparams["wfc_t"], kparams["bfc"],
                   kparams["g1"], kparams["beta1"],
                   kparams["w1_t"], kparams["b1"],
                   kparams["w2_t"], kparams["b2"],
                   kparams["g2"], kparams["beta2"]]
    in_specs += [pl.BlockSpec((B * L, D_in), lambda i: (i, 0))]
    in_specs += [_full_spec(a) for a in weight_args]
    args += [x2] + weight_args

    out = pl.pallas_call(
        kernel,
        out_shape=jax.ShapeDtypeStruct((N * L, E), jnp.float32),
        grid=grid,
        in_specs=in_specs,
        out_specs=pl.BlockSpec((B * L, E), lambda i: (i, 0)),
        compiler_params=pltpu.CompilerParams(
            dimension_semantics=("parallel",)),
    )(*args)
    return out.reshape(N, L, E)


# --------------------- parameters (PyTorch-like layout) --------------------- #

def make_positional_encoding(max_len, d_model):
    position = np.arange(max_len, dtype=np.float32)[:, None]
    div_term = np.exp(np.arange(0, d_model, 2, dtype=np.float32)
                      * (-math.log(10000.0) / d_model))
    pe = np.zeros((max_len, d_model), dtype=np.float32)
    pe[:, 0::2] = np.sin(position * div_term)
    pe[:, 1::2] = np.cos(position * div_term)
    return jnp.asarray(pe)


def init_raw_params(key, input_dim, embed_size, heads, num_layers,
                    forward_expansion, max_length):
    hd = embed_size // heads
    FE = forward_expansion * embed_size

    def uniform(k, shape, fan_in):
        lim = 1.0 / math.sqrt(fan_in)
        return jax.random.uniform(k, shape, jnp.float32, -lim, lim)

    keys = jax.random.split(key, 2 + num_layers)
    raw = {
        "w_emb": uniform(keys[0], (embed_size, input_dim), input_dim),
        "b_emb": uniform(keys[1], (embed_size,), input_dim),
        "pe": make_positional_encoding(max_length, embed_size),
        "layers": [],
    }
    for l in range(num_layers):
        lk = jax.random.split(keys[2 + l], 13)
        raw["layers"].append({
            "wq": uniform(lk[0], (hd, hd), hd),
            "wk": uniform(lk[1], (hd, hd), hd),
            "wv": uniform(lk[2], (hd, hd), hd),
            "w_fc": uniform(lk[3], (embed_size, embed_size), embed_size),
            "b_fc": uniform(lk[4], (embed_size,), embed_size),
            "g1": 1.0 + 0.1 * jax.random.normal(lk[5], (embed_size,), jnp.float32),
            "bt1": 0.1 * jax.random.normal(lk[6], (embed_size,), jnp.float32),
            "w1": uniform(lk[7], (FE, embed_size), embed_size),
            "b1": uniform(lk[8], (FE,), embed_size),
            "w2": uniform(lk[9], (embed_size, FE), FE),
            "b2": uniform(lk[10], (embed_size,), FE),
            "g2": 1.0 + 0.1 * jax.random.normal(lk[11], (embed_size,), jnp.float32),
            "bt2": 0.1 * jax.random.normal(lk[12], (embed_size,), jnp.float32),
        })
    return raw


def pack_kernel_params(raw, *, embed_size, heads):
    """Pre-transpose / block-diagonalize / per-head-split weights for the kernel."""
    E = embed_size
    hd = E // heads
    scale = 1.0 / math.sqrt(E)
    eye = jnp.eye(heads, dtype=jnp.float32)

    wqkv, wfc, bfc, g1, bt1, w1, b1, w2, b2, g2, bt2 = ([] for _ in range(11))
    for p in raw["layers"]:
        bd_q = jnp.kron(eye, p["wq"].T) * scale     # fold softmax scale into Q
        bd_k = jnp.kron(eye, p["wk"].T)
        bd_v = jnp.kron(eye, p["wv"].T)
        wqkv.append(jnp.concatenate([bd_q, bd_k, bd_v], axis=1))   # (E, 3E)
        # fc_out weight split per head so the kernel can accumulate per head
        wfc.append(p["w_fc"].T.reshape(heads, hd, E))              # (H, hd, E)
        bfc.append(p["b_fc"][None, :])
        g1.append(p["g1"][None, :]); bt1.append(p["bt1"][None, :])
        w1.append(p["w1"].T); b1.append(p["b1"][None, :])
        w2.append(p["w2"].T); b2.append(p["b2"][None, :])
        g2.append(p["g2"][None, :]); bt2.append(p["bt2"][None, :])

    st = lambda xs: jnp.stack(xs, axis=0)
    # NOTE: weights kept f32 for exact parity with the f32 reference; at real
    # model sizes store them as bf16 (full-rate MXU dtype, half the DMA bytes).
    return {
        "pe": raw["pe"],
        "w_emb_t": raw["w_emb"].T,
        "b_emb": raw["b_emb"][None, :],
        "wqkv_t": st(wqkv), "wfc_t": st(wfc), "bfc": st(bfc),
        "g1": st(g1), "beta1": st(bt1),
        "w1_t": st(w1), "b1": st(b1),
        "w2_t": st(w2), "b2": st(b2),
        "g2": st(g2), "beta2": st(bt2),
    }


# --------------------------- reference (pure JAX) --------------------------- #

def _ln_ref(x, g, b, eps=1e-5):
    mu = jnp.mean(x, axis=-1, keepdims=True)
    var = jnp.mean((x - mu) ** 2, axis=-1, keepdims=True)
    return (x - mu) / jnp.sqrt(var + eps) * g + b


def encoder_reference(x, mask, raw, *, embed_size, heads, num_layers):
    E = embed_size
    hd = E // heads
    N, L, _ = x.shape
    h = x @ raw["w_emb"].T + raw["b_emb"]
    h = h + raw["pe"][:L]
    for l in range(num_layers):
        p = raw["layers"][l]
        v = h.reshape(N, L, heads, hd) @ p["wv"].T
        k = h.reshape(N, L, heads, hd) @ p["wk"].T
        q = h.reshape(N, L, heads, hd) @ p["wq"].T
        energy = jnp.einsum("nqhd,nkhd->nhqk", q, k)
        if mask is not None:
            m = jnp.broadcast_to(mask, (N, L, L))[:, None, :, :]
            energy = jnp.where(m == 0, -1e20, energy)
        attn = jax.nn.softmax(energy / math.sqrt(E), axis=3)
        out = jnp.einsum("nhql,nlhd->nqhd", attn, v).reshape(N, L, E)
        out = out @ p["w_fc"].T + p["b_fc"]
        x1 = _ln_ref(out + h, p["g1"], p["bt1"])
        ff = jax.nn.relu(x1 @ p["w1"].T + p["b1"]) @ p["w2"].T + p["b2"]
        h = _ln_ref(ff + x1, p["g2"], p["bt2"])
    return h


# ---------------------------------- main ------------------------------------ #

if __name__ == "__main__":
    N, SEQ, INPUT_DIM = 2, 8, 4
    EMBED, HEADS, NUM_LAYERS, FWD_EXP, MAX_LEN = 32, 4, 3, 4, 24

    key = jax.random.PRNGKey(0)
    k_params, k_x = jax.random.split(key)
    raw = init_raw_params(k_params, INPUT_DIM, EMBED, HEADS, NUM_LAYERS,
                          FWD_EXP, MAX_LEN)
    kparams = pack_kernel_params(raw, embed_size=EMBED, heads=HEADS)

    x = jax.random.normal(k_x, (N, SEQ, INPUT_DIM), jnp.float32)
    mask = jnp.tril(jnp.ones((SEQ, SEQ), jnp.float32))   # causal (L, L)

    # masked variant (whole batch in one grid step)
    out = jax.block_until_ready(
        encoder_forward(x, mask, kparams,
                        embed_size=EMBED, heads=HEADS, num_layers=NUM_LAYERS))
    ref = encoder_reference(x, mask, raw,
                            embed_size=EMBED, heads=HEADS, num_layers=NUM_LAYERS)
    np.testing.assert_allclose(np.asarray(out), np.asarray(ref),
                               rtol=1e-2, atol=1e-2)

    # mask=None compile-time variant (no mask DMA, no mask add)
    out_nm = jax.block_until_ready(
        encoder_forward(x, None, kparams,
                        embed_size=EMBED, heads=HEADS, num_layers=NUM_LAYERS))
    ref_nm = encoder_reference(x, None, raw,
                               embed_size=EMBED, heads=HEADS, num_layers=NUM_LAYERS)
    np.testing.assert_allclose(np.asarray(out_nm), np.asarray(ref_nm),
                               rtol=1e-2, atol=1e-2)

    # two-grid-step variant (what a v7x 2-TC chip would use: B = N // 2)
    out_2 = jax.block_until_ready(
        encoder_forward(x, mask, kparams, embed_size=EMBED, heads=HEADS,
                        num_layers=NUM_LAYERS, batch_block=N // 2))
    np.testing.assert_allclose(np.asarray(out_2), np.asarray(ref),
                               rtol=1e-2, atol=1e-2)

    print("KERNEL_OK")
</pallas_src>

<mosaic_0001>
module attributes {stable_mosaic.version = 11 : i64} {
  func.func @_encoder_kernel(%arg0: i32, %arg1: memref<8x8xf32, #tpu.memory_space<vmem>>, %arg2: memref<16x4xf32, #tpu.memory_space<vmem>>, %arg3: memref<4x32xf32, #tpu.memory_space<vmem>>, %arg4: memref<16x32xf32, #tpu.memory_space<vmem>>, %arg5: memref<3x32x96xf32, #tpu.memory_space<vmem>>, %arg6: memref<3x4x8x32xf32, #tpu.memory_space<vmem>>, %arg7: memref<3x1x32xf32, #tpu.memory_space<vmem>>, %arg8: memref<3x1x32xf32, #tpu.memory_space<vmem>>, %arg9: memref<3x1x32xf32, #tpu.memory_space<vmem>>, %arg10: memref<3x32x128xf32, #tpu.memory_space<vmem>>, %arg11: memref<3x1x128xf32, #tpu.memory_space<vmem>>, %arg12: memref<3x128x32xf32, #tpu.memory_space<vmem>>, %arg13: memref<3x1x32xf32, #tpu.memory_space<vmem>>, %arg14: memref<3x1x32xf32, #tpu.memory_space<vmem>>, %arg15: memref<3x1x32xf32, #tpu.memory_space<vmem>>, %arg16: memref<16x32xf32, #tpu.memory_space<vmem>>) attributes {dimension_semantics = [#tpu.dimension_semantics<parallel>], iteration_bounds = array<i64: 1>, scalar_prefetch = 0 : i64, scratch_operands = 0 : i64, tpu.core_type = #tpu.core_type<tc>, window_params = [{pipeline_mode = #tpu.pipeline_mode<synchronous>, transform_indices = @transform_0, window_bounds = array<i64: 8, 8>}, {transform_indices = @transform_1, window_bounds = array<i64: 16, 4>}, {pipeline_mode = #tpu.pipeline_mode<synchronous>, transform_indices = @transform_2, window_bounds = array<i64: 4, 32>}, {pipeline_mode = #tpu.pipeline_mode<synchronous>, transform_indices = @transform_3, window_bounds = array<i64: 16, 32>}, {pipeline_mode = #tpu.pipeline_mode<synchronous>, transform_indices = @transform_4, window_bounds = array<i64: 3, 32, 96>}, {pipeline_mode = #tpu.pipeline_mode<synchronous>, transform_indices = @transform_5, window_bounds = array<i64: 3, 4, 8, 32>}, {pipeline_mode = #tpu.pipeline_mode<synchronous>, transform_indices = @transform_6, window_bounds = array<i64: 3, 1, 32>}, {pipeline_mode = #tpu.pipeline_mode<synchronous>, transform_indices = @transform_7, window_bounds = array<i64: 3, 1, 32>}, {pipeline_mode = #tpu.pipeline_mode<synchronous>, transform_indices = @transform_8, window_bounds = array<i64: 3, 1, 32>}, {pipeline_mode = #tpu.pipeline_mode<synchronous>, transform_indices = @transform_9, window_bounds = array<i64: 3, 32, 128>}, {pipeline_mode = #tpu.pipeline_mode<synchronous>, transform_indices = @transform_10, window_bounds = array<i64: 3, 1, 128>}, {pipeline_mode = #tpu.pipeline_mode<synchronous>, transform_indices = @transform_11, window_bounds = array<i64: 3, 128, 32>}, {pipeline_mode = #tpu.pipeline_mode<synchronous>, transform_indices = @transform_12, window_bounds = array<i64: 3, 1, 32>}, {pipeline_mode = #tpu.pipeline_mode<synchronous>, transform_indices = @transform_13, window_bounds = array<i64: 3, 1, 32>}, {pipeline_mode = #tpu.pipeline_mode<synchronous>, transform_indices = @transform_14, window_bounds = array<i64: 3, 1, 32>}, {transform_indices = @transform_15, window_bounds = array<i64: 16, 32>}]} {
    %c0 = arith.constant 0 : index
    %c0_0 = arith.constant 0 : index
    %0 = vector.load %arg2[%c0, %c0_0] : memref<16x4xf32, #tpu.memory_space<vmem>>, vector<16x4xf32>
    %c0_1 = arith.constant 0 : index
    %c0_2 = arith.constant 0 : index
    %1 = vector.load %arg3[%c0_1, %c0_2] : memref<4x32xf32, #tpu.memory_space<vmem>>, vector<4x32xf32>
    %cst = arith.constant dense<0.000000e+00> : vector<16x32xf32>
    %2 = tpu.matmul %0, %1, %cst {dimension_numbers = #tpu.dot_dimension_numbers<[1], [0], [0], [1], [0, 0, 1, 1], [], []>} : vector<16x4xf32>, vector<4x32xf32>, vector<16x32xf32> -> vector<16x32xf32>
    %c0_3 = arith.constant 0 : index
    %c0_4 = arith.constant 0 : index
    %3 = vector.load %arg4[%c0_3, %c0_4] : memref<16x32xf32, #tpu.memory_space<vmem>>, vector<16x32xf32>
    %4 = arith.addf %2, %3 : vector<16x32xf32>
    %c0_5 = arith.constant 0 : index
    %c0_6 = arith.constant 0 : index
    %5 = vector.load %arg1[%c0_5, %c0_6] : memref<8x8xf32, #tpu.memory_space<vmem>>, vector<8x8xf32>
    %6 = vector.shape_cast %5 : vector<8x8xf32> to vector<1x8x8xf32>
    %7 = vector.broadcast %6 : vector<1x8x8xf32> to vector<2x8x8xf32>
    %c0_7 = arith.constant 0 : index
    %c0_8 = arith.constant 0 : index
    %c0_9 = arith.constant 0 : index
    %8 = vector.load %arg5[%c0_7, %c0_8, %c0_9] : memref<3x32x96xf32, #tpu.memory_space<vmem>>, vector<1x32x96xf32>
    %9 = vector.shape_cast %8 : vector<1x32x96xf32> to vector<32x96xf32>
    %cst_10 = arith.constant dense<0.000000e+00> : vector<16x96xf32>
    %10 = tpu.matmul %4, %9, %cst_10 {dimension_numbers = #tpu.dot_dimension_numbers<[1], [0], [0], [1], [0, 0, 1, 1], [], []>} : vector<16x32xf32>, vector<32x96xf32>, vector<16x96xf32> -> vector<16x96xf32>
    %cst_11 = arith.constant 0.000000e+00 : f32
    %11 = vector.broadcast %cst_11 : f32 to vector<16x32xf32>
    %12 = vector.extract_strided_slice %10 {offsets = [0, 0], sizes = [16, 8], strides = [1, 1]} : vector<16x96xf32> to vector<16x8xf32>
    %13 = vector.shape_cast %12 : vector<16x8xf32> to vector<2x8x8xf32>
    %14 = vector.extract_strided_slice %10 {offsets = [0, 32], sizes = [16, 8], strides = [1, 1]} : vector<16x96xf32> to vector<16x8xf32>
    %15 = vector.shape_cast %14 : vector<16x8xf32> to vector<2x8x8xf32>
    %16 = vector.extract_strided_slice %10 {offsets = [0, 64], sizes = [16, 8], strides = [1, 1]} : vector<16x96xf32> to vector<16x8xf32>
    %17 = vector.shape_cast %16 : vector<16x8xf32> to vector<2x8x8xf32>
    "tpu.trace_start"() <{level = 10 : i32, message = "bqd,bkd->bqk"}> : () -> ()
    %cst_12 = arith.constant dense<0.000000e+00> : vector<2x8x8xf32>
    %18 = tpu.matmul %13, %15, %cst_12 {dimension_numbers = #tpu.dot_dimension_numbers<[2], [2], [1], [1], [0, 0, 0, 1, 1, 1], [0], [0]>} : vector<2x8x8xf32>, vector<2x8x8xf32>, vector<2x8x8xf32> -> vector<2x8x8xf32>
    "tpu.trace_stop"() : () -> ()
    %19 = arith.addf %18, %7 : vector<2x8x8xf32>
    %cst_13 = arith.constant dense<0xFF800000> : vector<2x8xf32>
    %20 = vector.multi_reduction <maximumf>, %19, %cst_13 [2] : vector<2x8x8xf32> to vector<2x8xf32>
    %21 = vector.shape_cast %20 : vector<2x8xf32> to vector<2x8x1xf32>
    %22 = vector.broadcast %21 : vector<2x8x1xf32> to vector<2x8x8xf32>
    %23 = arith.subf %19, %22 : vector<2x8x8xf32>
    %24 = math.exp %23 : vector<2x8x8xf32>
    %cst_14 = arith.constant dense<0.000000e+00> : vector<2x8xf32>
    %25 = vector.multi_reduction <add>, %24, %cst_14 [2] : vector<2x8x8xf32> to vector<2x8xf32>
    %26 = vector.shape_cast %25 : vector<2x8xf32> to vector<2x8x1xf32>
    %27 = tpu.reciprocal %26 {approx = true} : vector<2x8x1xf32> -> vector<2x8x1xf32>
    %28 = vector.broadcast %27 : vector<2x8x1xf32> to vector<2x8x8xf32>
    %29 = arith.mulf %24, %28 : vector<2x8x8xf32>
    "tpu.trace_start"() <{level = 10 : i32, message = "bqk,bkd->bqd"}> : () -> ()
    %cst_15 = arith.constant dense<0.000000e+00> : vector<2x8x8xf32>
    %30 = tpu.matmul %29, %17, %cst_15 {dimension_numbers = #tpu.dot_dimension_numbers<[2], [1], [1], [2], [0, 0, 0, 1, 1, 2], [0], [0]>} : vector<2x8x8xf32>, vector<2x8x8xf32>, vector<2x8x8xf32> -> vector<2x8x8xf32>
    "tpu.trace_stop"() : () -> ()
    %31 = vector.shape_cast %30 : vector<2x8x8xf32> to vector<16x8xf32>
    %c0_16 = arith.constant 0 : index
    %c0_17 = arith.constant 0 : index
    %c0_18 = arith.constant 0 : index
    %c0_19 = arith.constant 0 : index
    %32 = vector.load %arg6[%c0_16, %c0_17, %c0_18, %c0_19] : memref<3x4x8x32xf32, #tpu.memory_space<vmem>>, vector<1x1x8x32xf32>
    %33 = vector.shape_cast %32 : vector<1x1x8x32xf32> to vector<8x32xf32>
    %cst_20 = arith.constant dense<0.000000e+00> : vector<16x32xf32>
    %34 = tpu.matmul %31, %33, %cst_20 {dimension_numbers = #tpu.dot_dimension_numbers<[1], [0], [0], [1], [0, 0, 1, 1], [], []>} : vector<16x8xf32>, vector<8x32xf32>, vector<16x32xf32> -> vector<16x32xf32>
    %35 = arith.addf %11, %34 : vector<16x32xf32>
    %36 = vector.extract_strided_slice %10 {offsets = [0, 8], sizes = [16, 8], strides = [1, 1]} : vector<16x96xf32> to vector<16x8xf32>
    %37 = vector.shape_cast %36 : vector<16x8xf32> to vector<2x8x8xf32>
    %38 = vector.extract_strided_slice %10 {offsets = [0, 40], sizes = [16, 8], strides = [1, 1]} : vector<16x96xf32> to vector<16x8xf32>
    %39 = vector.shape_cast %38 : vector<16x8xf32> to vector<2x8x8xf32>
    %40 = vector.extract_strided_slice %10 {offsets = [0, 72], sizes = [16, 8], strides = [1, 1]} : vector<16x96xf32> to vector<16x8xf32>
    %41 = vector.shape_cast %40 : vector<16x8xf32> to vector<2x8x8xf32>
    "tpu.trace_start"() <{level = 10 : i32, message = "bqd,bkd->bqk"}> : () -> ()
    %cst_21 = arith.constant dense<0.000000e+00> : vector<2x8x8xf32>
    %42 = tpu.matmul %37, %39, %cst_21 {dimension_numbers = #tpu.dot_dimension_numbers<[2], [2], [1], [1], [0, 0, 0, 1, 1, 1], [0], [0]>} : vector<2x8x8xf32>, vector<2x8x8xf32>, vector<2x8x8xf32> -> vector<2x8x8xf32>
    "tpu.trace_stop"() : () -> ()
    %43 = arith.addf %42, %7 : vector<2x8x8xf32>
    %cst_22 = arith.constant dense<0xFF800000> : vector<2x8xf32>
    %44 = vector.multi_reduction <maximumf>, %43, %cst_22 [2] : vector<2x8x8xf32> to vector<2x8xf32>
    %45 = vector.shape_cast %44 : vector<2x8xf32> to vector<2x8x1xf32>
    %46 = vector.broadcast %45 : vector<2x8x1xf32> to vector<2x8x8xf32>
    %47 = arith.subf %43, %46 : vector<2x8x8xf32>
    %48 = math.exp %47 : vector<2x8x8xf32>
    %cst_23 = arith.constant dense<0.000000e+00> : vector<2x8xf32>
    %49 = vector.multi_reduction <add>, %48, %cst_23 [2] : vector<2x8x8xf32> to vector<2x8xf32>
    %50 = vector.shape_cast %49 : vector<2x8xf32> to vector<2x8x1xf32>
    %51 = tpu.reciprocal %50 {approx = true} : vector<2x8x1xf32> -> vector<2x8x1xf32>
    %52 = vector.broadcast %51 : vector<2x8x1xf32> to vector<2x8x8xf32>
    %53 = arith.mulf %48, %52 : vector<2x8x8xf32>
    "tpu.trace_start"() <{level = 10 : i32, message = "bqk,bkd->bqd"}> : () -> ()
    %cst_24 = arith.constant dense<0.000000e+00> : vector<2x8x8xf32>
    %54 = tpu.matmul %53, %41, %cst_24 {dimension_numbers = #tpu.dot_dimension_numbers<[2], [1], [1], [2], [0, 0, 0, 1, 1, 2], [0], [0]>} : vector<2x8x8xf32>, vector<2x8x8xf32>, vector<2x8x8xf32> -> vector<2x8x8xf32>
    "tpu.trace_stop"() : () -> ()
    %55 = vector.shape_cast %54 : vector<2x8x8xf32> to vector<16x8xf32>
    %c0_25 = arith.constant 0 : index
    %c1 = arith.constant 1 : index
    %c0_26 = arith.constant 0 : index
    %c0_27 = arith.constant 0 : index
    %56 = vector.load %arg6[%c0_25, %c1, %c0_26, %c0_27] : memref<3x4x8x32xf32, #tpu.memory_space<vmem>>, vector<1x1x8x32xf32>
    %57 = vector.shape_cast %56 : vector<1x1x8x32xf32> to vector<8x32xf32>
    %cst_28 = arith.constant dense<0.000000e+00> : vector<16x32xf32>
    %58 = tpu.matmul %55, %57, %cst_28 {dimension_numbers = #tpu.dot_dimension_numbers<[1], [0], [0], [1], [0, 0, 1, 1], [], []>} : vector<16x8xf32>, vector<8x32xf32>, vector<16x32xf32> -> vector<16x32xf32>
    %59 = arith.addf %35, %58 : vector<16x32xf32>
    %60 = vector.extract_strided_slice %10 {offsets = [0, 16], sizes = [16, 8], strides = [1, 1]} : vector<16x96xf32> to vector<16x8xf32>
    %61 = vector.shape_cast %60 : vector<16x8xf32> to vector<2x8x8xf32>
    %62 = vector.extract_strided_slice %10 {offsets = [0, 48], sizes = [16, 8], strides = [1, 1]} : vector<16x96xf32> to vector<16x8xf32>
    %63 = vector.shape_cast %62 : vector<16x8xf32> to vector<2x8x8xf32>
    %64 = vector.extract_strided_slice %10 {offsets = [0, 80], sizes = [16, 8], strides = [1, 1]} : vector<16x96xf32> to vector<16x8xf32>
    %65 = vector.shape_cast %64 : vector<16x8xf32> to vector<2x8x8xf32>
    "tpu.trace_start"() <{level = 10 : i32, message = "bqd,bkd->bqk"}> : () -> ()
    %cst_29 = arith.constant dense<0.000000e+00> : vector<2x8x8xf32>
    %66 = tpu.matmul %61, %63, %cst_29 {dimension_numbers = #tpu.dot_dimension_numbers<[2], [2], [1], [1], [0, 0, 0, 1, 1, 1], [0], [0]>} : vector<2x8x8xf32>, vector<2x8x8xf32>, vector<2x8x8xf32> -> vector<2x8x8xf32>
    "tpu.trace_stop"() : () -> ()
    %67 = arith.addf %66, %7 : vector<2x8x8xf32>
    %cst_30 = arith.constant dense<0xFF800000> : vector<2x8xf32>
    %68 = vector.multi_reduction <maximumf>, %67, %cst_30 [2] : vector<2x8x8xf32> to vector<2x8xf32>
    %69 = vector.shape_cast %68 : vector<2x8xf32> to vector<2x8x1xf32>
    %70 = vector.broadcast %69 : vector<2x8x1xf32> to vector<2x8x8xf32>
    %71 = arith.subf %67, %70 : vector<2x8x8xf32>
    %72 = math.exp %71 : vector<2x8x8xf32>
    %cst_31 = arith.constant dense<0.000000e+00> : vector<2x8xf32>
    %73 = vector.multi_reduction <add>, %72, %cst_31 [2] : vector<2x8x8xf32> to vector<2x8xf32>
    %74 = vector.shape_cast %73 : vector<2x8xf32> to vector<2x8x1xf32>
    %75 = tpu.reciprocal %74 {approx = true} : vector<2x8x1xf32> -> vector<2x8x1xf32>
    %76 = vector.broadcast %75 : vector<2x8x1xf32> to vector<2x8x8xf32>
    %77 = arith.mulf %72, %76 : vector<2x8x8xf32>
    "tpu.trace_start"() <{level = 10 : i32, message = "bqk,bkd->bqd"}> : () -> ()
    %cst_32 = arith.constant dense<0.000000e+00> : vector<2x8x8xf32>
    %78 = tpu.matmul %77, %65, %cst_32 {dimension_numbers = #tpu.dot_dimension_numbers<[2], [1], [1], [2], [0, 0, 0, 1, 1, 2], [0], [0]>} : vector<2x8x8xf32>, vector<2x8x8xf32>, vector<2x8x8xf32> -> vector<2x8x8xf32>
    "tpu.trace_stop"() : () -> ()
    %79 = vector.shape_cast %78 : vector<2x8x8xf32> to vector<16x8xf32>
    %c0_33 = arith.constant 0 : index
    %c2 = arith.constant 2 : index
    %c0_34 = arith.constant 0 : index
    %c0_35 = arith.constant 0 : index
    %80 = vector.load %arg6[%c0_33, %c2, %c0_34, %c0_35] : memref<3x4x8x32xf32, #tpu.memory_space<vmem>>, vector<1x1x8x32xf32>
    %81 = vector.shape_cast %80 : vector<1x1x8x32xf32> to vector<8x32xf32>
    %cst_36 = arith.constant dense<0.000000e+00> : vector<16x32xf32>
    %82 = tpu.matmul %79, %81, %cst_36 {dimension_numbers = #tpu.dot_dimension_numbers<[1], [0], [0], [1], [0, 0, 1, 1], [], []>} : vector<16x8xf32>, vector<8x32xf32>, vector<16x32xf32> -> vector<16x32xf32>
    %83 = arith.addf %59, %82 : vector<16x32xf32>
    %84 = vector.extract_strided_slice %10 {offsets = [0, 24], sizes = [16, 8], strides = [1, 1]} : vector<16x96xf32> to vector<16x8xf32>
    %85 = vector.shape_cast %84 : vector<16x8xf32> to vector<2x8x8xf32>
    %86 = vector.extract_strided_slice %10 {offsets = [0, 56], sizes = [16, 8], strides = [1, 1]} : vector<16x96xf32> to vector<16x8xf32>
    %87 = vector.shape_cast %86 : vector<16x8xf32> to vector<2x8x8xf32>
    %88 = vector.extract_strided_slice %10 {offsets = [0, 88], sizes = [16, 8], strides = [1, 1]} : vector<16x96xf32> to vector<16x8xf32>
    %89 = vector.shape_cast %88 : vector<16x8xf32> to vector<2x8x8xf32>
    "tpu.trace_start"() <{level = 10 : i32, message = "bqd,bkd->bqk"}> : () -> ()
    %cst_37 = arith.constant dense<0.000000e+00> : vector<2x8x8xf32>
    %90 = tpu.matmul %85, %87, %cst_37 {dimension_numbers = #tpu.dot_dimension_numbers<[2], [2], [1], [1], [0, 0, 0, 1, 1, 1], [0], [0]>} : vector<2x8x8xf32>, vector<2x8x8xf32>, vector<2x8x8xf32> -> vector<2x8x8xf32>
    "tpu.trace_stop"() : () -> ()
    %91 = arith.addf %90, %7 : vector<2x8x8xf32>
    %cst_38 = arith.constant dense<0xFF800000> : vector<2x8xf32>
    %92 = vector.multi_reduction <maximumf>, %91, %cst_38 [2] : vector<2x8x8xf32> to vector<2x8xf32>
    %93 = vector.shape_cast %92 : vector<2x8xf32> to vector<2x8x1xf32>
    %94 = vector.broadcast %93 : vector<2x8x1xf32> to vector<2x8x8xf32>
    %95 = arith.subf %91, %94 : vector<2x8x8xf32>
    %96 = math.exp %95 : vector<2x8x8xf32>
    %cst_39 = arith.constant dense<0.000000e+00> : vector<2x8xf32>
    %97 = vector.multi_reduction <add>, %96, %cst_39 [2] : vector<2x8x8xf32> to vector<2x8xf32>
    %98 = vector.shape_cast %97 : vector<2x8xf32> to vector<2x8x1xf32>
    %99 = tpu.reciprocal %98 {approx = true} : vector<2x8x1xf32> -> vector<2x8x1xf32>
    %100 = vector.broadcast %99 : vector<2x8x1xf32> to vector<2x8x8xf32>
    %101 = arith.mulf %96, %100 : vector<2x8x8xf32>
    "tpu.trace_start"() <{level = 10 : i32, message = "bqk,bkd->bqd"}> : () -> ()
    %cst_40 = arith.constant dense<0.000000e+00> : vector<2x8x8xf32>
    %102 = tpu.matmul %101, %89, %cst_40 {dimension_numbers = #tpu.dot_dimension_numbers<[2], [1], [1], [2], [0, 0, 0, 1, 1, 2], [0], [0]>} : vector<2x8x8xf32>, vector<2x8x8xf32>, vector<2x8x8xf32> -> vector<2x8x8xf32>
    "tpu.trace_stop"() : () -> ()
    %103 = vector.shape_cast %102 : vector<2x8x8xf32> to vector<16x8xf32>
    %c0_41 = arith.constant 0 : index
    %c3 = arith.constant 3 : index
    %c0_42 = arith.constant 0 : index
    %c0_43 = arith.constant 0 : index
    %104 = vector.load %arg6[%c0_41, %c3, %c0_42, %c0_43] : memref<3x4x8x32xf32, #tpu.memory_space<vmem>>, vector<1x1x8x32xf32>
    %105 = vector.shape_cast %104 : vector<1x1x8x32xf32> to vector<8x32xf32>
    %cst_44 = arith.constant dense<0.000000e+00> : vector<16x32xf32>
    %106 = tpu.matmul %103, %105, %cst_44 {dimension_numbers = #tpu.dot_dimension_numbers<[1], [0], [0], [1], [0, 0, 1, 1], [], []>} : vector<16x8xf32>, vector<8x32xf32>, vector<16x32xf32> -> vector<16x32xf32>
    %107 = arith.addf %83, %106 : vector<16x32xf32>
    %c0_45 = arith.constant 0 : index
    %c0_46 = arith.constant 0 : index
    %c0_47 = arith.constant 0 : index
    %108 = vector.load %arg7[%c0_45, %c0_46, %c0_47] : memref<3x1x32xf32, #tpu.memory_space<vmem>>, vector<1x1x32xf32>
    %109 = vector.shape_cast %108 : vector<1x1x32xf32> to vector<1x32xf32>
    %110 = vector.broadcast %109 : vector<1x32xf32> to vector<16x32xf32>
    %111 = arith.addf %107, %110 : vector<16x32xf32>
    %112 = arith.addf %111, %4 : vector<16x32xf32>
    %c0_48 = arith.constant 0 : index
    %c0_49 = arith.constant 0 : index
    %c0_50 = arith.constant 0 : index
    %113 = vector.load %arg8[%c0_48, %c0_49, %c0_50] : memref<3x1x32xf32, #tpu.memory_space<vmem>>, vector<1x1x32xf32>
    %114 = vector.shape_cast %113 : vector<1x1x32xf32> to vector<1x32xf32>
    %c0_51 = arith.constant 0 : index
    %c0_52 = arith.constant 0 : index
    %c0_53 = arith.constant 0 : index
    %115 = vector.load %arg9[%c0_51, %c0_52, %c0_53] : memref<3x1x32xf32, #tpu.memory_space<vmem>>, vector<1x1x32xf32>
    %116 = vector.shape_cast %115 : vector<1x1x32xf32> to vector<1x32xf32>
    %cst_54 = arith.constant dense<0.000000e+00> : vector<16xf32>
    %117 = vector.multi_reduction <add>, %112, %cst_54 [1] : vector<16x32xf32> to vector<16xf32>
    %118 = vector.shape_cast %117 : vector<16xf32> to vector<16x1xf32>
    %cst_55 = arith.constant 3.200000e+01 : f32
    %119 = vector.broadcast %cst_55 : f32 to vector<16x1xf32>
    %120 = arith.divf %118, %119 : vector<16x1xf32>
    %121 = vector.broadcast %120 : vector<16x1xf32> to vector<16x32xf32>
    %122 = arith.subf %112, %121 : vector<16x32xf32>
    %123 = arith.mulf %122, %122 : vector<16x32xf32>
    %cst_56 = arith.constant dense<0.000000e+00> : vector<16xf32>
    %124 = vector.multi_reduction <add>, %123, %cst_56 [1] : vector<16x32xf32> to vector<16xf32>
    %125 = vector.shape_cast %124 : vector<16xf32> to vector<16x1xf32>
    %cst_57 = arith.constant 3.200000e+01 : f32
    %126 = vector.broadcast %cst_57 : f32 to vector<16x1xf32>
    %127 = arith.divf %125, %126 : vector<16x1xf32>
    %128 = vector.broadcast %120 : vector<16x1xf32> to vector<16x32xf32>
    %129 = arith.subf %112, %128 : vector<16x32xf32>
    %cst_58 = arith.constant 9.99999974E-6 : f32
    %130 = vector.broadcast %cst_58 : f32 to vector<16x1xf32>
    %131 = arith.addf %127, %130 : vector<16x1xf32>
    %132 = math.rsqrt %131 : vector<16x1xf32>
    %133 = vector.broadcast %132 : vector<16x1xf32> to vector<16x32xf32>
    %134 = arith.mulf %129, %133 : vector<16x32xf32>
    %135 = vector.broadcast %114 : vector<1x32xf32> to vector<16x32xf32>
    %136 = arith.mulf %134, %135 : vector<16x32xf32>
    %137 = vector.broadcast %116 : vector<1x32xf32> to vector<16x32xf32>
    %138 = arith.addf %136, %137 : vector<16x32xf32>
    %c0_59 = arith.constant 0 : index
    %c0_60 = arith.constant 0 : index
    %c0_61 = arith.constant 0 : index
    %139 = vector.load %arg10[%c0_59, %c0_60, %c0_61] : memref<3x32x128xf32, #tpu.memory_space<vmem>>, vector<1x32x128xf32>
    %140 = vector.shape_cast %139 : vector<1x32x128xf32> to vector<32x128xf32>
    %cst_62 = arith.constant dense<0.000000e+00> : vector<16x128xf32>
    %141 = tpu.matmul %138, %140, %cst_62 {dimension_numbers = #tpu.dot_dimension_numbers<[1], [0], [0], [1], [0, 0, 1, 1], [], []>} : vector<16x32xf32>, vector<32x128xf32>, vector<16x128xf32> -> vector<16x128xf32>
    %c0_63 = arith.constant 0 : index
    %c0_64 = arith.constant 0 : index
    %c0_65 = arith.constant 0 : index
    %142 = vector.load %arg11[%c0_63, %c0_64, %c0_65] : memref<3x1x128xf32, #tpu.memory_space<vmem>>, vector<1x1x128xf32>
    %143 = vector.shape_cast %142 : vector<1x1x128xf32> to vector<1x128xf32>
    %144 = vector.broadcast %143 : vector<1x128xf32> to vector<16x128xf32>
    %145 = arith.addf %141, %144 : vector<16x128xf32>
    %cst_66 = arith.constant 0.000000e+00 : f32
    %146 = vector.broadcast %cst_66 : f32 to vector<16x128xf32>
    %147 = arith.maximumf %145, %146 : vector<16x128xf32>
    %c0_67 = arith.constant 0 : index
    %c0_68 = arith.constant 0 : index
    %c0_69 = arith.constant 0 : index
    %148 = vector.load %arg12[%c0_67, %c0_68, %c0_69] : memref<3x128x32xf32, #tpu.memory_space<vmem>>, vector<1x128x32xf32>
    %149 = vector.shape_cast %148 : vector<1x128x32xf32> to vector<128x32xf32>
    %cst_70 = arith.constant dense<0.000000e+00> : vector<16x32xf32>
    %150 = tpu.matmul %147, %149, %cst_70 {dimension_numbers = #tpu.dot_dimension_numbers<[1], [0], [0], [1], [0, 0, 1, 1], [], []>} : vector<16x128xf32>, vector<128x32xf32>, vector<16x32xf32> -> vector<16x32xf32>
    %c0_71 = arith.constant 0 : index
    %c0_72 = arith.constant 0 : index
    %c0_73 = arith.constant 0 : index
    %151 = vector.load %arg13[%c0_71, %c0_72, %c0_73] : memref<3x1x32xf32, #tpu.memory_space<vmem>>, vector<1x1x32xf32>
    %152 = vector.shape_cast %151 : vector<1x1x32xf32> to vector<1x32xf32>
    %153 = vector.broadcast %152 : vector<1x32xf32> to vector<16x32xf32>
    %154 = arith.addf %150, %153 : vector<16x32xf32>
    %155 = arith.addf %154, %138 : vector<16x32xf32>
    %c0_74 = arith.constant 0 : index
    %c0_75 = arith.constant 0 : index
    %c0_76 = arith.constant 0 : index
    %156 = vector.load %arg14[%c0_74, %c0_75, %c0_76] : memref<3x1x32xf32, #tpu.memory_space<vmem>>, vector<1x1x32xf32>
    %157 = vector.shape_cast %156 : vector<1x1x32xf32> to vector<1x32xf32>
    %c0_77 = arith.constant 0 : index
    %c0_78 = arith.constant 0 : index
    %c0_79 = arith.constant 0 : index
    %158 = vector.load %arg15[%c0_77, %c0_78, %c0_79] : memref<3x1x32xf32, #tpu.memory_space<vmem>>, vector<1x1x32xf32>
    %159 = vector.shape_cast %158 : vector<1x1x32xf32> to vector<1x32xf32>
    %cst_80 = arith.constant dense<0.000000e+00> : vector<16xf32>
    %160 = vector.multi_reduction <add>, %155, %cst_80 [1] : vector<16x32xf32> to vector<16xf32>
    %161 = vector.shape_cast %160 : vector<16xf32> to vector<16x1xf32>
    %cst_81 = arith.constant 3.200000e+01 : f32
    %162 = vector.broadcast %cst_81 : f32 to vector<16x1xf32>
    %163 = arith.divf %161, %162 : vector<16x1xf32>
    %164 = vector.broadcast %163 : vector<16x1xf32> to vector<16x32xf32>
    %165 = arith.subf %155, %164 : vector<16x32xf32>
    %166 = arith.mulf %165, %165 : vector<16x32xf32>
    %cst_82 = arith.constant dense<0.000000e+00> : vector<16xf32>
    %167 = vector.multi_reduction <add>, %166, %cst_82 [1] : vector<16x32xf32> to vector<16xf32>
    %168 = vector.shape_cast %167 : vector<16xf32> to vector<16x1xf32>
    %cst_83 = arith.constant 3.200000e+01 : f32
    %169 = vector.broadcast %cst_83 : f32 to vector<16x1xf32>
    %170 = arith.divf %168, %169 : vector<16x1xf32>
    %171 = vector.broadcast %163 : vector<16x1xf32> to vector<16x32xf32>
    %172 = arith.subf %155, %171 : vector<16x32xf32>
    %cst_84 = arith.constant 9.99999974E-6 : f32
    %173 = vector.broadcast %cst_84 : f32 to vector<16x1xf32>
    %174 = arith.addf %170, %173 : vector<16x1xf32>
    %175 = math.rsqrt %174 : vector<16x1xf32>
    %176 = vector.broadcast %175 : vector<16x1xf32> to vector<16x32xf32>
    %177 = arith.mulf %172, %176 : vector<16x32xf32>
    %178 = vector.broadcast %157 : vector<1x32xf32> to vector<16x32xf32>
    %179 = arith.mulf %177, %178 : vector<16x32xf32>
    %180 = vector.broadcast %159 : vector<1x32xf32> to vector<16x32xf32>
    %181 = arith.addf %179, %180 : vector<16x32xf32>
    %c1_85 = arith.constant 1 : index
    %c0_86 = arith.constant 0 : index
    %c0_87 = arith.constant 0 : index
    %182 = vector.load %arg5[%c1_85, %c0_86, %c0_87] : memref<3x32x96xf32, #tpu.memory_space<vmem>>, vector<1x32x96xf32>
    %183 = vector.shape_cast %182 : vector<1x32x96xf32> to vector<32x96xf32>
    %cst_88 = arith.constant dense<0.000000e+00> : vector<16x96xf32>
    %184 = tpu.matmul %181, %183, %cst_88 {dimension_numbers = #tpu.dot_dimension_numbers<[1], [0], [0], [1], [0, 0, 1, 1], [], []>} : vector<16x32xf32>, vector<32x96xf32>, vector<16x96xf32> -> vector<16x96xf32>
    %cst_89 = arith.constant 0.000000e+00 : f32
    %185 = vector.broadcast %cst_89 : f32 to vector<16x32xf32>
    %186 = vector.extract_strided_slice %184 {offsets = [0, 0], sizes = [16, 8], strides = [1, 1]} : vector<16x96xf32> to vector<16x8xf32>
    %187 = vector.shape_cast %186 : vector<16x8xf32> to vector<2x8x8xf32>
    %188 = vector.extract_strided_slice %184 {offsets = [0, 32], sizes = [16, 8], strides = [1, 1]} : vector<16x96xf32> to vector<16x8xf32>
    %189 = vector.shape_cast %188 : vector<16x8xf32> to vector<2x8x8xf32>
    %190 = vector.extract_strided_slice %184 {offsets = [0, 64], sizes = [16, 8], strides = [1, 1]} : vector<16x96xf32> to vector<16x8xf32>
    %191 = vector.shape_cast %190 : vector<16x8xf32> to vector<2x8x8xf32>
    "tpu.trace_start"() <{level = 10 : i32, message = "bqd,bkd->bqk"}> : () -> ()
    %cst_90 = arith.constant dense<0.000000e+00> : vector<2x8x8xf32>
    %192 = tpu.matmul %187, %189, %cst_90 {dimension_numbers = #tpu.dot_dimension_numbers<[2], [2], [1], [1], [0, 0, 0, 1, 1, 1], [0], [0]>} : vector<2x8x8xf32>, vector<2x8x8xf32>, vector<2x8x8xf32> -> vector<2x8x8xf32>
    "tpu.trace_stop"() : () -> ()
    %193 = arith.addf %192, %7 : vector<2x8x8xf32>
    %cst_91 = arith.constant dense<0xFF800000> : vector<2x8xf32>
    %194 = vector.multi_reduction <maximumf>, %193, %cst_91 [2] : vector<2x8x8xf32> to vector<2x8xf32>
    %195 = vector.shape_cast %194 : vector<2x8xf32> to vector<2x8x1xf32>
    %196 = vector.broadcast %195 : vector<2x8x1xf32> to vector<2x8x8xf32>
    %197 = arith.subf %193, %196 : vector<2x8x8xf32>
    %198 = math.exp %197 : vector<2x8x8xf32>
    %cst_92 = arith.constant dense<0.000000e+00> : vector<2x8xf32>
    %199 = vector.multi_reduction <add>, %198, %cst_92 [2] : vector<2x8x8xf32> to vector<2x8xf32>
    %200 = vector.shape_cast %199 : vector<2x8xf32> to vector<2x8x1xf32>
    %201 = tpu.reciprocal %200 {approx = true} : vector<2x8x1xf32> -> vector<2x8x1xf32>
    %202 = vector.broadcast %201 : vector<2x8x1xf32> to vector<2x8x8xf32>
    %203 = arith.mulf %198, %202 : vector<2x8x8xf32>
    "tpu.trace_start"() <{level = 10 : i32, message = "bqk,bkd->bqd"}> : () -> ()
    %cst_93 = arith.constant dense<0.000000e+00> : vector<2x8x8xf32>
    %204 = tpu.matmul %203, %191, %cst_93 {dimension_numbers = #tpu.dot_dimension_numbers<[2], [1], [1], [2], [0, 0, 0, 1, 1, 2], [0], [0]>} : vector<2x8x8xf32>, vector<2x8x8xf32>, vector<2x8x8xf32> -> vector<2x8x8xf32>
    "tpu.trace_stop"() : () -> ()
    %205 = vector.shape_cast %204 : vector<2x8x8xf32> to vector<16x8xf32>
    %c1_94 = arith.constant 1 : index
    %c0_95 = arith.constant 0 : index
    %c0_96 = arith.constant 0 : index
    %c0_97 = arith.constant 0 : index
    %206 = vector.load %arg6[%c1_94, %c0_95, %c0_96, %c0_97] : memref<3x4x8x32xf32, #tpu.memory_space<vmem>>, vector<1x1x8x32xf32>
    %207 = vector.shape_cast %206 : vector<1x1x8x32xf32> to vector<8x32xf32>
    %cst_98 = arith.constant dense<0.000000e+00> : vector<16x32xf32>
    %208 = tpu.matmul %205, %207, %cst_98 {dimension_numbers = #tpu.dot_dimension_numbers<[1], [0], [0], [1], [0, 0, 1, 1], [], []>} : vector<16x8xf32>, vector<8x32xf32>, vector<16x32xf32> -> vector<16x32xf32>
    %209 = arith.addf %185, %208 : vector<16x32xf32>
    %210 = vector.extract_strided_slice %184 {offsets = [0, 8], sizes = [16, 8], strides = [1, 1]} : vector<16x96xf32> to vector<16x8xf32>
    %211 = vector.shape_cast %210 : vector<16x8xf32> to vector<2x8x8xf32>
    %212 = vector.extract_strided_slice %184 {offsets = [0, 40], sizes = [16, 8], strides = [1, 1]} : vector<16x96xf32> to vector<16x8xf32>
    %213 = vector.shape_cast %212 : vector<16x8xf32> to vector<2x8x8xf32>
    %214 = vector.extract_strided_slice %184 {offsets = [0, 72], sizes = [16, 8], strides = [1, 1]} : vector<16x96xf32> to vector<16x8xf32>
    %215 = vector.shape_cast %214 : vector<16x8xf32> to vector<2x8x8xf32>
    "tpu.trace_start"() <{level = 10 : i32, message = "bqd,bkd->bqk"}> : () -> ()
    %cst_99 = arith.constant dense<0.000000e+00> : vector<2x8x8xf32>
    %216 = tpu.matmul %211, %213, %cst_99 {dimension_numbers = #tpu.dot_dimension_numbers<[2], [2], [1], [1], [0, 0, 0, 1, 1, 1], [0], [0]>} : vector<2x8x8xf32>, vector<2x8x8xf32>, vector<2x8x8xf32> -> vector<2x8x8xf32>
    "tpu.trace_stop"() : () -> ()
    %217 = arith.addf %216, %7 : vector<2x8x8xf32>
    %cst_100 = arith.constant dense<0xFF800000> : vector<2x8xf32>
    %218 = vector.multi_reduction <maximumf>, %217, %cst_100 [2] : vector<2x8x8xf32> to vector<2x8xf32>
    %219 = vector.shape_cast %218 : vector<2x8xf32> to vector<2x8x1xf32>
    %220 = vector.broadcast %219 : vector<2x8x1xf32> to vector<2x8x8xf32>
    %221 = arith.subf %217, %220 : vector<2x8x8xf32>
    %222 = math.exp %221 : vector<2x8x8xf32>
    %cst_101 = arith.constant dense<0.000000e+00> : vector<2x8xf32>
    %223 = vector.multi_reduction <add>, %222, %cst_101 [2] : vector<2x8x8xf32> to vector<2x8xf32>
    %224 = vector.shape_cast %223 : vector<2x8xf32> to vector<2x8x1xf32>
    %225 = tpu.reciprocal %224 {approx = true} : vector<2x8x1xf32> -> vector<2x8x1xf32>
    %226 = vector.broadcast %225 : vector<2x8x1xf32> to vector<2x8x8xf32>
    %227 = arith.mulf %222, %226 : vector<2x8x8xf32>
    "tpu.trace_start"() <{level = 10 : i32, message = "bqk,bkd->bqd"}> : () -> ()
    %cst_102 = arith.constant dense<0.000000e+00> : vector<2x8x8xf32>
    %228 = tpu.matmul %227, %215, %cst_102 {dimension_numbers = #tpu.dot_dimension_numbers<[2], [1], [1], [2], [0, 0, 0, 1, 1, 2], [0], [0]>} : vector<2x8x8xf32>, vector<2x8x8xf32>, vector<2x8x8xf32> -> vector<2x8x8xf32>
    "tpu.trace_stop"() : () -> ()
    %229 = vector.shape_cast %228 : vector<2x8x8xf32> to vector<16x8xf32>
    %c1_103 = arith.constant 1 : index
    %c1_104 = arith.constant 1 : index
    %c0_105 = arith.constant 0 : index
    %c0_106 = arith.constant 0 : index
    %230 = vector.load %arg6[%c1_103, %c1_104, %c0_105, %c0_106] : memref<3x4x8x32xf32, #tpu.memory_space<vmem>>, vector<1x1x8x32xf32>
    %231 = vector.shape_cast %230 : vector<1x1x8x32xf32> to vector<8x32xf32>
    %cst_107 = arith.constant dense<0.000000e+00> : vector<16x32xf32>
    %232 = tpu.matmul %229, %231, %cst_107 {dimension_numbers = #tpu.dot_dimension_numbers<[1], [0], [0], [1], [0, 0, 1, 1], [], []>} : vector<16x8xf32>, vector<8x32xf32>, vector<16x32xf32> -> vector<16x32xf32>
    %233 = arith.addf %209, %232 : vector<16x32xf32>
    %234 = vector.extract_strided_slice %184 {offsets = [0, 16], sizes = [16, 8], strides = [1, 1]} : vector<16x96xf32> to vector<16x8xf32>
    %235 = vector.shape_cast %234 : vector<16x8xf32> to vector<2x8x8xf32>
    %236 = vector.extract_strided_slice %184 {offsets = [0, 48], sizes = [16, 8], strides = [1, 1]} : vector<16x96xf32> to vector<16x8xf32>
    %237 = vector.shape_cast %236 : vector<16x8xf32> to vector<2x8x8xf32>
    %238 = vector.extract_strided_slice %184 {offsets = [0, 80], sizes = [16, 8], strides = [1, 1]} : vector<16x96xf32> to vector<16x8xf32>
    %239 = vector.shape_cast %238 : vector<16x8xf32> to vector<2x8x8xf32>
    "tpu.trace_start"() <{level = 10 : i32, message = "bqd,bkd->bqk"}> : () -> ()
    %cst_108 = arith.constant dense<0.000000e+00> : vector<2x8x8xf32>
    %240 = tpu.matmul %235, %237, %cst_108 {dimension_numbers = #tpu.dot_dimension_numbers<[2], [2], [1], [1], [0, 0, 0, 1, 1, 1], [0], [0]>} : vector<2x8x8xf32>, vector<2x8x8xf32>, vector<2x8x8xf32> -> vector<2x8x8xf32>
    "tpu.trace_stop"() : () -> ()
    %241 = arith.addf %240, %7 : vector<2x8x8xf32>
    %cst_109 = arith.constant dense<0xFF800000> : vector<2x8xf32>
    %242 = vector.multi_reduction <maximumf>, %241, %cst_109 [2] : vector<2x8x8xf32> to vector<2x8xf32>
    %243 = vector.shape_cast %242 : vector<2x8xf32> to vector<2x8x1xf32>
    %244 = vector.broadcast %243 : vector<2x8x1xf32> to vector<2x8x8xf32>
    %245 = arith.subf %241, %244 : vector<2x8x8xf32>
    %246 = math.exp %245 : vector<2x8x8xf32>
    %cst_110 = arith.constant dense<0.000000e+00> : vector<2x8xf32>
    %247 = vector.multi_reduction <add>, %246, %cst_110 [2] : vector<2x8x8xf32> to vector<2x8xf32>
    %248 = vector.shape_cast %247 : vector<2x8xf32> to vector<2x8x1xf32>
    %249 = tpu.reciprocal %248 {approx = true} : vector<2x8x1xf32> -> vector<2x8x1xf32>
    %250 = vector.broadcast %249 : vector<2x8x1xf32> to vector<2x8x8xf32>
    %251 = arith.mulf %246, %250 : vector<2x8x8xf32>
    "tpu.trace_start"() <{level = 10 : i32, message = "bqk,bkd->bqd"}> : () -> ()
    %cst_111 = arith.constant dense<0.000000e+00> : vector<2x8x8xf32>
    %252 = tpu.matmul %251, %239, %cst_111 {dimension_numbers = #tpu.dot_dimension_numbers<[2], [1], [1], [2], [0, 0, 0, 1, 1, 2], [0], [0]>} : vector<2x8x8xf32>, vector<2x8x8xf32>, vector<2x8x8xf32> -> vector<2x8x8xf32>
    "tpu.trace_stop"() : () -> ()
    %253 = vector.shape_cast %252 : vector<2x8x8xf32> to vector<16x8xf32>
    %c1_112 = arith.constant 1 : index
    %c2_113 = arith.constant 2 : index
    %c0_114 = arith.constant 0 : index
    %c0_115 = arith.constant 0 : index
    %254 = vector.load %arg6[%c1_112, %c2_113, %c0_114, %c0_115] : memref<3x4x8x32xf32, #tpu.memory_space<vmem>>, vector<1x1x8x32xf32>
    %255 = vector.shape_cast %254 : vector<1x1x8x32xf32> to vector<8x32xf32>
    %cst_116 = arith.constant dense<0.000000e+00> : vector<16x32xf32>
    %256 = tpu.matmul %253, %255, %cst_116 {dimension_numbers = #tpu.dot_dimension_numbers<[1], [0], [0], [1], [0, 0, 1, 1], [], []>} : vector<16x8xf32>, vector<8x32xf32>, vector<16x32xf32> -> vector<16x32xf32>
    %257 = arith.addf %233, %256 : vector<16x32xf32>
    %258 = vector.extract_strided_slice %184 {offsets = [0, 24], sizes = [16, 8], strides = [1, 1]} : vector<16x96xf32> to vector<16x8xf32>
    %259 = vector.shape_cast %258 : vector<16x8xf32> to vector<2x8x8xf32>
    %260 = vector.extract_strided_slice %184 {offsets = [0, 56], sizes = [16, 8], strides = [1, 1]} : vector<16x96xf32> to vector<16x8xf32>
    %261 = vector.shape_cast %260 : vector<16x8xf32> to vector<2x8x8xf32>
    %262 = vector.extract_strided_slice %184 {offsets = [0, 88], sizes = [16, 8], strides = [1, 1]} : vector<16x96xf32> to vector<16x8xf32>
    %263 = vector.shape_cast %262 : vector<16x8xf32> to vector<2x8x8xf32>
    "tpu.trace_start"() <{level = 10 : i32, message = "bqd,bkd->bqk"}> : () -> ()
    %cst_117 = arith.constant dense<0.000000e+00> : vector<2x8x8xf32>
    %264 = tpu.matmul %259, %261, %cst_117 {dimension_numbers = #tpu.dot_dimension_numbers<[2], [2], [1], [1], [0, 0, 0, 1, 1, 1], [0], [0]>} : vector<2x8x8xf32>, vector<2x8x8xf32>, vector<2x8x8xf32> -> vector<2x8x8xf32>
    "tpu.trace_stop"() : () -> ()
    %265 = arith.addf %264, %7 : vector<2x8x8xf32>
    %cst_118 = arith.constant dense<0xFF800000> : vector<2x8xf32>
    %266 = vector.multi_reduction <maximumf>, %265, %cst_118 [2] : vector<2x8x8xf32> to vector<2x8xf32>
    %267 = vector.shape_cast %266 : vector<2x8xf32> to vector<2x8x1xf32>
    %268 = vector.broadcast %267 : vector<2x8x1xf32> to vector<2x8x8xf32>
    %269 = arith.subf %265, %268 : vector<2x8x8xf32>
    %270 = math.exp %269 : vector<2x8x8xf32>
    %cst_119 = arith.constant dense<0.000000e+00> : vector<2x8xf32>
    %271 = vector.multi_reduction <add>, %270, %cst_119 [2] : vector<2x8x8xf32> to vector<2x8xf32>
    %272 = vector.shape_cast %271 : vector<2x8xf32> to vector<2x8x1xf32>
    %273 = tpu.reciprocal %272 {approx = true} : vector<2x8x1xf32> -> vector<2x8x1xf32>
    %274 = vector.broadcast %273 : vector<2x8x1xf32> to vector<2x8x8xf32>
    %275 = arith.mulf %270, %274 : vector<2x8x8xf32>
    "tpu.trace_start"() <{level = 10 : i32, message = "bqk,bkd->bqd"}> : () -> ()
    %cst_120 = arith.constant dense<0.000000e+00> : vector<2x8x8xf32>
    %276 = tpu.matmul %275, %263, %cst_120 {dimension_numbers = #tpu.dot_dimension_numbers<[2], [1], [1], [2], [0, 0, 0, 1, 1, 2], [0], [0]>} : vector<2x8x8xf32>, vector<2x8x8xf32>, vector<2x8x8xf32> -> vector<2x8x8xf32>
    "tpu.trace_stop"() : () -> ()
    %277 = vector.shape_cast %276 : vector<2x8x8xf32> to vector<16x8xf32>
    %c1_121 = arith.constant 1 : index
    %c3_122 = arith.constant 3 : index
    %c0_123 = arith.constant 0 : index
    %c0_124 = arith.constant 0 : index
    %278 = vector.load %arg6[%c1_121, %c3_122, %c0_123, %c0_124] : memref<3x4x8x32xf32, #tpu.memory_space<vmem>>, vector<1x1x8x32xf32>
    %279 = vector.shape_cast %278 : vector<1x1x8x32xf32> to vector<8x32xf32>
    %cst_125 = arith.constant dense<0.000000e+00> : vector<16x32xf32>
    %280 = tpu.matmul %277, %279, %cst_125 {dimension_numbers = #tpu.dot_dimension_numbers<[1], [0], [0], [1], [0, 0, 1, 1], [], []>} : vector<16x8xf32>, vector<8x32xf32>, vector<16x32xf32> -> vector<16x32xf32>
    %281 = arith.addf %257, %280 : vector<16x32xf32>
    %c1_126 = arith.constant 1 : index
    %c0_127 = arith.constant 0 : index
    %c0_128 = arith.constant 0 : index
    %282 = vector.load %arg7[%c1_126, %c0_127, %c0_128] : memref<3x1x32xf32, #tpu.memory_space<vmem>>, vector<1x1x32xf32>
    %283 = vector.shape_cast %282 : vector<1x1x32xf32> to vector<1x32xf32>
    %284 = vector.broadcast %283 : vector<1x32xf32> to vector<16x32xf32>
    %285 = arith.addf %281, %284 : vector<16x32xf32>
    %286 = arith.addf %285, %181 : vector<16x32xf32>
    %c1_129 = arith.constant 1 : index
    %c0_130 = arith.constant 0 : index
    %c0_131 = arith.constant 0 : index
    %287 = vector.load %arg8[%c1_129, %c0_130, %c0_131] : memref<3x1x32xf32, #tpu.memory_space<vmem>>, vector<1x1x32xf32>
    %288 = vector.shape_cast %287 : vector<1x1x32xf32> to vector<1x32xf32>
    %c1_132 = arith.constant 1 : index
    %c0_133 = arith.constant 0 : index
    %c0_134 = arith.constant 0 : index
    %289 = vector.load %arg9[%c1_132, %c0_133, %c0_134] : memref<3x1x32xf32, #tpu.memory_space<vmem>>, vector<1x1x32xf32>
    %290 = vector.shape_cast %289 : vector<1x1x32xf32> to vector<1x32xf32>
    %cst_135 = arith.constant dense<0.000000e+00> : vector<16xf32>
    %291 = vector.multi_reduction <add>, %286, %cst_135 [1] : vector<16x32xf32> to vector<16xf32>
    %292 = vector.shape_cast %291 : vector<16xf32> to vector<16x1xf32>
    %cst_136 = arith.constant 3.200000e+01 : f32
    %293 = vector.broadcast %cst_136 : f32 to vector<16x1xf32>
    %294 = arith.divf %292, %293 : vector<16x1xf32>
    %295 = vector.broadcast %294 : vector<16x1xf32> to vector<16x32xf32>
    %296 = arith.subf %286, %295 : vector<16x32xf32>
    %297 = arith.mulf %296, %296 : vector<16x32xf32>
    %cst_137 = arith.constant dense<0.000000e+00> : vector<16xf32>
    %298 = vector.multi_reduction <add>, %297, %cst_137 [1] : vector<16x32xf32> to vector<16xf32>
    %299 = vector.shape_cast %298 : vector<16xf32> to vector<16x1xf32>
    %cst_138 = arith.constant 3.200000e+01 : f32
    %300 = vector.broadcast %cst_138 : f32 to vector<16x1xf32>
    %301 = arith.divf %299, %300 : vector<16x1xf32>
    %302 = vector.broadcast %294 : vector<16x1xf32> to vector<16x32xf32>
    %303 = arith.subf %286, %302 : vector<16x32xf32>
    %cst_139 = arith.constant 9.99999974E-6 : f32
    %304 = vector.broadcast %cst_139 : f32 to vector<16x1xf32>
    %305 = arith.addf %301, %304 : vector<16x1xf32>
    %306 = math.rsqrt %305 : vector<16x1xf32>
    %307 = vector.broadcast %306 : vector<16x1xf32> to vector<16x32xf32>
    %308 = arith.mulf %303, %307 : vector<16x32xf32>
    %309 = vector.broadcast %288 : vector<1x32xf32> to vector<16x32xf32>
    %310 = arith.mulf %308, %309 : vector<16x32xf32>
    %311 = vector.broadcast %290 : vector<1x32xf32> to vector<16x32xf32>
    %312 = arith.addf %310, %311 : vector<16x32xf32>
    %c1_140 = arith.constant 1 : index
    %c0_141 = arith.constant 0 : index
    %c0_142 = arith.constant 0 : index
    %313 = vector.load %arg10[%c1_140, %c0_141, %c0_142] : memref<3x32x128xf32, #tpu.memory_space<vmem>>, vector<1x32x128xf32>
    %314 = vector.shape_cast %313 : vector<1x32x128xf32> to vector<32x128xf32>
    %cst_143 = arith.constant dense<0.000000e+00> : vector<16x128xf32>
    %315 = tpu.matmul %312, %314, %cst_143 {dimension_numbers = #tpu.dot_dimension_numbers<[1], [0], [0], [1], [0, 0, 1, 1], [], []>} : vector<16x32xf32>, vector<32x128xf32>, vector<16x128xf32> -> vector<16x128xf32>
    %c1_144 = arith.constant 1 : index
    %c0_145 = arith.constant 0 : index
    %c0_146 = arith.constant 0 : index
    %316 = vector.load %arg11[%c1_144, %c0_145, %c0_146] : memref<3x1x128xf32, #tpu.memory_space<vmem>>, vector<1x1x128xf32>
    %317 = vector.shape_cast %316 : vector<1x1x128xf32> to vector<1x128xf32>
    %318 = vector.broadcast %317 : vector<1x128xf32> to vector<16x128xf32>
    %319 = arith.addf %315, %318 : vector<16x128xf32>
    %cst_147 = arith.constant 0.000000e+00 : f32
    %320 = vector.broadcast %cst_147 : f32 to vector<16x128xf32>
    %321 = arith.maximumf %319, %320 : vector<16x128xf32>
    %c1_148 = arith.constant 1 : index
    %c0_149 = arith.constant 0 : index
    %c0_150 = arith.constant 0 : index
    %322 = vector.load %arg12[%c1_148, %c0_149, %c0_150] : memref<3x128x32xf32, #tpu.memory_space<vmem>>, vector<1x128x32xf32>
    %323 = vector.shape_cast %322 : vector<1x128x32xf32> to vector<128x32xf32>
    %cst_151 = arith.constant dense<0.000000e+00> : vector<16x32xf32>
    %324 = tpu.matmul %321, %323, %cst_151 {dimension_numbers = #tpu.dot_dimension_numbers<[1], [0], [0], [1], [0, 0, 1, 1], [], []>} : vector<16x128xf32>, vector<128x32xf32>, vector<16x32xf32> -> vector<16x32xf32>
    %c1_152 = arith.constant 1 : index
    %c0_153 = arith.constant 0 : index
    %c0_154 = arith.constant 0 : index
    %325 = vector.load %arg13[%c1_152, %c0_153, %c0_154] : memref<3x1x32xf32, #tpu.memory_space<vmem>>, vector<1x1x32xf32>
    %326 = vector.shape_cast %325 : vector<1x1x32xf32> to vector<1x32xf32>
    %327 = vector.broadcast %326 : vector<1x32xf32> to vector<16x32xf32>
    %328 = arith.addf %324, %327 : vector<16x32xf32>
    %329 = arith.addf %328, %312 : vector<16x32xf32>
    %c1_155 = arith.constant 1 : index
    %c0_156 = arith.constant 0 : index
    %c0_157 = arith.constant 0 : index
    %330 = vector.load %arg14[%c1_155, %c0_156, %c0_157] : memref<3x1x32xf32, #tpu.memory_space<vmem>>, vector<1x1x32xf32>
    %331 = vector.shape_cast %330 : vector<1x1x32xf32> to vector<1x32xf32>
    %c1_158 = arith.constant 1 : index
    %c0_159 = arith.constant 0 : index
    %c0_160 = arith.constant 0 : index
    %332 = vector.load %arg15[%c1_158, %c0_159, %c0_160] : memref<3x1x32xf32, #tpu.memory_space<vmem>>, vector<1x1x32xf32>
    %333 = vector.shape_cast %332 : vector<1x1x32xf32> to vector<1x32xf32>
    %cst_161 = arith.constant dense<0.000000e+00> : vector<16xf32>
    %334 = vector.multi_reduction <add>, %329, %cst_161 [1] : vector<16x32xf32> to vector<16xf32>
    %335 = vector.shape_cast %334 : vector<16xf32> to vector<16x1xf32>
    %cst_162 = arith.constant 3.200000e+01 : f32
    %336 = vector.broadcast %cst_162 : f32 to vector<16x1xf32>
    %337 = arith.divf %335, %336 : vector<16x1xf32>
    %338 = vector.broadcast %337 : vector<16x1xf32> to vector<16x32xf32>
    %339 = arith.subf %329, %338 : vector<16x32xf32>
    %340 = arith.mulf %339, %339 : vector<16x32xf32>
    %cst_163 = arith.constant dense<0.000000e+00> : vector<16xf32>
    %341 = vector.multi_reduction <add>, %340, %cst_163 [1] : vector<16x32xf32> to vector<16xf32>
    %342 = vector.shape_cast %341 : vector<16xf32> to vector<16x1xf32>
    %cst_164 = arith.constant 3.200000e+01 : f32
    %343 = vector.broadcast %cst_164 : f32 to vector<16x1xf32>
    %344 = arith.divf %342, %343 : vector<16x1xf32>
    %345 = vector.broadcast %337 : vector<16x1xf32> to vector<16x32xf32>
    %346 = arith.subf %329, %345 : vector<16x32xf32>
    %cst_165 = arith.constant 9.99999974E-6 : f32
    %347 = vector.broadcast %cst_165 : f32 to vector<16x1xf32>
    %348 = arith.addf %344, %347 : vector<16x1xf32>
    %349 = math.rsqrt %348 : vector<16x1xf32>
    %350 = vector.broadcast %349 : vector<16x1xf32> to vector<16x32xf32>
    %351 = arith.mulf %346, %350 : vector<16x32xf32>
    %352 = vector.broadcast %331 : vector<1x32xf32> to vector<16x32xf32>
    %353 = arith.mulf %351, %352 : vector<16x32xf32>
    %354 = vector.broadcast %333 : vector<1x32xf32> to vector<16x32xf32>
    %355 = arith.addf %353, %354 : vector<16x32xf32>
    %c2_166 = arith.constant 2 : index
    %c0_167 = arith.constant 0 : index
    %c0_168 = arith.constant 0 : index
    %356 = vector.load %arg5[%c2_166, %c0_167, %c0_168] : memref<3x32x96xf32, #tpu.memory_space<vmem>>, vector<1x32x96xf32>
    %357 = vector.shape_cast %356 : vector<1x32x96xf32> to vector<32x96xf32>
    %cst_169 = arith.constant dense<0.000000e+00> : vector<16x96xf32>
    %358 = tpu.matmul %355, %357, %cst_169 {dimension_numbers = #tpu.dot_dimension_numbers<[1], [0], [0], [1], [0, 0, 1, 1], [], []>} : vector<16x32xf32>, vector<32x96xf32>, vector<16x96xf32> -> vector<16x96xf32>
    %cst_170 = arith.constant 0.000000e+00 : f32
    %359 = vector.broadcast %cst_170 : f32 to vector<16x32xf32>
    %360 = vector.extract_strided_slice %358 {offsets = [0, 0], sizes = [16, 8], strides = [1, 1]} : vector<16x96xf32> to vector<16x8xf32>
    %361 = vector.shape_cast %360 : vector<16x8xf32> to vector<2x8x8xf32>
    %362 = vector.extract_strided_slice %358 {offsets = [0, 32], sizes = [16, 8], strides = [1, 1]} : vector<16x96xf32> to vector<16x8xf32>
    %363 = vector.shape_cast %362 : vector<16x8xf32> to vector<2x8x8xf32>
    %364 = vector.extract_strided_slice %358 {offsets = [0, 64], sizes = [16, 8], strides = [1, 1]} : vector<16x96xf32> to vector<16x8xf32>
    %365 = vector.shape_cast %364 : vector<16x8xf32> to vector<2x8x8xf32>
    "tpu.trace_start"() <{level = 10 : i32, message = "bqd,bkd->bqk"}> : () -> ()
    %cst_171 = arith.constant dense<0.000000e+00> : vector<2x8x8xf32>
    %366 = tpu.matmul %361, %363, %cst_171 {dimension_numbers = #tpu.dot_dimension_numbers<[2], [2], [1], [1], [0, 0, 0, 1, 1, 1], [0], [0]>} : vector<2x8x8xf32>, vector<2x8x8xf32>, vector<2x8x8xf32> -> vector<2x8x8xf32>
    "tpu.trace_stop"() : () -> ()
    %367 = arith.addf %366, %7 : vector<2x8x8xf32>
    %cst_172 = arith.constant dense<0xFF800000> : vector<2x8xf32>
    %368 = vector.multi_reduction <maximumf>, %367, %cst_172 [2] : vector<2x8x8xf32> to vector<2x8xf32>
    %369 = vector.shape_cast %368 : vector<2x8xf32> to vector<2x8x1xf32>
    %370 = vector.broadcast %369 : vector<2x8x1xf32> to vector<2x8x8xf32>
    %371 = arith.subf %367, %370 : vector<2x8x8xf32>
    %372 = math.exp %371 : vector<2x8x8xf32>
    %cst_173 = arith.constant dense<0.000000e+00> : vector<2x8xf32>
    %373 = vector.multi_reduction <add>, %372, %cst_173 [2] : vector<2x8x8xf32> to vector<2x8xf32>
    %374 = vector.shape_cast %373 : vector<2x8xf32> to vector<2x8x1xf32>
    %375 = tpu.reciprocal %374 {approx = true} : vector<2x8x1xf32> -> vector<2x8x1xf32>
    %376 = vector.broadcast %375 : vector<2x8x1xf32> to vector<2x8x8xf32>
    %377 = arith.mulf %372, %376 : vector<2x8x8xf32>
    "tpu.trace_start"() <{level = 10 : i32, message = "bqk,bkd->bqd"}> : () -> ()
    %cst_174 = arith.constant dense<0.000000e+00> : vector<2x8x8xf32>
    %378 = tpu.matmul %377, %365, %cst_174 {dimension_numbers = #tpu.dot_dimension_numbers<[2], [1], [1], [2], [0, 0, 0, 1, 1, 2], [0], [0]>} : vector<2x8x8xf32>, vector<2x8x8xf32>, vector<2x8x8xf32> -> vector<2x8x8xf32>
    "tpu.trace_stop"() : () -> ()
    %379 = vector.shape_cast %378 : vector<2x8x8xf32> to vector<16x8xf32>
    %c2_175 = arith.constant 2 : index
    %c0_176 = arith.constant 0 : index
    %c0_177 = arith.constant 0 : index
    %c0_178 = arith.constant 0 : index
    %380 = vector.load %arg6[%c2_175, %c0_176, %c0_177, %c0_178] : memref<3x4x8x32xf32, #tpu.memory_space<vmem>>, vector<1x1x8x32xf32>
    %381 = vector.shape_cast %380 : vector<1x1x8x32xf32> to vector<8x32xf32>
    %cst_179 = arith.constant dense<0.000000e+00> : vector<16x32xf32>
    %382 = tpu.matmul %379, %381, %cst_179 {dimension_numbers = #tpu.dot_dimension_numbers<[1], [0], [0], [1], [0, 0, 1, 1], [], []>} : vector<16x8xf32>, vector<8x32xf32>, vector<16x32xf32> -> vector<16x32xf32>
    %383 = arith.addf %359, %382 : vector<16x32xf32>
    %384 = vector.extract_strided_slice %358 {offsets = [0, 8], sizes = [16, 8], strides = [1, 1]} : vector<16x96xf32> to vector<16x8xf32>
    %385 = vector.shape_cast %384 : vector<16x8xf32> to vector<2x8x8xf32>
    %386 = vector.extract_strided_slice %358 {offsets = [0, 40], sizes = [16, 8], strides = [1, 1]} : vector<16x96xf32> to vector<16x8xf32>
    %387 = vector.shape_cast %386 : vector<16x8xf32> to vector<2x8x8xf32>
    %388 = vector.extract_strided_slice %358 {offsets = [0, 72], sizes = [16, 8], strides = [1, 1]} : vector<16x96xf32> to vector<16x8xf32>
    %389 = vector.shape_cast %388 : vector<16x8xf32> to vector<2x8x8xf32>
    "tpu.trace_start"() <{level = 10 : i32, message = "bqd,bkd->bqk"}> : () -> ()
    %cst_180 = arith.constant dense<0.000000e+00> : vector<2x8x8xf32>
    %390 = tpu.matmul %385, %387, %cst_180 {dimension_numbers = #tpu.dot_dimension_numbers<[2], [2], [1], [1], [0, 0, 0, 1, 1, 1], [0], [0]>} : vector<2x8x8xf32>, vector<2x8x8xf32>, vector<2x8x8xf32> -> vector<2x8x8xf32>
    "tpu.trace_stop"() : () -> ()
    %391 = arith.addf %390, %7 : vector<2x8x8xf32>
    %cst_181 = arith.constant dense<0xFF800000> : vector<2x8xf32>
    %392 = vector.multi_reduction <maximumf>, %391, %cst_181 [2] : vector<2x8x8xf32> to vector<2x8xf32>
    %393 = vector.shape_cast %392 : vector<2x8xf32> to vector<2x8x1xf32>
    %394 = vector.broadcast %393 : vector<2x8x1xf32> to vector<2x8x8xf32>
    %395 = arith.subf %391, %394 : vector<2x8x8xf32>
    %396 = math.exp %395 : vector<2x8x8xf32>
    %cst_182 = arith.constant dense<0.000000e+00> : vector<2x8xf32>
    %397 = vector.multi_reduction <add>, %396, %cst_182 [2] : vector<2x8x8xf32> to vector<2x8xf32>
    %398 = vector.shape_cast %397 : vector<2x8xf32> to vector<2x8x1xf32>
    %399 = tpu.reciprocal %398 {approx = true} : vector<2x8x1xf32> -> vector<2x8x1xf32>
    %400 = vector.broadcast %399 : vector<2x8x1xf32> to vector<2x8x8xf32>
    %401 = arith.mulf %396, %400 : vector<2x8x8xf32>
    "tpu.trace_start"() <{level = 10 : i32, message = "bqk,bkd->bqd"}> : () -> ()
    %cst_183 = arith.constant dense<0.000000e+00> : vector<2x8x8xf32>
    %402 = tpu.matmul %401, %389, %cst_183 {dimension_numbers = #tpu.dot_dimension_numbers<[2], [1], [1], [2], [0, 0, 0, 1, 1, 2], [0], [0]>} : vector<2x8x8xf32>, vector<2x8x8xf32>, vector<2x8x8xf32> -> vector<2x8x8xf32>
    "tpu.trace_stop"() : () -> ()
    %403 = vector.shape_cast %402 : vector<2x8x8xf32> to vector<16x8xf32>
    %c2_184 = arith.constant 2 : index
    %c1_185 = arith.constant 1 : index
    %c0_186 = arith.constant 0 : index
    %c0_187 = arith.constant 0 : index
    %404 = vector.load %arg6[%c2_184, %c1_185, %c0_186, %c0_187] : memref<3x4x8x32xf32, #tpu.memory_space<vmem>>, vector<1x1x8x32xf32>
    %405 = vector.shape_cast %404 : vector<1x1x8x32xf32> to vector<8x32xf32>
    %cst_188 = arith.constant dense<0.000000e+00> : vector<16x32xf32>
    %406 = tpu.matmul %403, %405, %cst_188 {dimension_numbers = #tpu.dot_dimension_numbers<[1], [0], [0], [1], [0, 0, 1, 1], [], []>} : vector<16x8xf32>, vector<8x32xf32>, vector<16x32xf32> -> vector<16x32xf32>
    %407 = arith.addf %383, %406 : vector<16x32xf32>
    %408 = vector.extract_strided_slice %358 {offsets = [0, 16], sizes = [16, 8], strides = [1, 1]} : vector<16x96xf32> to vector<16x8xf32>
    %409 = vector.shape_cast %408 : vector<16x8xf32> to vector<2x8x8xf32>
    %410 = vector.extract_strided_slice %358 {offsets = [0, 48], sizes = [16, 8], strides = [1, 1]} : vector<16x96xf32> to vector<16x8xf32>
    %411 = vector.shape_cast %410 : vector<16x8xf32> to vector<2x8x8xf32>
    %412 = vector.extract_strided_slice %358 {offsets = [0, 80], sizes = [16, 8], strides = [1, 1]} : vector<16x96xf32> to vector<16x8xf32>
    %413 = vector.shape_cast %412 : vector<16x8xf32> to vector<2x8x8xf32>
    "tpu.trace_start"() <{level = 10 : i32, message = "bqd,bkd->bqk"}> : () -> ()
    %cst_189 = arith.constant dense<0.000000e+00> : vector<2x8x8xf32>
    %414 = tpu.matmul %409, %411, %cst_189 {dimension_numbers = #tpu.dot_dimension_numbers<[2], [2], [1], [1], [0, 0, 0, 1, 1, 1], [0], [0]>} : vector<2x8x8xf32>, vector<2x8x8xf32>, vector<2x8x8xf32> -> vector<2x8x8xf32>
    "tpu.trace_stop"() : () -> ()
    %415 = arith.addf %414, %7 : vector<2x8x8xf32>
    %cst_190 = arith.constant dense<0xFF800000> : vector<2x8xf32>
    %416 = vector.multi_reduction <maximumf>, %415, %cst_190 [2] : vector<2x8x8xf32> to vector<2x8xf32>
    %417 = vector.shape_cast %416 : vector<2x8xf32> to vector<2x8x1xf32>
    %418 = vector.broadcast %417 : vector<2x8x1xf32> to vector<2x8x8xf32>
    %419 = arith.subf %415, %418 : vector<2x8x8xf32>
    %420 = math.exp %419 : vector<2x8x8xf32>
    %cst_191 = arith.constant dense<0.000000e+00> : vector<2x8xf32>
    %421 = vector.multi_reduction <add>, %420, %cst_191 [2] : vector<2x8x8xf32> to vector<2x8xf32>
    %422 = vector.shape_cast %421 : vector<2x8xf32> to vector<2x8x1xf32>
    %423 = tpu.reciprocal %422 {approx = true} : vector<2x8x1xf32> -> vector<2x8x1xf32>
    %424 = vector.broadcast %423 : vector<2x8x1xf32> to vector<2x8x8xf32>
    %425 = arith.mulf %420, %424 : vector<2x8x8xf32>
    "tpu.trace_start"() <{level = 10 : i32, message = "bqk,bkd->bqd"}> : () -> ()
    %cst_192 = arith.constant dense<0.000000e+00> : vector<2x8x8xf32>
    %426 = tpu.matmul %425, %413, %cst_192 {dimension_numbers = #tpu.dot_dimension_numbers<[2], [1], [1], [2], [0, 0, 0, 1, 1, 2], [0], [0]>} : vector<2x8x8xf32>, vector<2x8x8xf32>, vector<2x8x8xf32> -> vector<2x8x8xf32>
    "tpu.trace_stop"() : () -> ()
    %427 = vector.shape_cast %426 : vector<2x8x8xf32> to vector<16x8xf32>
    %c2_193 = arith.constant 2 : index
    %c2_194 = arith.constant 2 : index
    %c0_195 = arith.constant 0 : index
    %c0_196 = arith.constant 0 : index
    %428 = vector.load %arg6[%c2_193, %c2_194, %c0_195, %c0_196] : memref<3x4x8x32xf32, #tpu.memory_space<vmem>>, vector<1x1x8x32xf32>
    %429 = vector.shape_cast %428 : vector<1x1x8x32xf32> to vector<8x32xf32>
    %cst_197 = arith.constant dense<0.000000e+00> : vector<16x32xf32>
    %430 = tpu.matmul %427, %429, %cst_197 {dimension_numbers = #tpu.dot_dimension_numbers<[1], [0], [0], [1], [0, 0, 1, 1], [], []>} : vector<16x8xf32>, vector<8x32xf32>, vector<16x32xf32> -> vector<16x32xf32>
    %431 = arith.addf %407, %430 : vector<16x32xf32>
    %432 = vector.extract_strided_slice %358 {offsets = [0, 24], sizes = [16, 8], strides = [1, 1]} : vector<16x96xf32> to vector<16x8xf32>
    %433 = vector.shape_cast %432 : vector<16x8xf32> to vector<2x8x8xf32>
    %434 = vector.extract_strided_slice %358 {offsets = [0, 56], sizes = [16, 8], strides = [1, 1]} : vector<16x96xf32> to vector<16x8xf32>
    %435 = vector.shape_cast %434 : vector<16x8xf32> to vector<2x8x8xf32>
    %436 = vector.extract_strided_slice %358 {offsets = [0, 88], sizes = [16, 8], strides = [1, 1]} : vector<16x96xf32> to vector<16x8xf32>
    %437 = vector.shape_cast %436 : vector<16x8xf32> to vector<2x8x8xf32>
    "tpu.trace_start"() <{level = 10 : i32, message = "bqd,bkd->bqk"}> : () -> ()
    %cst_198 = arith.constant dense<0.000000e+00> : vector<2x8x8xf32>
    %438 = tpu.matmul %433, %435, %cst_198 {dimension_numbers = #tpu.dot_dimension_numbers<[2], [2], [1], [1], [0, 0, 0, 1, 1, 1], [0], [0]>} : vector<2x8x8xf32>, vector<2x8x8xf32>, vector<2x8x8xf32> -> vector<2x8x8xf32>
    "tpu.trace_stop"() : () -> ()
    %439 = arith.addf %438, %7 : vector<2x8x8xf32>
    %cst_199 = arith.constant dense<0xFF800000> : vector<2x8xf32>
    %440 = vector.multi_reduction <maximumf>, %439, %cst_199 [2] : vector<2x8x8xf32> to vector<2x8xf32>
    %441 = vector.shape_cast %440 : vector<2x8xf32> to vector<2x8x1xf32>
    %442 = vector.broadcast %441 : vector<2x8x1xf32> to vector<2x8x8xf32>
    %443 = arith.subf %439, %442 : vector<2x8x8xf32>
    %444 = math.exp %443 : vector<2x8x8xf32>
    %cst_200 = arith.constant dense<0.000000e+00> : vector<2x8xf32>
    %445 = vector.multi_reduction <add>, %444, %cst_200 [2] : vector<2x8x8xf32> to vector<2x8xf32>
    %446 = vector.shape_cast %445 : vector<2x8xf32> to vector<2x8x1xf32>
    %447 = tpu.reciprocal %446 {approx = true} : vector<2x8x1xf32> -> vector<2x8x1xf32>
    %448 = vector.broadcast %447 : vector<2x8x1xf32> to vector<2x8x8xf32>
    %449 = arith.mulf %444, %448 : vector<2x8x8xf32>
    "tpu.trace_start"() <{level = 10 : i32, message = "bqk,bkd->bqd"}> : () -> ()
    %cst_201 = arith.constant dense<0.000000e+00> : vector<2x8x8xf32>
    %450 = tpu.matmul %449, %437, %cst_201 {dimension_numbers = #tpu.dot_dimension_numbers<[2], [1], [1], [2], [0, 0, 0, 1, 1, 2], [0], [0]>} : vector<2x8x8xf32>, vector<2x8x8xf32>, vector<2x8x8xf32> -> vector<2x8x8xf32>
    "tpu.trace_stop"() : () -> ()
    %451 = vector.shape_cast %450 : vector<2x8x8xf32> to vector<16x8xf32>
    %c2_202 = arith.constant 2 : index
    %c3_203 = arith.constant 3 : index
    %c0_204 = arith.constant 0 : index
    %c0_205 = arith.constant 0 : index
    %452 = vector.load %arg6[%c2_202, %c3_203, %c0_204, %c0_205] : memref<3x4x8x32xf32, #tpu.memory_space<vmem>>, vector<1x1x8x32xf32>
    %453 = vector.shape_cast %452 : vector<1x1x8x32xf32> to vector<8x32xf32>
    %cst_206 = arith.constant dense<0.000000e+00> : vector<16x32xf32>
    %454 = tpu.matmul %451, %453, %cst_206 {dimension_numbers = #tpu.dot_dimension_numbers<[1], [0], [0], [1], [0, 0, 1, 1], [], []>} : vector<16x8xf32>, vector<8x32xf32>, vector<16x32xf32> -> vector<16x32xf32>
    %455 = arith.addf %431, %454 : vector<16x32xf32>
    %c2_207 = arith.constant 2 : index
    %c0_208 = arith.constant 0 : index
    %c0_209 = arith.constant 0 : index
    %456 = vector.load %arg7[%c2_207, %c0_208, %c0_209] : memref<3x1x32xf32, #tpu.memory_space<vmem>>, vector<1x1x32xf32>
    %457 = vector.shape_cast %456 : vector<1x1x32xf32> to vector<1x32xf32>
    %458 = vector.broadcast %457 : vector<1x32xf32> to vector<16x32xf32>
    %459 = arith.addf %455, %458 : vector<16x32xf32>
    %460 = arith.addf %459, %355 : vector<16x32xf32>
    %c2_210 = arith.constant 2 : index
    %c0_211 = arith.constant 0 : index
    %c0_212 = arith.constant 0 : index
    %461 = vector.load %arg8[%c2_210, %c0_211, %c0_212] : memref<3x1x32xf32, #tpu.memory_space<vmem>>, vector<1x1x32xf32>
    %462 = vector.shape_cast %461 : vector<1x1x32xf32> to vector<1x32xf32>
    %c2_213 = arith.constant 2 : index
    %c0_214 = arith.constant 0 : index
    %c0_215 = arith.constant 0 : index
    %463 = vector.load %arg9[%c2_213, %c0_214, %c0_215] : memref<3x1x32xf32, #tpu.memory_space<vmem>>, vector<1x1x32xf32>
    %464 = vector.shape_cast %463 : vector<1x1x32xf32> to vector<1x32xf32>
    %cst_216 = arith.constant dense<0.000000e+00> : vector<16xf32>
    %465 = vector.multi_reduction <add>, %460, %cst_216 [1] : vector<16x32xf32> to vector<16xf32>
    %466 = vector.shape_cast %465 : vector<16xf32> to vector<16x1xf32>
    %cst_217 = arith.constant 3.200000e+01 : f32
    %467 = vector.broadcast %cst_217 : f32 to vector<16x1xf32>
    %468 = arith.divf %466, %467 : vector<16x1xf32>
    %469 = vector.broadcast %468 : vector<16x1xf32> to vector<16x32xf32>
    %470 = arith.subf %460, %469 : vector<16x32xf32>
    %471 = arith.mulf %470, %470 : vector<16x32xf32>
    %cst_218 = arith.constant dense<0.000000e+00> : vector<16xf32>
    %472 = vector.multi_reduction <add>, %471, %cst_218 [1] : vector<16x32xf32> to vector<16xf32>
    %473 = vector.shape_cast %472 : vector<16xf32> to vector<16x1xf32>
    %cst_219 = arith.constant 3.200000e+01 : f32
    %474 = vector.broadcast %cst_219 : f32 to vector<16x1xf32>
    %475 = arith.divf %473, %474 : vector<16x1xf32>
    %476 = vector.broadcast %468 : vector<16x1xf32> to vector<16x32xf32>
    %477 = arith.subf %460, %476 : vector<16x32xf32>
    %cst_220 = arith.constant 9.99999974E-6 : f32
    %478 = vector.broadcast %cst_220 : f32 to vector<16x1xf32>
    %479 = arith.addf %475, %478 : vector<16x1xf32>
    %480 = math.rsqrt %479 : vector<16x1xf32>
    %481 = vector.broadcast %480 : vector<16x1xf32> to vector<16x32xf32>
    %482 = arith.mulf %477, %481 : vector<16x32xf32>
    %483 = vector.broadcast %462 : vector<1x32xf32> to vector<16x32xf32>
    %484 = arith.mulf %482, %483 : vector<16x32xf32>
    %485 = vector.broadcast %464 : vector<1x32xf32> to vector<16x32xf32>
    %486 = arith.addf %484, %485 : vector<16x32xf32>
    %c2_221 = arith.constant 2 : index
    %c0_222 = arith.constant 0 : index
    %c0_223 = arith.constant 0 : index
    %487 = vector.load %arg10[%c2_221, %c0_222, %c0_223] : memref<3x32x128xf32, #tpu.memory_space<vmem>>, vector<1x32x128xf32>
    %488 = vector.shape_cast %487 : vector<1x32x128xf32> to vector<32x128xf32>
    %cst_224 = arith.constant dense<0.000000e+00> : vector<16x128xf32>
    %489 = tpu.matmul %486, %488, %cst_224 {dimension_numbers = #tpu.dot_dimension_numbers<[1], [0], [0], [1], [0, 0, 1, 1], [], []>} : vector<16x32xf32>, vector<32x128xf32>, vector<16x128xf32> -> vector<16x128xf32>
    %c2_225 = arith.constant 2 : index
    %c0_226 = arith.constant 0 : index
    %c0_227 = arith.constant 0 : index
    %490 = vector.load %arg11[%c2_225, %c0_226, %c0_227] : memref<3x1x128xf32, #tpu.memory_space<vmem>>, vector<1x1x128xf32>
    %491 = vector.shape_cast %490 : vector<1x1x128xf32> to vector<1x128xf32>
    %492 = vector.broadcast %491 : vector<1x128xf32> to vector<16x128xf32>
    %493 = arith.addf %489, %492 : vector<16x128xf32>
    %cst_228 = arith.constant 0.000000e+00 : f32
    %494 = vector.broadcast %cst_228 : f32 to vector<16x128xf32>
    %495 = arith.maximumf %493, %494 : vector<16x128xf32>
    %c2_229 = arith.constant 2 : index
    %c0_230 = arith.constant 0 : index
    %c0_231 = arith.constant 0 : index
    %496 = vector.load %arg12[%c2_229, %c0_230, %c0_231] : memref<3x128x32xf32, #tpu.memory_space<vmem>>, vector<1x128x32xf32>
    %497 = vector.shape_cast %496 : vector<1x128x32xf32> to vector<128x32xf32>
    %cst_232 = arith.constant dense<0.000000e+00> : vector<16x32xf32>
    %498 = tpu.matmul %495, %497, %cst_232 {dimension_numbers = #tpu.dot_dimension_numbers<[1], [0], [0], [1], [0, 0, 1, 1], [], []>} : vector<16x128xf32>, vector<128x32xf32>, vector<16x32xf32> -> vector<16x32xf32>
    %c2_233 = arith.constant 2 : index
    %c0_234 = arith.constant 0 : index
    %c0_235 = arith.constant 0 : index
    %499 = vector.load %arg13[%c2_233, %c0_234, %c0_235] : memref<3x1x32xf32, #tpu.memory_space<vmem>>, vector<1x1x32xf32>
    %500 = vector.shape_cast %499 : vector<1x1x32xf32> to vector<1x32xf32>
    %501 = vector.broadcast %500 : vector<1x32xf32> to vector<16x32xf32>
    %502 = arith.addf %498, %501 : vector<16x32xf32>
    %503 = arith.addf %502, %486 : vector<16x32xf32>
    %c2_236 = arith.constant 2 : index
    %c0_237 = arith.constant 0 : index
    %c0_238 = arith.constant 0 : index
    %504 = vector.load %arg14[%c2_236, %c0_237, %c0_238] : memref<3x1x32xf32, #tpu.memory_space<vmem>>, vector<1x1x32xf32>
    %505 = vector.shape_cast %504 : vector<1x1x32xf32> to vector<1x32xf32>
    %c2_239 = arith.constant 2 : index
    %c0_240 = arith.constant 0 : index
    %c0_241 = arith.constant 0 : index
    %506 = vector.load %arg15[%c2_239, %c0_240, %c0_241] : memref<3x1x32xf32, #tpu.memory_space<vmem>>, vector<1x1x32xf32>
    %507 = vector.shape_cast %506 : vector<1x1x32xf32> to vector<1x32xf32>
    %cst_242 = arith.constant dense<0.000000e+00> : vector<16xf32>
    %508 = vector.multi_reduction <add>, %503, %cst_242 [1] : vector<16x32xf32> to vector<16xf32>
    %509 = vector.shape_cast %508 : vector<16xf32> to vector<16x1xf32>
    %cst_243 = arith.constant 3.200000e+01 : f32
    %510 = vector.broadcast %cst_243 : f32 to vector<16x1xf32>
    %511 = arith.divf %509, %510 : vector<16x1xf32>
    %512 = vector.broadcast %511 : vector<16x1xf32> to vector<16x32xf32>
    %513 = arith.subf %503, %512 : vector<16x32xf32>
    %514 = arith.mulf %513, %513 : vector<16x32xf32>
    %cst_244 = arith.constant dense<0.000000e+00> : vector<16xf32>
    %515 = vector.multi_reduction <add>, %514, %cst_244 [1] : vector<16x32xf32> to vector<16xf32>
    %516 = vector.shape_cast %515 : vector<16xf32> to vector<16x1xf32>
    %cst_245 = arith.constant 3.200000e+01 : f32
    %517 = vector.broadcast %cst_245 : f32 to vector<16x1xf32>
    %518 = arith.divf %516, %517 : vector<16x1xf32>
    %519 = vector.broadcast %511 : vector<16x1xf32> to vector<16x32xf32>
    %520 = arith.subf %503, %519 : vector<16x32xf32>
    %cst_246 = arith.constant 9.99999974E-6 : f32
    %521 = vector.broadcast %cst_246 : f32 to vector<16x1xf32>
    %522 = arith.addf %518, %521 : vector<16x1xf32>
    %523 = math.rsqrt %522 : vector<16x1xf32>
    %524 = vector.broadcast %523 : vector<16x1xf32> to vector<16x32xf32>
    %525 = arith.mulf %520, %524 : vector<16x32xf32>
    %526 = vector.broadcast %505 : vector<1x32xf32> to vector<16x32xf32>
    %527 = arith.mulf %525, %526 : vector<16x32xf32>
    %528 = vector.broadcast %507 : vector<1x32xf32> to vector<16x32xf32>
    %529 = arith.addf %527, %528 : vector<16x32xf32>
    %c0_247 = arith.constant 0 : index
    %c0_248 = arith.constant 0 : index
    %530 = vector.load %arg16[%c0_247, %c0_248] : memref<16x32xf32, #tpu.memory_space<vmem>>, vector<16x32xf32>
    tpu.vector_store %arg16[%c0_247, %c0_248], %529 {strides = array<i32>} : memref<16x32xf32, #tpu.memory_space<vmem>>, vector<16x32xf32>,
    return
  }
  func.func @transform_0(%arg0: i32) -> (i32, i32) {
    %c0_i32 = arith.constant 0 : i32
    %c0_i32_0 = arith.constant 0 : i32
    %c0_i32_1 = arith.constant 0 : i32
    return %c0_i32, %c0_i32_0 : i32, i32
  }
  func.func @transform_1(%arg0: i32) -> (i32, i32) {
    %c0_i32 = arith.constant 0 : i32
    %c0_i32_0 = arith.constant 0 : i32
    return %arg0, %c0_i32 : i32, i32
  }
  func.func @transform_2(%arg0: i32) -> (i32, i32) {
    %c0_i32 = arith.constant 0 : i32
    %c0_i32_0 = arith.constant 0 : i32
    %c0_i32_1 = arith.constant 0 : i32
    return %c0_i32, %c0_i32_0 : i32, i32
  }
  func.func @transform_3(%arg0: i32) -> (i32, i32) {
    %c0_i32 = arith.constant 0 : i32
    %c0_i32_0 = arith.constant 0 : i32
    %c0_i32_1 = arith.constant 0 : i32
    return %c0_i32, %c0_i32_0 : i32, i32
  }
  func.func @transform_4(%arg0: i32) -> (i32, i32, i32) {
    %c0_i32 = arith.constant 0 : i32
    %c0_i32_0 = arith.constant 0 : i32
    %c0_i32_1 = arith.constant 0 : i32
    %c0_i32_2 = arith.constant 0 : i32
    return %c0_i32, %c0_i32_0, %c0_i32_1 : i32, i32, i32
  }
  func.func @transform_5(%arg0: i32) -> (i32, i32, i32, i32) {
    %c0_i32 = arith.constant 0 : i32
    %c0_i32_0 = arith.constant 0 : i32
    %c0_i32_1 = arith.constant 0 : i32
    %c0_i32_2 = arith.constant 0 : i32
    %c0_i32_3 = arith.constant 0 : i32
    return %c0_i32, %c0_i32_0, %c0_i32_1, %c0_i32_2 : i32, i32, i32, i32
  }
  func.func @transform_6(%arg0: i32) -> (i32, i32, i32) {
    %c0_i32 = arith.constant 0 : i32
    %c0_i32_0 = arith.constant 0 : i32
    %c0_i32_1 = arith.constant 0 : i32
    %c0_i32_2 = arith.constant 0 : i32
    return %c0_i32, %c0_i32_0, %c0_i32_1 : i32, i32, i32
  }
  func.func @transform_7(%arg0: i32) -> (i32, i32, i32) {
    %c0_i32 = arith.constant 0 : i32
    %c0_i32_0 = arith.constant 0 : i32
    %c0_i32_1 = arith.constant 0 : i32
    %c0_i32_2 = arith.constant 0 : i32
    return %c0_i32, %c0_i32_0, %c0_i32_1 : i32, i32, i32
  }
  func.func @transform_8(%arg0: i32) -> (i32, i32, i32) {
    %c0_i32 = arith.constant 0 : i32
    %c0_i32_0 = arith.constant 0 : i32
    %c0_i32_1 = arith.constant 0 : i32
    %c0_i32_2 = arith.constant 0 : i32
    return %c0_i32, %c0_i32_0, %c0_i32_1 : i32, i32, i32
  }
  func.func @transform_9(%arg0: i32) -> (i32, i32, i32) {
    %c0_i32 = arith.constant 0 : i32
    %c0_i32_0 = arith.constant 0 : i32
    %c0_i32_1 = arith.constant 0 : i32
    %c0_i32_2 = arith.constant 0 : i32
    return %c0_i32, %c0_i32_0, %c0_i32_1 : i32, i32, i32
  }
  func.func @transform_10(%arg0: i32) -> (i32, i32, i32) {
    %c0_i32 = arith.constant 0 : i32
    %c0_i32_0 = arith.constant 0 : i32
    %c0_i32_1 = arith.constant 0 : i32
    %c0_i32_2 = arith.constant 0 : i32
    return %c0_i32, %c0_i32_0, %c0_i32_1 : i32, i32, i32
  }
  func.func @transform_11(%arg0: i32) -> (i32, i32, i32) {
    %c0_i32 = arith.constant 0 : i32
    %c0_i32_0 = arith.constant 0 : i32
    %c0_i32_1 = arith.constant 0 : i32
    %c0_i32_2 = arith.constant 0 : i32
    return %c0_i32, %c0_i32_0, %c0_i32_1 : i32, i32, i32
  }
  func.func @transform_12(%arg0: i32) -> (i32, i32, i32) {
    %c0_i32 = arith.constant 0 : i32
    %c0_i32_0 = arith.constant 0 : i32
    %c0_i32_1 = arith.constant 0 : i32
    %c0_i32_2 = arith.constant 0 : i32
    return %c0_i32, %c0_i32_0, %c0_i32_1 : i32, i32, i32
  }
  func.func @transform_13(%arg0: i32) -> (i32, i32, i32) {
    %c0_i32 = arith.constant 0 : i32
    %c0_i32_0 = arith.constant 0 : i32
    %c0_i32_1 = arith.constant 0 : i32
    %c0_i32_2 = arith.constant 0 : i32
    return %c0_i32, %c0_i32_0, %c0_i32_1 : i32, i32, i32
  }
  func.func @transform_14(%arg0: i32) -> (i32, i32, i32) {
    %c0_i32 = arith.constant 0 : i32
    %c0_i32_0 = arith.constant 0 : i32
    %c0_i32_1 = arith.constant 0 : i32
    %c0_i32_2 = arith.constant 0 : i32
    return %c0_i32, %c0_i32_0, %c0_i32_1 : i32, i32, i32
  }
  func.func @transform_15(%arg0: i32) -> (i32, i32) {
    %c0_i32 = arith.constant 0 : i32
    %c0_i32_0 = arith.constant 0 : i32
    return %arg0, %c0_i32 : i32, i32
  }
}

</mosaic_0001>

<llo_original>
// kernel: tpu_custom_call.1
$region0: #{tpu_custom_call.1}
  #allocation0 [shape = 'u32[]', space=smem, size = 0x4, offset = 0x4, fixed_abs, tag = 'smem constant byte address 0x4 - core index']
  #allocation1 [shape = 'u32[72,128]{1,0:T(1,128)}', space=vmem, size = 0x9000, scoped, tag = 'internal scratch']
  %s0 = inlined_call_operand.vmem [shape: f32[8,8], index: 0, kind: input, shape index: {}]
  %s1 = inlined_call_operand.vmem [shape: f32[16,4], index: 1, kind: input, shape index: {}]
  %s2 = inlined_call_operand.vmem [shape: f32[4,32], index: 2, kind: input, shape index: {}]
  %s3 = inlined_call_operand.vmem [shape: f32[16,32], index: 3, kind: input, shape index: {}]
  %s4 = inlined_call_operand.vmem [shape: f32[3,32,96], index: 4, kind: input, shape index: {}]
  %s5 = inlined_call_operand.vmem [shape: f32[3,4,8,32], index: 5, kind: input, shape index: {}]
  %s6 = inlined_call_operand.vmem [shape: f32[3,1,32], index: 6, kind: input, shape index: {}]
  %s7 = inlined_call_operand.vmem [shape: f32[3,1,32], index: 7, kind: input, shape index: {}]
  %s8 = inlined_call_operand.vmem [shape: f32[3,1,32], index: 8, kind: input, shape index: {}]
  %s9 = inlined_call_operand.vmem [shape: f32[3,32,128], index: 9, kind: input, shape index: {}]
  %s10 = inlined_call_operand.vmem [shape: f32[3,1,128], index: 10, kind: input, shape index: {}]
  %s11 = inlined_call_operand.vmem [shape: f32[3,128,32], index: 11, kind: input, shape index: {}]
  %s12 = inlined_call_operand.vmem [shape: f32[3,1,32], index: 12, kind: input, shape index: {}]
  %s13 = inlined_call_operand.vmem [shape: f32[3,1,32], index: 13, kind: input, shape index: {}]
  %s14 = inlined_call_operand.vmem [shape: f32[3,1,32], index: 14, kind: input, shape index: {}]
  %s15 = inlined_call_operand.hbm [shape: f32[16,32], index: 15, kind: output, shape index: {}]
  %s16 = sld [smem:[#allocation0]]
  $region70: #{tpu_custom_call.1} parent=0
    _
  %s18 = ssub.s32 1, %s16
  %s19 = scalar_select 0, %s18, %s16
  $region1: #{tpu_custom_call.1} parent=0
    #allocation2 [shape = 'u8[8192]{0}', space=vmem, size = 0x2000, scoped, tag = 'output window, operand 0, single buffered']
    #allocation3 [shape = 's32[1]{0}', space=sflag, size = 0x4, scoped, tag = 'scoped memory for tpu_custom_call.1']
    %20 = vsyncpa [#allocation3], 0
    // Predicated region
    $region2: #{tpu_custom_call.1} parent=1 // pred_check
      _
    $region3: #{tpu_custom_call.1} parent=1 // pred_check_branch
      %22 = sbr.rel (0) target = $region5
    $region4: #{tpu_custom_call.1} parent=1 // pred_region
      _
    $region5: #{tpu_custom_call.1} parent=1 // pred_fallthru
      _
    // Predicated region
    $region6: #{tpu_custom_call.1} parent=1 // pred_check
      _
    $region7: #{tpu_custom_call.1} parent=1 // pred_check_branch
      %24 = sbr.rel (0) target = $region9
    $region8: #{tpu_custom_call.1} parent=1 // pred_region
      _
    $region9: #{tpu_custom_call.1} parent=1 // pred_fallthru
      _
    // Predicated region
    $region10: #{tpu_custom_call.1} parent=1 // pred_check
      _
    $region11: #{tpu_custom_call.1} parent=1 // pred_check_branch
      %26 = sbr.rel (0) target = $region13
    $region12: #{tpu_custom_call.1} parent=1 // pred_region
      _
    $region13: #{tpu_custom_call.1} parent=1 // pred_fallthru
      _
    // Predicated region
    $region14: #{tpu_custom_call.1} parent=1 // pred_check
      _
    $region15: #{tpu_custom_call.1} parent=1 // pred_check_branch
      %28 = sbr.rel (0) target = $region17
    $region16: #{tpu_custom_call.1} parent=1 // pred_region
      _
    $region17: #{tpu_custom_call.1} parent=1 // pred_fallthru
      _
    // Predicated region
    $region18: #{tpu_custom_call.1} parent=1 // pred_check
      _
    $region19: #{tpu_custom_call.1} parent=1 // pred_check_branch
      %30 = sbr.rel (0) target = $region21
    $region20: #{tpu_custom_call.1} parent=1 // pred_region
      _
    $region21: #{tpu_custom_call.1} parent=1 // pred_fallthru
      _
    // Predicated region
    $region22: #{tpu_custom_call.1} parent=1 // pred_check
      _
    $region23: #{tpu_custom_call.1} parent=1 // pred_check_branch
      %32 = sbr.rel (0) target = $region25
    $region24: #{tpu_custom_call.1} parent=1 // pred_region
      _
    $region25: #{tpu_custom_call.1} parent=1 // pred_fallthru
      _
    // Predicated region
    $region26: #{tpu_custom_call.1} parent=1 // pred_check
      _
    $region27: #{tpu_custom_call.1} parent=1 // pred_check_branch
      %34 = sbr.rel (0) target = $region29
    $region28: #{tpu_custom_call.1} parent=1 // pred_region
      _
    $region29: #{tpu_custom_call.1} parent=1 // pred_fallthru
      _
    // Predicated region
    $region30: #{tpu_custom_call.1} parent=1 // pred_check
      _
    $region31: #{tpu_custom_call.1} parent=1 // pred_check_branch
      %36 = sbr.rel (0) target = $region33
    $region32: #{tpu_custom_call.1} parent=1 // pred_region
      _
    $region33: #{tpu_custom_call.1} parent=1 // pred_fallthru
      _
    // Predicated region
    $region34: #{tpu_custom_call.1} parent=1 // pred_check
      _
    $region35: #{tpu_custom_call.1} parent=1 // pred_check_branch
      %38 = sbr.rel (0) target = $region37
    $region36: #{tpu_custom_call.1} parent=1 // pred_region
      _
    $region37: #{tpu_custom_call.1} parent=1 // pred_fallthru
      _
    // Predicated region
    $region38: #{tpu_custom_call.1} parent=1 // pred_check
      _
    $region39: #{tpu_custom_call.1} parent=1 // pred_check_branch
      %40 = sbr.rel (0) target = $region41
    $region40: #{tpu_custom_call.1} parent=1 // pred_region
      _
    $region41: #{tpu_custom_call.1} parent=1 // pred_fallthru
      _
    // Predicated region
    $region42: #{tpu_custom_call.1} parent=1 // pred_check
      _
    $region43: #{tpu_custom_call.1} parent=1 // pred_check_branch
      %42 = sbr.rel (0) target = $region45
    $region44: #{tpu_custom_call.1} parent=1 // pred_region
      _
    $region45: #{tpu_custom_call.1} parent=1 // pred_fallthru
      _
    // Predicated region
    $region46: #{tpu_custom_call.1} parent=1 // pred_check
      _
    $region47: #{tpu_custom_call.1} parent=1 // pred_check_branch
      %44 = sbr.rel (0) target = $region49
    $region48: #{tpu_custom_call.1} parent=1 // pred_region
      _
    $region49: #{tpu_custom_call.1} parent=1 // pred_fallthru
      _
    // Predicated region
    $region50: #{tpu_custom_call.1} parent=1 // pred_check
      _
    $region51: #{tpu_custom_call.1} parent=1 // pred_check_branch
      %46 = sbr.rel (0) target = $region53
    $region52: #{tpu_custom_call.1} parent=1 // pred_region
      _
    $region53: #{tpu_custom_call.1} parent=1 // pred_fallthru
      _
    // Predicated region
    $region54: #{tpu_custom_call.1} parent=1 // pred_check
      _
    $region55: #{tpu_custom_call.1} parent=1 // pred_check_branch
      %48 = sbr.rel (0) target = $region57
    $region56: #{tpu_custom_call.1} parent=1 // pred_region
      _
    $region57: #{tpu_custom_call.1} parent=1 // pred_fallthru
      _
    // Predicated region
    $region58: #{tpu_custom_call.1} parent=1 // pred_check
      _
    $region59: #{tpu_custom_call.1} parent=1 // pred_check_branch
      %50 = sbr.rel (0) target = $region61
    $region60: #{tpu_custom_call.1} parent=1 // pred_region
      _
    $region61: #{tpu_custom_call.1} parent=1 // pred_fallthru
      _
    %v51 = vld [vmem:[%s1] sm:$0xff]
    %v52 = vld [vmem:[%s1 + $0x8] sm:$0xff]
    %v53 = vld [vmem:[%s2] sm:$0xf]
    %v54 = vld [vmem:[%s3] sm:$0xff]
    %v55 = vld [vmem:[%s3 + $0x8] sm:$0xff]
    %vm56 = vcmask 31744
    %v58 = vsel %vm56, %v51, 0
    %v61 = vsel %vm56, %v52, 0
    %vm63 = vcmask 1043456
    %v65 = vsel %vm63, %v53, 0
    %67 = vmatpush.msra.mxu0 0.0
    %68 = vmatpush.msra.mxu0 0.0
    %69 = vmatpush.msra.mxu0 0.0
    %70 = vmatpush.msra.mxu0 0.0
    %71 = vmatpush.msra.mxu0 0.0
    %72 = vmatpush.msra.mxu0 0.0
    %73 = vmatpush.msra.mxu0 0.0
    %74 = vmatpush.msra.mxu0 0.0
    %75 = vmatpush.msra.mxu0 0.0
    %76 = vmatpush.msra.mxu0 0.0
    %77 = vmatpush.msra.mxu0 0.0
    %78 = vmatpush.msra.mxu0 0.0
    %79 = vmatpush.msra.mxu0 0.0
    %80 = vmatpush.msra.mxu0 0.0
    %81 = vmatpush.msra.mxu0 0.0
    %82 = vmatpush.msra.mxu0 %v65
    %83 = vmatmul.f32.gmra.mxu0 %v58
    %v84 = vpop.f32.mrf.mxu0
    %v85 = vadd.f32 %v54, %v84
    %86 = vmatmul.f32.gmra.mxu0 %v61
    %v87 = vpop.f32.mrf.mxu0
    %v88 = vadd.f32 %v55, %v87
    %89 = vdwg.mxu0
    %v90 = vld [vmem:[%s0] sm:$0xff]
    %v91 = vld [vmem:[%s4] sm:$0xff]
    %v92 = vld [vmem:[%s4 + $0x8] sm:$0xff]
    %v93 = vld [vmem:[%s4 + $0x10] sm:$0xff]
    %v94 = vld [vmem:[%s4 + $0x18] sm:$0xff]
    %vm95 = vcmask 261120
    %v97 = vsel %vm95, %v85, 0
    %v100 = vsel %vm95, %v88, 0
    %102 = vmatpush.msra.mxu0 0.0
    %103 = vmatpush.msra.mxu0 0.0
    %104 = vmatpush.msra.mxu0 0.0
    %105 = vmatpush.msra.mxu0 0.0
    %106 = vmatpush.msra.mxu0 0.0
    %107 = vmatpush.msra.mxu0 0.0
    %108 = vmatpush.msra.mxu0 0.0
    %109 = vmatpush.msra.mxu0 0.0
    %110 = vmatpush.msra.mxu0 0.0
    %111 = vmatpush.msra.mxu0 0.0
    %112 = vmatpush.msra.mxu0 0.0
    %113 = vmatpush.msra.mxu0 0.0
    %114 = vmatpush.msra.mxu0 %v94
    %115 = vmatpush.msra.mxu0 %v93
    %116 = vmatpush.msra.mxu0 %v92
    %117 = vmatpush.msra.mxu0 %v91
    %118 = vmatmul.f32.gmra.mxu0 %v97
    %v119 = vpop.f32.mrf.mxu0
    %v120 = vadd.f32 0.0, %v119
    %121 = vmatmul.f32.gmra.mxu0 %v100
    %v122 = vpop.f32.mrf.mxu0
    %v123 = vadd.f32 0.0, %v122
    %124 = vdwg.mxu0
    %126 = vrot.lane.b32.xlu0 %v120, 96
    %v127 = vpop.permute.xlu0 %126
    %vm128 = vcmask 64512
    %v129 = vsel %vm128, %v120, 0
    %v131 = vsel %vm128, %v127, 0
    %133 = vmatpush.xpose.msra.mxu0 0.0
    %134 = vmatpush.xpose.msra.mxu0 0.0
    %135 = vmatpush.xpose.msra.mxu0 0.0
    %136 = vmatpush.xpose.msra.mxu0 0.0
    %137 = vmatpush.xpose.msra.mxu0 0.0
    %138 = vmatpush.xpose.msra.mxu0 0.0
    %139 = vmatpush.xpose.msra.mxu0 0.0
    %140 = vmatpush.xpose.msra.mxu0 0.0
    %141 = vmatpush.xpose.msra.mxu0 0.0
    %142 = vmatpush.xpose.msra.mxu0 0.0
    %143 = vmatpush.xpose.msra.mxu0 0.0
    %144 = vmatpush.xpose.msra.mxu0 0.0
    %145 = vmatpush.xpose.msra.mxu0 0.0
    %146 = vmatpush.xpose.msra.mxu0 0.0
    %147 = vmatpush.xpose.msra.mxu0 0.0
    %148 = vmatpush.xpose.msra.mxu0 %v131
    %149 = vmatmul.f32.gmra.mxu0 %v129
    %v150 = vpop.f32.mrf.mxu0
    %v151 = vadd.f32 %v90, %v150
    %152 = vdwg.mxu0
    %154 = vrot.lane.b32.xlu0 %v123, 96
    %v155 = vpop.permute.xlu0 %154
    %v156 = vsel %vm128, %v123, 0
    %v158 = vsel %vm128, %v155, 0
    %160 = vmatpush.xpose.msra.mxu0 0.0
    %161 = vmatpush.xpose.msra.mxu0 0.0
    %162 = vmatpush.xpose.msra.mxu0 0.0
    %163 = vmatpush.xpose.msra.mxu0 0.0
    %164 = vmatpush.xpose.msra.mxu0 0.0
    %165 = vmatpush.xpose.msra.mxu0 0.0
    %166 = vmatpush.xpose.msra.mxu0 0.0
    %167 = vmatpush.xpose.msra.mxu0 0.0
    %168 = vmatpush.xpose.msra.mxu0 0.0
    %169 = vmatpush.xpose.msra.mxu0 0.0
    %170 = vmatpush.xpose.msra.mxu0 0.0
    %171 = vmatpush.xpose.msra.mxu0 0.0
    %172 = vmatpush.xpose.msra.mxu0 0.0
    %173 = vmatpush.xpose.msra.mxu0 0.0
    %174 = vmatpush.xpose.msra.mxu0 0.0
    %175 = vmatpush.xpose.msra.mxu0 %v158
    %176 = vmatmul.f32.gmra.mxu0 %v156
    %v177 = vpop.f32.mrf.mxu0
    %v178 = vadd.f32 %v90, %v177
    %179 = vdwg.mxu0
    %v180 = vsel %vm128, %v151, -inf
    %181 = vmax.xlane.f32.xlu0 %v180
    %v182 = vpop.xlane.xlu0 %181
    %v183 = vsel %vm128, %v178, -inf
    %184 = vmax.xlane.f32.xlu0 %v183
    %v185 = vpop.xlane.xlu0 %184
    %v186 = vsub.f32 %v151, %v182
    %v187 = vsub.f32 %v178, %v185
    %v188 = vmul.f32 %v186, 1.442695
    %v189 = vpow.pop %v188
    %v190 = vmul.f32 %v187, 1.442695
    %v191 = vpow.pop %v190
    %v192 = vsel %vm128, %v189, 0.0
    %193 = vadd.xlane.f32.xlu0 %v192
    %v194 = vpop.xlane.xlu0 %193
    %v195 = vsel %vm128, %v191, 0.0
    %196 = vadd.xlane.f32.xlu0 %v195
    %v197 = vpop.xlane.xlu0 %196
    %v198 = vrcp.pop %v194
    %v199 = vrcp.pop %v197
    %v200 = vmul.f32 %v189, %v198
    %v201 = vmul.f32 %v191, %v199
    %202 = vrot.lane.b32.xlu0 %v120, 64
    %v203 = vpop.permute.xlu0 %202
    %v206 = vsel %vm128, %v200, 0
    %208 = vmatpush.msra.mxu0 0.0
    %209 = vmatpush.msra.mxu0 0.0
    %210 = vmatpush.msra.mxu0 0.0
    %211 = vmatpush.msra.mxu0 0.0
    %212 = vmatpush.msra.mxu0 0.0
    %213 = vmatpush.msra.mxu0 0.0
    %214 = vmatpush.msra.mxu0 0.0
    %215 = vmatpush.msra.mxu0 0.0
    %216 = vmatpush.msra.mxu0 0.0
    %217 = vmatpush.msra.mxu0 0.0
    %218 = vmatpush.msra.mxu0 0.0
    %219 = vmatpush.msra.mxu0 0.0
    %220 = vmatpush.msra.mxu0 0.0
    %221 = vmatpush.msra.mxu0 0.0
    %222 = vmatpush.msra.mxu0 0.0
    %223 = vmatpush.msra.mxu0 %v203
    %224 = vmatmul.f32.gmra.mxu0 %v206
    %v225 = vpop.f32.mrf.mxu0
    %v226 = vadd.f32 0.0, %v225
    %227 = vdwg.mxu0
    %228 = vrot.lane.b32.xlu0 %v123, 64
    %v229 = vpop.permute.xlu0 %228
    %v232 = vsel %vm128, %v201, 0
    %234 = vmatpush.msra.mxu0 0.0
    %235 = vmatpush.msra.mxu0 0.0
    %236 = vmatpush.msra.mxu0 0.0
    %237 = vmatpush.msra.mxu0 0.0
    %238 = vmatpush.msra.mxu0 0.0
    %239 = vmatpush.msra.mxu0 0.0
    %240 = vmatpush.msra.mxu0 0.0
    %241 = vmatpush.msra.mxu0 0.0
    %242 = vmatpush.msra.mxu0 0.0
    %243 = vmatpush.msra.mxu0 0.0
    %244 = vmatpush.msra.mxu0 0.0
    %245 = vmatpush.msra.mxu0 0.0
    %246 = vmatpush.msra.mxu0 0.0
    %247 = vmatpush.msra.mxu0 0.0
    %248 = vmatpush.msra.mxu0 0.0
    %249 = vmatpush.msra.mxu0 %v229
    %250 = vmatmul.f32.gmra.mxu0 %v232
    %v251 = vpop.f32.mrf.mxu0
    %v252 = vadd.f32 0.0, %v251
    %253 = vdwg.mxu0
    %v254 = vld [vmem:[%s5] sm:$0xff]
    %255 = vrot.lane.b32.xlu0 %v120, 120
    %v256 = vpop.permute.xlu0 %255
    %257 = vrot.lane.b32.xlu0 %v120, 88
    %v258 = vpop.permute.xlu0 %257
    %v259 = vsel %vm128, %v256, 0
    %v261 = vsel %vm128, %v258, 0
    %263 = vmatpush.xpose.msra.mxu0 0.0
    %264 = vmatpush.xpose.msra.mxu0 0.0
    %265 = vmatpush.xpose.msra.mxu0 0.0
    %266 = vmatpush.xpose.msra.mxu0 0.0
    %267 = vmatpush.xpose.msra.mxu0 0.0
    %268 = vmatpush.xpose.msra.mxu0 0.0
    %269 = vmatpush.xpose.msra.mxu0 0.0
    %270 = vmatpush.xpose.msra.mxu0 0.0
    %271 = vmatpush.xpose.msra.mxu0 0.0
    %272 = vmatpush.xpose.msra.mxu0 0.0
    %273 = vmatpush.xpose.msra.mxu0 0.0
    %274 = vmatpush.xpose.msra.mxu0 0.0
    %275 = vmatpush.xpose.msra.mxu0 0.0
    %276 = vmatpush.xpose.msra.mxu0 0.0
    %277 = vmatpush.xpose.msra.mxu0 0.0
    %278 = vmatpush.xpose.msra.mxu0 %v261
    %279 = vmatmul.f32.gmra.mxu0 %v259
    %v280 = vpop.f32.mrf.mxu0
    %v281 = vadd.f32 %v90, %v280
    %282 = vdwg.mxu0
    %283 = vrot.lane.b32.xlu0 %v123, 120
    %v284 = vpop.permute.xlu0 %283
    %285 = vrot.lane.b32.xlu0 %v123, 88
    %v286 = vpop.permute.xlu0 %285
    %v287 = vsel %vm128, %v284, 0
    %v289 = vsel %vm128, %v286, 0
    %291 = vmatpush.xpose.msra.mxu0 0.0
    %292 = vmatpush.xpose.msra.mxu0 0.0
    %293 = vmatpush.xpose.msra.mxu0 0.0
    %294 = vmatpush.xpose.msra.mxu0 0.0
    %295 = vmatpush.xpose.msra.mxu0 0.0
    %296 = vmatpush.xpose.msra.mxu0 0.0
    %297 = vmatpush.xpose.msra.mxu0 0.0
    %298 = vmatpush.xpose.msra.mxu0 0.0
    %299 = vmatpush.xpose.msra.mxu0 0.0
    %300 = vmatpush.xpose.msra.mxu0 0.0
    %301 = vmatpush.xpose.msra.mxu0 0.0
    %302 = vmatpush.xpose.msra.mxu0 0.0
    %303 = vmatpush.xpose.msra.mxu0 0.0
    %304 = vmatpush.xpose.msra.mxu0 0.0
    %305 = vmatpush.xpose.msra.mxu0 0.0
    %306 = vmatpush.xpose.msra.mxu0 %v289
    %307 = vmatmul.f32.gmra.mxu0 %v287
    %v308 = vpop.f32.mrf.mxu0
    %v309 = vadd.f32 %v90, %v308
    %310 = vdwg.mxu0
    %v311 = vsel %vm128, %v281, -inf
    %312 = vmax.xlane.f32.xlu0 %v311
    %v313 = vpop.xlane.xlu0 %312
    %v314 = vsel %vm128, %v309, -inf
    %315 = vmax.xlane.f32.xlu0 %v314
    %v316 = vpop.xlane.xlu0 %315
    %v317 = vsub.f32 %v281, %v313
    %v318 = vsub.f32 %v309, %v316
    %v319 = vmul.f32 %v317, 1.442695
    %v320 = vpow.pop %v319
    %v321 = vmul.f32 %v318, 1.442695
    %v322 = vpow.pop %v321
    %v323 = vsel %vm128, %v320, 0.0
    %324 = vadd.xlane.f32.xlu0 %v323
    %v325 = vpop.xlane.xlu0 %324
    %v326 = vsel %vm128, %v322, 0.0
    %327 = vadd.xlane.f32.xlu0 %v326
    %v328 = vpop.xlane.xlu0 %327
    %v329 = vrcp.pop %v325
    %v330 = vrcp.pop %v328
    %v331 = vmul.f32 %v320, %v329
    %v332 = vmul.f32 %v322, %v330
    %333 = vrot.lane.b32.xlu0 %v120, 56
    %v334 = vpop.permute.xlu0 %333
    %v337 = vsel %vm128, %v331, 0
    %339 = vmatpush.msra.mxu0 0.0
    %340 = vmatpush.msra.mxu0 0.0
    %341 = vmatpush.msra.mxu0 0.0
    %342 = vmatpush.msra.mxu0 0.0
    %343 = vmatpush.msra.mxu0 0.0
    %344 = vmatpush.msra.mxu0 0.0
    %345 = vmatpush.msra.mxu0 0.0
    %346 = vmatpush.msra.mxu0 0.0
    %347 = vmatpush.msra.mxu0 0.0
    %348 = vmatpush.msra.mxu0 0.0
    %349 = vmatpush.msra.mxu0 0.0
    %350 = vmatpush.msra.mxu0 0.0
    %351 = vmatpush.msra.mxu0 0.0
    %352 = vmatpush.msra.mxu0 0.0
    %353 = vmatpush.msra.mxu0 0.0
    %354 = vmatpush.msra.mxu0 %v334
    %355 = vmatmul.f32.gmra.mxu0 %v337
    %v356 = vpop.f32.mrf.mxu0
    %v357 = vadd.f32 0.0, %v356
    %358 = vdwg.mxu0
    %359 = vrot.lane.b32.xlu0 %v123, 56
    %v360 = vpop.permute.xlu0 %359
    %v363 = vsel %vm128, %v332, 0
    %365 = vmatpush.msra.mxu0 0.0
    %366 = vmatpush.msra.mxu0 0.0
    %367 = vmatpush.msra.mxu0 0.0
    %368 = vmatpush.msra.mxu0 0.0
    %369 = vmatpush.msra.mxu0 0.0
    %370 = vmatpush.msra.mxu0 0.0
    %371 = vmatpush.msra.mxu0 0.0
    %372 = vmatpush.msra.mxu0 0.0
    %373 = vmatpush.msra.mxu0 0.0
    %374 = vmatpush.msra.mxu0 0.0
    %375 = vmatpush.msra.mxu0 0.0
    %376 = vmatpush.msra.mxu0 0.0
    %377 = vmatpush.msra.mxu0 0.0
    %378 = vmatpush.msra.mxu0 0.0
    %379 = vmatpush.msra.mxu0 0.0
    %380 = vmatpush.msra.mxu0 %v360
    %381 = vmatmul.f32.gmra.mxu0 %v363
    %v382 = vpop.f32.mrf.mxu0
    %v383 = vadd.f32 0.0, %v382
    %384 = vdwg.mxu0
    %s385 = scalar_lea.vmem %s5, 8
    %v386 = vld [vmem:[%s385] sm:$0xff]
    %v388 = vsel %vm128, %v357, 0
    %v391 = vsel %vm128, %v383, 0
    %393 = vmatpush.msra.mxu0 0.0
    %394 = vmatpush.msra.mxu0 0.0
    %395 = vmatpush.msra.mxu0 0.0
    %396 = vmatpush.msra.mxu0 0.0
    %397 = vmatpush.msra.mxu0 0.0
    %398 = vmatpush.msra.mxu0 0.0
    %399 = vmatpush.msra.mxu0 0.0
    %400 = vmatpush.msra.mxu0 0.0
    %401 = vmatpush.msra.mxu0 0.0
    %402 = vmatpush.msra.mxu0 0.0
    %403 = vmatpush.msra.mxu0 0.0
    %404 = vmatpush.msra.mxu0 0.0
    %405 = vmatpush.msra.mxu0 0.0
    %406 = vmatpush.msra.mxu0 0.0
    %407 = vmatpush.msra.mxu0 0.0
    %408 = vmatpush.msra.mxu0 %v386
    %409 = vmatmul.f32.gmra.mxu0 %v388
    %v410 = vpop.f32.mrf.mxu0
    %v411 = vadd.f32 0.0, %v410
    %412 = vmatmul.f32.gmra.mxu0 %v391
    %v413 = vpop.f32.mrf.mxu0
    %v414 = vadd.f32 0.0, %v413
    %415 = vdwg.mxu0
    %v417 = vsel %vm128, %v226, 0
    %v420 = vsel %vm128, %v252, 0
    %422 = vmatpush.msra.mxu0 0.0
    %423 = vmatpush.msra.mxu0 0.0
    %424 = vmatpush.msra.mxu0 0.0
    %425 = vmatpush.msra.mxu0 0.0
    %426 = vmatpush.msra.mxu0 0.0
    %427 = vmatpush.msra.mxu0 0.0
    %428 = vmatpush.msra.mxu0 0.0
    %429 = vmatpush.msra.mxu0 0.0
    %430 = vmatpush.msra.mxu0 0.0
    %431 = vmatpush.msra.mxu0 0.0
    %432 = vmatpush.msra.mxu0 0.0
    %433 = vmatpush.msra.mxu0 0.0
    %434 = vmatpush.msra.mxu0 0.0
    %435 = vmatpush.msra.mxu0 0.0
    %436 = vmatpush.msra.mxu0 0.0
    %437 = vmatpush.msra.mxu0 %v254
    %438 = vmatmul.f32.gmra.mxu0 %v417
    %v439 = vpop.f32.mrf.mxu0
    %v440 = vadd.f32 %v411, %v439
    %441 = vmatmul.f32.gmra.mxu0 %v420
    %v442 = vpop.f32.mrf.mxu0
    %v443 = vadd.f32 %v414, %v442
    %444 = vdwg.mxu0
    %445 = vrot.lane.b32.xlu0 %v120, 112
    %v446 = vpop.permute.xlu0 %445
    %447 = vrot.lane.b32.xlu0 %v120, 80
    %v448 = vpop.permute.xlu0 %447
    %v449 = vsel %vm128, %v446, 0
    %v451 = vsel %vm128, %v448, 0
    %453 = vmatpush.xpose.msra.mxu0 0.0
    %454 = vmatpush.xpose.msra.mxu0 0.0
    %455 = vmatpush.xpose.msra.mxu0 0.0
    %456 = vmatpush.xpose.msra.mxu0 0.0
    %457 = vmatpush.xpose.msra.mxu0 0.0
    %458 = vmatpush.xpose.msra.mxu0 0.0
    %459 = vmatpush.xpose.msra.mxu0 0.0
    %460 = vmatpush.xpose.msra.mxu0 0.0
    %461 = vmatpush.xpose.msra.mxu0 0.0
    %462 = vmatpush.xpose.msra.mxu0 0.0
    %463 = vmatpush.xpose.msra.mxu0 0.0
    %464 = vmatpush.xpose.msra.mxu0 0.0
    %465 = vmatpush.xpose.msra.mxu0 0.0
    %466 = vmatpush.xpose.msra.mxu0 0.0
    %467 = vmatpush.xpose.msra.mxu0 0.0
    %468 = vmatpush.xpose.msra.mxu0 %v451
    %469 = vmatmul.f32.gmra.mxu0 %v449
    %v470 = vpop.f32.mrf.mxu0
    %v471 = vadd.f32 %v90, %v470
    %472 = vdwg.mxu0
    %473 = vrot.lane.b32.xlu0 %v123, 112
    %v474 = vpop.permute.xlu0 %473
    %475 = vrot.lane.b32.xlu0 %v123, 80
    %v476 = vpop.permute.xlu0 %475
    %v477 = vsel %vm128, %v474, 0
    %v479 = vsel %vm128, %v476, 0
    %481 = vmatpush.xpose.msra.mxu0 0.0
    %482 = vmatpush.xpose.msra.mxu0 0.0
    %483 = vmatpush.xpose.msra.mxu0 0.0
    %484 = vmatpush.xpose.msra.mxu0 0.0
    %485 = vmatpush.xpose.msra.mxu0 0.0
    %486 = vmatpush.xpose.msra.mxu0 0.0
    %487 = vmatpush.xpose.msra.mxu0 0.0
    %488 = vmatpush.xpose.msra.mxu0 0.0
    %489 = vmatpush.xpose.msra.mxu0 0.0
    %490 = vmatpush.xpose.msra.mxu0 0.0
    %491 = vmatpush.xpose.msra.mxu0 0.0
    %492 = vmatpush.xpose.msra.mxu0 0.0
    %493 = vmatpush.xpose.msra.mxu0 0.0
    %494 = vmatpush.xpose.msra.mxu0 0.0
    %495 = vmatpush.xpose.msra.mxu0 0.0
    %496 = vmatpush.xpose.msra.mxu0 %v479
    %497 = vmatmul.f32.gmra.mxu0 %v477
    %v498 = vpop.f32.mrf.mxu0
    %v499 = vadd.f32 %v90, %v498
    %500 = vdwg.mxu0
    %v501 = vsel %vm128, %v471, -inf
    %502 = vmax.xlane.f32.xlu0 %v501
    %v503 = vpop.xlane.xlu0 %502
    %v504 = vsel %vm128, %v499, -inf
    %505 = vmax.xlane.f32.xlu0 %v504
    %v506 = vpop.xlane.xlu0 %505
    %v507 = vsub.f32 %v471, %v503
    %v508 = vsub.f32 %v499, %v506
    %v509 = vmul.f32 %v507, 1.442695
    %v510 = vpow.pop %v509
    %v511 = vmul.f32 %v508, 1.442695
    %v512 = vpow.pop %v511
    %v513 = vsel %vm128, %v510, 0.0
    %514 = vadd.xlane.f32.xlu0 %v513
    %v515 = vpop.xlane.xlu0 %514
    %v516 = vsel %vm128, %v512, 0.0
    %517 = vadd.xlane.f32.xlu0 %v516
    %v518 = vpop.xlane.xlu0 %517
    %v519 = vrcp.pop %v515
    %v520 = vrcp.pop %v518
    %v521 = vmul.f32 %v510, %v519
    %v522 = vmul.f32 %v512, %v520
    %523 = vrot.lane.b32.xlu0 %v120, 48
    %v524 = vpop.permute.xlu0 %523
    %v527 = vsel %vm128, %v521, 0
    %529 = vmatpush.msra.mxu0 0.0
    %530 = vmatpush.msra.mxu0 0.0
    %531 = vmatpush.msra.mxu0 0.0
    %532 = vmatpush.msra.mxu0 0.0
    %533 = vmatpush.msra.mxu0 0.0
    %534 = vmatpush.msra.mxu0 0.0
    %535 = vmatpush.msra.mxu0 0.0
    %536 = vmatpush.msra.mxu0 0.0
    %537 = vmatpush.msra.mxu0 0.0
    %538 = vmatpush.msra.mxu0 0.0
    %539 = vmatpush.msra.mxu0 0.0
    %540 = vmatpush.msra.mxu0 0.0
    %541 = vmatpush.msra.mxu0 0.0
    %542 = vmatpush.msra.mxu0 0.0
    %543 = vmatpush.msra.mxu0 0.0
    %544 = vmatpush.msra.mxu0 %v524
    %545 = vmatmul.f32.gmra.mxu0 %v527
    %v546 = vpop.f32.mrf.mxu0
    %v547 = vadd.f32 0.0, %v546
    %548 = vdwg.mxu0
    %549 = vrot.lane.b32.xlu0 %v123, 48
    %v550 = vpop.permute.xlu0 %549
    %v553 = vsel %vm128, %v522, 0
    %555 = vmatpush.msra.mxu0 0.0
    %556 = vmatpush.msra.mxu0 0.0
    %557 = vmatpush.msra.mxu0 0.0
    %558 = vmatpush.msra.mxu0 0.0
    %559 = vmatpush.msra.mxu0 0.0
    %560 = vmatpush.msra.mxu0 0.0
    %561 = vmatpush.msra.mxu0 0.0
    %562 = vmatpush.msra.mxu0 0.0
    %563 = vmatpush.msra.mxu0 0.0
    %564 = vmatpush.msra.mxu0 0.0
    %565 = vmatpush.msra.mxu0 0.0
    %566 = vmatpush.msra.mxu0 0.0
    %567 = vmatpush.msra.mxu0 0.0
    %568 = vmatpush.msra.mxu0 0.0
    %569 = vmatpush.msra.mxu0 0.0
    %570 = vmatpush.msra.mxu0 %v550
    %571 = vmatmul.f32.gmra.mxu0 %v553
    %v572 = vpop.f32.mrf.mxu0
    %v573 = vadd.f32 0.0, %v572
    %574 = vdwg.mxu0
    %s575 = scalar_lea.vmem %s5, 16
    %v576 = vld [vmem:[%s575] sm:$0xff]
    %v578 = vsel %vm128, %v547, 0
    %v581 = vsel %vm128, %v573, 0
    %583 = vmatpush.msra.mxu0 0.0
    %584 = vmatpush.msra.mxu0 0.0
    %585 = vmatpush.msra.mxu0 0.0
    %586 = vmatpush.msra.mxu0 0.0
    %587 = vmatpush.msra.mxu0 0.0
    %588 = vmatpush.msra.mxu0 0.0
    %589 = vmatpush.msra.mxu0 0.0
    %590 = vmatpush.msra.mxu0 0.0
    %591 = vmatpush.msra.mxu0 0.0
    %592 = vmatpush.msra.mxu0 0.0
    %593 = vmatpush.msra.mxu0 0.0
    %594 = vmatpush.msra.mxu0 0.0
    %595 = vmatpush.msra.mxu0 0.0
    %596 = vmatpush.msra.mxu0 0.0
    %597 = vmatpush.msra.mxu0 0.0
    %598 = vmatpush.msra.mxu0 %v576
    %599 = vmatmul.f32.gmra.mxu0 %v578
    %v600 = vpop.f32.mrf.mxu0
    %v601 = vadd.f32 0.0, %v600
    %602 = vmatmul.f32.gmra.mxu0 %v581
    %v603 = vpop.f32.mrf.mxu0
    %v604 = vadd.f32 0.0, %v603
    %605 = vdwg.mxu0
    %v606 = vadd.f32 %v440, %v601
    %v607 = vadd.f32 %v443, %v604
    %608 = vrot.lane.b32.xlu0 %v120, 104
    %v609 = vpop.permute.xlu0 %608
    %610 = vrot.lane.b32.xlu0 %v120, 72
    %v611 = vpop.permute.xlu0 %610
    %v612 = vsel %vm128, %v609, 0
    %v614 = vsel %vm128, %v611, 0
    %616 = vmatpush.xpose.msra.mxu0 0.0
    %617 = vmatpush.xpose.msra.mxu0 0.0
    %618 = vmatpush.xpose.msra.mxu0 0.0
    %619 = vmatpush.xpose.msra.mxu0 0.0
    %620 = vmatpush.xpose.msra.mxu0 0.0
    %621 = vmatpush.xpose.msra.mxu0 0.0
    %622 = vmatpush.xpose.msra.mxu0 0.0
    %623 = vmatpush.xpose.msra.mxu0 0.0
    %624 = vmatpush.xpose.msra.mxu0 0.0
    %625 = vmatpush.xpose.msra.mxu0 0.0
    %626 = vmatpush.xpose.msra.mxu0 0.0
    %627 = vmatpush.xpose.msra.mxu0 0.0
    %628 = vmatpush.xpose.msra.mxu0 0.0
    %629 = vmatpush.xpose.msra.mxu0 0.0
    %630 = vmatpush.xpose.msra.mxu0 0.0
    %631 = vmatpush.xpose.msra.mxu0 %v614
    %632 = vmatmul.f32.gmra.mxu0 %v612
    %v633 = vpop.f32.mrf.mxu0
    %v634 = vadd.f32 %v90, %v633
    %635 = vdwg.mxu0
    %636 = vrot.lane.b32.xlu0 %v123, 104
    %v637 = vpop.permute.xlu0 %636
    %638 = vrot.lane.b32.xlu0 %v123, 72
    %v639 = vpop.permute.xlu0 %638
    %v640 = vsel %vm128, %v637, 0
    %v642 = vsel %vm128, %v639, 0
    %644 = vmatpush.xpose.msra.mxu0 0.0
    %645 = vmatpush.xpose.msra.mxu0 0.0
    %646 = vmatpush.xpose.msra.mxu0 0.0
    %647 = vmatpush.xpose.msra.mxu0 0.0
    %648 = vmatpush.xpose.msra.mxu0 0.0
    %649 = vmatpush.xpose.msra.mxu0 0.0
    %650 = vmatpush.xpose.msra.mxu0 0.0
    %651 = vmatpush.xpose.msra.mxu0 0.0
    %652 = vmatpush.xpose.msra.mxu0 0.0
    %653 = vmatpush.xpose.msra.mxu0 0.0
    %654 = vmatpush.xpose.msra.mxu0 0.0
    %655 = vmatpush.xpose.msra.mxu0 0.0
    %656 = vmatpush.xpose.msra.mxu0 0.0
    %657 = vmatpush.xpose.msra.mxu0 0.0
    %658 = vmatpush.xpose.msra.mxu0 0.0
    %659 = vmatpush.xpose.msra.mxu0 %v642
    %660 = vmatmul.f32.gmra.mxu0 %v640
    %v661 = vpop.f32.mrf.mxu0
    %v662 = vadd.f32 %v90, %v661
    %663 = vdwg.mxu0
    %v664 = vsel %vm128, %v634, -inf
    %665 = vmax.xlane.f32.xlu0 %v664
    %v666 = vpop.xlane.xlu0 %665
    %v667 = vsel %vm128, %v662, -inf
    %668 = vmax.xlane.f32.xlu0 %v667
    %v669 = vpop.xlane.xlu0 %668
    %v670 = vsub.f32 %v634, %v666
    %v671 = vsub.f32 %v662, %v669
    %v672 = vmul.f32 %v670, 1.442695
    %v673 = vpow.pop %v672
    %v674 = vmul.f32 %v671, 1.442695
    %v675 = vpow.pop %v674
    %v676 = vsel %vm128, %v673, 0.0
    %677 = vadd.xlane.f32.xlu0 %v676
    %v678 = vpop.xlane.xlu0 %677
    %v679 = vsel %vm128, %v675, 0.0
    %680 = vadd.xlane.f32.xlu0 %v679
    %v681 = vpop.xlane.xlu0 %680
    %v682 = vrcp.pop %v678
    %v683 = vrcp.pop %v681
    %v684 = vmul.f32 %v673, %v682
    %v685 = vmul.f32 %v675, %v683
    %686 = vrot.lane.b32.xlu0 %v120, 40
    %v687 = vpop.permute.xlu0 %686
    %v690 = vsel %vm128, %v684, 0
    %692 = vmatpush.msra.mxu0 0.0
    %693 = vmatpush.msra.mxu0 0.0
    %694 = vmatpush.msra.mxu0 0.0
    %695 = vmatpush.msra.mxu0 0.0
    %696 = vmatpush.msra.mxu0 0.0
    %697 = vmatpush.msra.mxu0 0.0
    %698 = vmatpush.msra.mxu0 0.0
    %699 = vmatpush.msra.mxu0 0.0
    %700 = vmatpush.msra.mxu0 0.0
    %701 = vmatpush.msra.mxu0 0.0
    %702 = vmatpush.msra.mxu0 0.0
    %703 = vmatpush.msra.mxu0 0.0
    %704 = vmatpush.msra.mxu0 0.0
    %705 = vmatpush.msra.mxu0 0.0
    %706 = vmatpush.msra.mxu0 0.0
    %707 = vmatpush.msra.mxu0 %v687
    %708 = vmatmul.f32.gmra.mxu0 %v690
    %v709 = vpop.f32.mrf.mxu0
    %v710 = vadd.f32 0.0, %v709
    %711 = vdwg.mxu0
    %712 = vrot.lane.b32.xlu0 %v123, 40
    %v713 = vpop.permute.xlu0 %712
    %v716 = vsel %vm128, %v685, 0
    %718 = vmatpush.msra.mxu0 0.0
    %719 = vmatpush.msra.mxu0 0.0
    %720 = vmatpush.msra.mxu0 0.0
    %721 = vmatpush.msra.mxu0 0.0
    %722 = vmatpush.msra.mxu0 0.0
    %723 = vmatpush.msra.mxu0 0.0
    %724 = vmatpush.msra.mxu0 0.0
    %725 = vmatpush.msra.mxu0 0.0
    %726 = vmatpush.msra.mxu0 0.0
    %727 = vmatpush.msra.mxu0 0.0
    %728 = vmatpush.msra.mxu0 0.0
    %729 = vmatpush.msra.mxu0 0.0
    %730 = vmatpush.msra.mxu0 0.0
    %731 = vmatpush.msra.mxu0 0.0
    %732 = vmatpush.msra.mxu0 0.0
    %733 = vmatpush.msra.mxu0 %v713
    %734 = vmatmul.f32.gmra.mxu0 %v716
    %v735 = vpop.f32.mrf.mxu0
    %v736 = vadd.f32 0.0, %v735
    %737 = vdwg.mxu0
    %s738 = scalar_lea.vmem %s5, 24
    %v739 = vld [vmem:[%s738] sm:$0xff]
    %v741 = vsel %vm128, %v710, 0
    %v744 = vsel %vm128, %v736, 0
    %746 = vmatpush.msra.mxu0 0.0
    %747 = vmatpush.msra.mxu0 0.0
    %748 = vmatpush.msra.mxu0 0.0
    %749 = vmatpush.msra.mxu0 0.0
    %750 = vmatpush.msra.mxu0 0.0
    %751 = vmatpush.msra.mxu0 0.0
    %752 = vmatpush.msra.mxu0 0.0
    %753 = vmatpush.msra.mxu0 0.0
    %754 = vmatpush.msra.mxu0 0.0
    %755 = vmatpush.msra.mxu0 0.0
    %756 = vmatpush.msra.mxu0 0.0
    %757 = vmatpush.msra.mxu0 0.0
    %758 = vmatpush.msra.mxu0 0.0
    %759 = vmatpush.msra.mxu0 0.0
    %760 = vmatpush.msra.mxu0 0.0
    %761 = vmatpush.msra.mxu0 %v739
    %762 = vmatmul.f32.gmra.mxu0 %v741
    %v763 = vpop.f32.mrf.mxu0
    %v764 = vadd.f32 0.0, %v763
    %765 = vmatmul.f32.gmra.mxu0 %v744
    %v766 = vpop.f32.mrf.mxu0
    %v767 = vadd.f32 0.0, %v766
    %768 = vdwg.mxu0
    %v769 = vadd.f32 %v606, %v764
    %v770 = vadd.f32 %v607, %v767
    %v771 = vld [vmem:[%s6] sm:$0x1]
    %v773 = vperm.slane %v771, 0
    %v775 = vadd.f32 %v769, %v773
    %v776 = vadd.f32 %v770, %v773
    %v777 = vadd.f32 %v775, %v85
    %v778 = vadd.f32 %v776, %v88
    %v779 = vld [vmem:[%s7] sm:$0x1]
    %v780 = vld [vmem:[%s8] sm:$0x1]
    %v781 = vsel %vm95, %v777, 0.0
    %782 = vadd.xlane.f32.xlu0 %v781
    %v783 = vpop.xlane.xlu0 %782
    %v784 = vsel %vm95, %v778, 0.0
    %785 = vadd.xlane.f32.xlu0 %v784
    %v786 = vpop.xlane.xlu0 %785
    %v787 = vrcp.pop 32.0
    %v788 = vmul.f32 32.0, %v787
    %v789 = vsub.f32 1.0, %v788
    %v790 = vmul.f32 %v787, %v789
    %v791 = vadd.f32 %v787, %v790
    %vm792 = vweird.f32 %v787
    %v793 = vsel %vm792, %v787, %v791
    %v794 = vmul.f32 %v783, %v793
    %v795 = vmul.f32 %v786, %v793
    %v796 = vsub.f32 %v777, %v794
    %v797 = vsub.f32 %v778, %v795
    %v798 = vmul.f32 %v796, %v796
    %v799 = vmul.f32 %v797, %v797
    %v800 = vsel %vm95, %v798, 0.0
    %801 = vadd.xlane.f32.xlu0 %v800
    %v802 = vpop.xlane.xlu0 %801
    %v803 = vsel %vm95, %v799, 0.0
    %804 = vadd.xlane.f32.xlu0 %v803
    %v805 = vpop.xlane.xlu0 %804
    %v806 = vmul.f32 %v802, %v793
    %v807 = vmul.f32 %v805, %v793
    %v808 = vadd.f32 %v806, 1e-05
    %v809 = vadd.f32 %v807, 1e-05
    %v810 = vrsqrt.pop %v808
    %v811 = vmul.f32 %v810, %v808
    %v812 = vmul.f32 %v811, %v810
    %v813 = vmul.f32 0.5, %v812
    %v814 = vsub.f32 1.5, %v813
    %v815 = vmul.f32 %v810, %v814
    %vm816 = vweird.f32 %v808
    %vm817 = vweird.f32 %v810
    %vm818 = vmor %vm816, %vm817
    %v819 = vsel %vm818, %v810, %v815
    %v820 = vrsqrt.pop %v809
    %v821 = vmul.f32 %v820, %v809
    %v822 = vmul.f32 %v821, %v820
    %v823 = vmul.f32 0.5, %v822
    %v824 = vsub.f32 1.5, %v823
    %v825 = vmul.f32 %v820, %v824
    %vm826 = vweird.f32 %v809
    %vm827 = vweird.f32 %v820
    %vm828 = vmor %vm826, %vm827
    %v829 = vsel %vm828, %v820, %v825
    %v830 = vmul.f32 %v796, %v819
    %v831 = vmul.f32 %v797, %v829
    %v833 = vperm.slane %v779, 0
    %v835 = vmul.f32 %v830, %v833
    %v836 = vmul.f32 %v831, %v833
    %v838 = vperm.slane %v780, 0
    %v840 = vadd.f32 %v835, %v838
    %v841 = vadd.f32 %v836, %v838
    %v842 = vld [vmem:[%s9] sm:$0xff]
    %v843 = vld [vmem:[%s9 + $0x8] sm:$0xff]
    %v844 = vld [vmem:[%s9 + $0x10] sm:$0xff]
    %v845 = vld [vmem:[%s9 + $0x18] sm:$0xff]
    %v846 = vld [vmem:[%s10] sm:$0x1]
    %v848 = vperm.slane %v846, 0
    %v851 = vsel %vm95, %v840, 0
    %v854 = vsel %vm95, %v841, 0
    %856 = vmatpush.msra.mxu0 0.0
    %857 = vmatpush.msra.mxu0 0.0
    %858 = vmatpush.msra.mxu0 0.0
    %859 = vmatpush.msra.mxu0 0.0
    %860 = vmatpush.msra.mxu0 0.0
    %861 = vmatpush.msra.mxu0 0.0
    %862 = vmatpush.msra.mxu0 0.0
    %863 = vmatpush.msra.mxu0 0.0
    %864 = vmatpush.msra.mxu0 0.0
    %865 = vmatpush.msra.mxu0 0.0
    %866 = vmatpush.msra.mxu0 0.0
    %867 = vmatpush.msra.mxu0 0.0
    %868 = vmatpush.msra.mxu0 %v845
    %869 = vmatpush.msra.mxu0 %v844
    %870 = vmatpush.msra.mxu0 %v843
    %871 = vmatpush.msra.mxu0 %v842
    %872 = vmatmul.f32.gmra.mxu0 %v851
    %v873 = vpop.f32.mrf.mxu0
    %v874 = vadd.f32 %v848, %v873
    %875 = vmatmul.f32.gmra.mxu0 %v854
    %v876 = vpop.f32.mrf.mxu0
    %v877 = vadd.f32 %v848, %v876
    %878 = vdwg.mxu0
    %v879 = vmax.f32 %v874, 0.0
    %v880 = vmax.f32 %v877, 0.0
    %v881 = vld [vmem:[%s11] sm:$0xff]
    %v882 = vld [vmem:[%s11 + $0x8] sm:$0xff]
    %v883 = vld [vmem:[%s11 + $0x10] sm:$0xff]
    %v884 = vld [vmem:[%s11 + $0x18] sm:$0xff]
    %v885 = vld [vmem:[%s11 + $0x20] sm:$0xff]
    %v886 = vld [vmem:[%s11 + $0x28] sm:$0xff]
    %v887 = vld [vmem:[%s11 + $0x30] sm:$0xff]
    %v888 = vld [vmem:[%s11 + $0x38] sm:$0xff]
    %v889 = vld [vmem:[%s11 + $0x40] sm:$0xff]
    %v890 = vld [vmem:[%s11 + $0x48] sm:$0xff]
    %v891 = vld [vmem:[%s11 + $0x50] sm:$0xff]
    %v892 = vld [vmem:[%s11 + $0x58] sm:$0xff]
    %v893 = vld [vmem:[%s11 + $0x60] sm:$0xff]
    %v894 = vld [vmem:[%s11 + $0x68] sm:$0xff]
    %v895 = vld [vmem:[%s11 + $0x70] sm:$0xff]
    %v896 = vld [vmem:[%s11 + $0x78] sm:$0xff]
    %v897 = vld [vmem:[%s12] sm:$0x1]
    %v899 = vperm.slane %v897, 0
    %901 = vmatpush.msra.mxu0 %v896
    %902 = vmatpush.msra.mxu0 %v895
    %903 = vmatpush.msra.mxu0 %v894
    %904 = vmatpush.msra.mxu0 %v893
    %905 = vmatpush.msra.mxu0 %v892
    %906 = vmatpush.msra.mxu0 %v891
    %907 = vmatpush.msra.mxu0 %v890
    %908 = vmatpush.msra.mxu0 %v889
    %909 = vmatpush.msra.mxu0 %v888
    %910 = vmatpush.msra.mxu0 %v887
    %911 = vmatpush.msra.mxu0 %v886
    %912 = vmatpush.msra.mxu0 %v885
    %913 = vmatpush.msra.mxu0 %v884
    %914 = vmatpush.msra.mxu0 %v883
    %915 = vmatpush.msra.mxu0 %v882
    %916 = vmatpush.msra.mxu0 %v881
    %917 = vmatmul.f32.gmra.mxu0 %v879
    %v918 = vpop.f32.mrf.mxu0
    %v919 = vadd.f32 %v899, %v918
    %920 = vmatmul.f32.gmra.mxu0 %v880
    %v921 = vpop.f32.mrf.mxu0
    %v922 = vadd.f32 %v899, %v921
    %923 = vdwg.mxu0
    %v924 = vadd.f32 %v919, %v840
    %v925 = vadd.f32 %v922, %v841
    %v926 = vld [vmem:[%s13] sm:$0x1]
    %v927 = vld [vmem:[%s14] sm:$0x1]
    %v928 = vsel %vm95, %v924, 0.0
    %929 = vadd.xlane.f32.xlu0 %v928
    %v930 = vpop.xlane.xlu0 %929
    %v931 = vsel %vm95, %v925, 0.0
    %932 = vadd.xlane.f32.xlu0 %v931
    %v933 = vpop.xlane.xlu0 %932
    %v934 = vmul.f32 %v930, %v793
    %v935 = vmul.f32 %v933, %v793
    %v936 = vsub.f32 %v924, %v934
    %v937 = vsub.f32 %v925, %v935
    %v938 = vmul.f32 %v936, %v936
    %v939 = vmul.f32 %v937, %v937
    %v940 = vsel %vm95, %v938, 0.0
    %941 = vadd.xlane.f32.xlu0 %v940
    %v942 = vpop.xlane.xlu0 %941
    %v943 = vsel %vm95, %v939, 0.0
    %944 = vadd.xlane.f32.xlu0 %v943
    %v945 = vpop.xlane.xlu0 %944
    %v946 = vmul.f32 %v942, %v793
    %v947 = vmul.f32 %v945, %v793
    %v948 = vadd.f32 %v946, 1e-05
    %v949 = vadd.f32 %v947, 1e-05
    %v950 = vrsqrt.pop %v948
    %v951 = vmul.f32 %v950, %v948
    %v952 = vmul.f32 %v951, %v950
    %v953 = vmul.f32 0.5, %v952
    %v954 = vsub.f32 1.5, %v953
    %v955 = vmul.f32 %v950, %v954
    %vm956 = vweird.f32 %v948
    %vm957 = vweird.f32 %v950
    %vm958 = vmor %vm956, %vm957
    %v959 = vsel %vm958, %v950, %v955
    %v960 = vrsqrt.pop %v949
    %v961 = vmul.f32 %v960, %v949
    %v962 = vmul.f32 %v961, %v960
    %v963 = vmul.f32 0.5, %v962
    %v964 = vsub.f32 1.5, %v963
    %v965 = vmul.f32 %v960, %v964
    %vm966 = vweird.f32 %v949
    %vm967 = vweird.f32 %v960
    %vm968 = vmor %vm966, %vm967
    %v969 = vsel %vm968, %v960, %v965
    %v970 = vmul.f32 %v936, %v959
    %v971 = vmul.f32 %v937, %v969
    %v973 = vperm.slane %v926, 0
    %v975 = vmul.f32 %v970, %v973
    %v976 = vmul.f32 %v971, %v973
    %v978 = vperm.slane %v927, 0
    %v980 = vadd.f32 %v975, %v978
    %v981 = vadd.f32 %v976, %v978
    %s982 = scalar_lea.vmem %s4, 32
    %v983 = vld [vmem:[%s982] sm:$0xff]
    %v984 = vld [vmem:[%s982 + $0x8] sm:$0xff]
    %v985 = vld [vmem:[%s982 + $0x10] sm:$0xff]
    %v986 = vld [vmem:[%s982 + $0x18] sm:$0xff]
    %v988 = vsel %vm95, %v980, 0
    %v991 = vsel %vm95, %v981, 0
    %993 = vmatpush.msra.mxu0 0.0
    %994 = vmatpush.msra.mxu0 0.0
    %995 = vmatpush.msra.mxu0 0.0
    %996 = vmatpush.msra.mxu0 0.0
    %997 = vmatpush.msra.mxu0 0.0
    %998 = vmatpush.msra.mxu0 0.0
    %999 = vmatpush.msra.mxu0 0.0
    %1000 = vmatpush.msra.mxu0 0.0
    %1001 = vmatpush.msra.mxu0 0.0
    %1002 = vmatpush.msra.mxu0 0.0
    %1003 = vmatpush.msra.mxu0 0.0
    %1004 = vmatpush.msra.mxu0 0.0
    %1005 = vmatpush.msra.mxu0 %v986
    %1006 = vmatpush.msra.mxu0 %v985
    %1007 = vmatpush.msra.mxu0 %v984
    %1008 = vmatpush.msra.mxu0 %v983
    %1009 = vmatmul.f32.gmra.mxu0 %v988
    %v1010 = vpop.f32.mrf.mxu0
    %v1011 = vadd.f32 0.0, %v1010
    %1012 = vmatmul.f32.gmra.mxu0 %v991
    %v1013 = vpop.f32.mrf.mxu0
    %v1014 = vadd.f32 0.0, %v1013
    %1015 = vdwg.mxu0
    %1017 = vrot.lane.b32.xlu0 %v1011, 96
    %v1018 = vpop.permute.xlu0 %1017
    %v1019 = vsel %vm128, %v1011, 0
    %v1021 = vsel %vm128, %v1018, 0
    %1023 = vmatpush.xpose.msra.mxu0 0.0
    %1024 = vmatpush.xpose.msra.mxu0 0.0
    %1025 = vmatpush.xpose.msra.mxu0 0.0
    %1026 = vmatpush.xpose.msra.mxu0 0.0
    %1027 = vmatpush.xpose.msra.mxu0 0.0
    %1028 = vmatpush.xpose.msra.mxu0 0.0
    %1029 = vmatpush.xpose.msra.mxu0 0.0
    %1030 = vmatpush.xpose.msra.mxu0 0.0
    %1031 = vmatpush.xpose.msra.mxu0 0.0
    %1032 = vmatpush.xpose.msra.mxu0 0.0
    %1033 = vmatpush.xpose.msra.mxu0 0.0
    %1034 = vmatpush.xpose.msra.mxu0 0.0
    %1035 = vmatpush.xpose.msra.mxu0 0.0
    %1036 = vmatpush.xpose.msra.mxu0 0.0
    %1037 = vmatpush.xpose.msra.mxu0 0.0
    %1038 = vmatpush.xpose.msra.mxu0 %v1021
    %1039 = vmatmul.f32.gmra.mxu0 %v1019
    %v1040 = vpop.f32.mrf.mxu0
    %v1041 = vadd.f32 %v90, %v1040
    %1042 = vdwg.mxu0
    %1044 = vrot.lane.b32.xlu0 %v1014, 96
    %v1045 = vpop.permute.xlu0 %1044
    %v1046 = vsel %vm128, %v1014, 0
    %v1048 = vsel %vm128, %v1045, 0
    %1050 = vmatpush.xpose.msra.mxu0 0.0
    %1051 = vmatpush.xpose.msra.mxu0 0.0
    %1052 = vmatpush.xpose.msra.mxu0 0.0
    %1053 = vmatpush.xpose.msra.mxu0 0.0
    %1054 = vmatpush.xpose.msra.mxu0 0.0
    %1055 = vmatpush.xpose.msra.mxu0 0.0
    %1056 = vmatpush.xpose.msra.mxu0 0.0
    %1057 = vmatpush.xpose.msra.mxu0 0.0
    %1058 = vmatpush.xpose.msra.mxu0 0.0
    %1059 = vmatpush.xpose.msra.mxu0 0.0
    %1060 = vmatpush.xpose.msra.mxu0 0.0
    %1061 = vmatpush.xpose.msra.mxu0 0.0
    %1062 = vmatpush.xpose.msra.mxu0 0.0
    %1063 = vmatpush.xpose.msra.mxu0 0.0
    %1064 = vmatpush.xpose.msra.mxu0 0.0
    %1065 = vmatpush.xpose.msra.mxu0 %v1048
    %1066 = vmatmul.f32.gmra.mxu0 %v1046
    %v1067 = vpop.f32.mrf.mxu0
    %v1068 = vadd.f32 %v90, %v1067
    %1069 = vdwg.mxu0
    %v1070 = vsel %vm128, %v1041, -inf
    %1071 = vmax.xlane.f32.xlu0 %v1070
    %v1072 = vpop.xlane.xlu0 %1071
    %v1073 = vsel %vm128, %v1068, -inf
    %1074 = vmax.xlane.f32.xlu0 %v1073
    %v1075 = vpop.xlane.xlu0 %1074
    %v1076 = vsub.f32 %v1041, %v1072
    %v1077 = vsub.f32 %v1068, %v1075
    %v1078 = vmul.f32 %v1076, 1.442695
    %v1079 = vpow.pop %v1078
    %v1080 = vmul.f32 %v1077, 1.442695
    %v1081 = vpow.pop %v1080
    %v1082 = vsel %vm128, %v1079, 0.0
    %1083 = vadd.xlane.f32.xlu0 %v1082
    %v1084 = vpop.xlane.xlu0 %1083
    %v1085 = vsel %vm128, %v1081, 0.0
    %1086 = vadd.xlane.f32.xlu0 %v1085
    %v1087 = vpop.xlane.xlu0 %1086
    %v1088 = vrcp.pop %v1084
    %v1089 = vrcp.pop %v1087
    %v1090 = vmul.f32 %v1079, %v1088
    %v1091 = vmul.f32 %v1081, %v1089
    %1092 = vrot.lane.b32.xlu0 %v1011, 64
    %v1093 = vpop.permute.xlu0 %1092
    %v1096 = vsel %vm128, %v1090, 0
    %1098 = vmatpush.msra.mxu0 0.0
    %1099 = vmatpush.msra.mxu0 0.0
    %1100 = vmatpush.msra.mxu0 0.0
    %1101 = vmatpush.msra.mxu0 0.0
    %1102 = vmatpush.msra.mxu0 0.0
    %1103 = vmatpush.msra.mxu0 0.0
    %1104 = vmatpush.msra.mxu0 0.0
    %1105 = vmatpush.msra.mxu0 0.0
    %1106 = vmatpush.msra.mxu0 0.0
    %1107 = vmatpush.msra.mxu0 0.0
    %1108 = vmatpush.msra.mxu0 0.0
    %1109 = vmatpush.msra.mxu0 0.0
    %1110 = vmatpush.msra.mxu0 0.0
    %1111 = vmatpush.msra.mxu0 0.0
    %1112 = vmatpush.msra.mxu0 0.0
    %1113 = vmatpush.msra.mxu0 %v1093
    %1114 = vmatmul.f32.gmra.mxu0 %v1096
    %v1115 = vpop.f32.mrf.mxu0
    %v1116 = vadd.f32 0.0, %v1115
    %1117 = vdwg.mxu0
    %1118 = vrot.lane.b32.xlu0 %v1014, 64
    %v1119 = vpop.permute.xlu0 %1118
    %v1122 = vsel %vm128, %v1091, 0
    %1124 = vmatpush.msra.mxu0 0.0
    %1125 = vmatpush.msra.mxu0 0.0
    %1126 = vmatpush.msra.mxu0 0.0
    %1127 = vmatpush.msra.mxu0 0.0
    %1128 = vmatpush.msra.mxu0 0.0
    %1129 = vmatpush.msra.mxu0 0.0
    %1130 = vmatpush.msra.mxu0 0.0
    %1131 = vmatpush.msra.mxu0 0.0
    %1132 = vmatpush.msra.mxu0 0.0
    %1133 = vmatpush.msra.mxu0 0.0
    %1134 = vmatpush.msra.mxu0 0.0
    %1135 = vmatpush.msra.mxu0 0.0
    %1136 = vmatpush.msra.mxu0 0.0
    %1137 = vmatpush.msra.mxu0 0.0
    %1138 = vmatpush.msra.mxu0 0.0
    %1139 = vmatpush.msra.mxu0 %v1119
    %1140 = vmatmul.f32.gmra.mxu0 %v1122
    %v1141 = vpop.f32.mrf.mxu0
    %v1142 = vadd.f32 0.0, %v1141
    %1143 = vdwg.mxu0
    %s1144 = scalar_lea.vmem %s5, 32
    %v1145 = vld [vmem:[%s1144] sm:$0xff]
    %1146 = vrot.lane.b32.xlu0 %v1011, 120
    %v1147 = vpop.permute.xlu0 %1146
    %1148 = vrot.lane.b32.xlu0 %v1011, 88
    %v1149 = vpop.permute.xlu0 %1148
    %v1150 = vsel %vm128, %v1147, 0
    %v1152 = vsel %vm128, %v1149, 0
    %1154 = vmatpush.xpose.msra.mxu0 0.0
    %1155 = vmatpush.xpose.msra.mxu0 0.0
    %1156 = vmatpush.xpose.msra.mxu0 0.0
    %1157 = vmatpush.xpose.msra.mxu0 0.0
    %1158 = vmatpush.xpose.msra.mxu0 0.0
    %1159 = vmatpush.xpose.msra.mxu0 0.0
    %1160 = vmatpush.xpose.msra.mxu0 0.0
    %1161 = vmatpush.xpose.msra.mxu0 0.0
    %1162 = vmatpush.xpose.msra.mxu0 0.0
    %1163 = vmatpush.xpose.msra.mxu0 0.0
    %1164 = vmatpush.xpose.msra.mxu0 0.0
    %1165 = vmatpush.xpose.msra.mxu0 0.0
    %1166 = vmatpush.xpose.msra.mxu0 0.0
    %1167 = vmatpush.xpose.msra.mxu0 0.0
    %1168 = vmatpush.xpose.msra.mxu0 0.0
    %1169 = vmatpush.xpose.msra.mxu0 %v1152
    %1170 = vmatmul.f32.gmra.mxu0 %v1150
    %v1171 = vpop.f32.mrf.mxu0
    %v1172 = vadd.f32 %v90, %v1171
    %1173 = vdwg.mxu0
    %1174 = vrot.lane.b32.xlu0 %v1014, 120
    %v1175 = vpop.permute.xlu0 %1174
    %1176 = vrot.lane.b32.xlu0 %v1014, 88
    %v1177 = vpop.permute.xlu0 %1176
    %v1178 = vsel %vm128, %v1175, 0
    %v1180 = vsel %vm128, %v1177, 0
    %1182 = vmatpush.xpose.msra.mxu0 0.0
    %1183 = vmatpush.xpose.msra.mxu0 0.0
    %1184 = vmatpush.xpose.msra.mxu0 0.0
    %1185 = vmatpush.xpose.msra.mxu0 0.0
    %1186 = vmatpush.xpose.msra.mxu0 0.0
    %1187 = vmatpush.xpose.msra.mxu0 0.0
    %1188 = vmatpush.xpose.msra.mxu0 0.0
    %1189 = vmatpush.xpose.msra.mxu0 0.0
    %1190 = vmatpush.xpose.msra.mxu0 0.0
    %1191 = vmatpush.xpose.msra.mxu0 0.0
    %1192 = vmatpush.xpose.msra.mxu0 0.0
    %1193 = vmatpush.xpose.msra.mxu0 0.0
    %1194 = vmatpush.xpose.msra.mxu0 0.0
    %1195 = vmatpush.xpose.msra.mxu0 0.0
    %1196 = vmatpush.xpose.msra.mxu0 0.0
    %1197 = vmatpush.xpose.msra.mxu0 %v1180
    %1198 = vmatmul.f32.gmra.mxu0 %v1178
    %v1199 = vpop.f32.mrf.mxu0
    %v1200 = vadd.f32 %v90, %v1199
    %1201 = vdwg.mxu0
    %v1202 = vsel %vm128, %v1172, -inf
    %1203 = vmax.xlane.f32.xlu0 %v1202
    %v1204 = vpop.xlane.xlu0 %1203
    %v1205 = vsel %vm128, %v1200, -inf
    %1206 = vmax.xlane.f32.xlu0 %v1205
    %v1207 = vpop.xlane.xlu0 %1206
    %v1208 = vsub.f32 %v1172, %v1204
    %v1209 = vsub.f32 %v1200, %v1207
    %v1210 = vmul.f32 %v1208, 1.442695
    %v1211 = vpow.pop %v1210
    %v1212 = vmul.f32 %v1209, 1.442695
    %v1213 = vpow.pop %v1212
    %v1214 = vsel %vm128, %v1211, 0.0
    %1215 = vadd.xlane.f32.xlu0 %v1214
    %v1216 = vpop.xlane.xlu0 %1215
    %v1217 = vsel %vm128, %v1213, 0.0
    %1218 = vadd.xlane.f32.xlu0 %v1217
    %v1219 = vpop.xlane.xlu0 %1218
    %v1220 = vrcp.pop %v1216
    %v1221 = vrcp.pop %v1219
    %v1222 = vmul.f32 %v1211, %v1220
    %v1223 = vmul.f32 %v1213, %v1221
    %1224 = vrot.lane.b32.xlu0 %v1011, 56
    %v1225 = vpop.permute.xlu0 %1224
    %v1228 = vsel %vm128, %v1222, 0
    %1230 = vmatpush.msra.mxu0 0.0
    %1231 = vmatpush.msra.mxu0 0.0
    %1232 = vmatpush.msra.mxu0 0.0
    %1233 = vmatpush.msra.mxu0 0.0
    %1234 = vmatpush.msra.mxu0 0.0
    %1235 = vmatpush.msra.mxu0 0.0
    %1236 = vmatpush.msra.mxu0 0.0
    %1237 = vmatpush.msra.mxu0 0.0
    %1238 = vmatpush.msra.mxu0 0.0
    %1239 = vmatpush.msra.mxu0 0.0
    %1240 = vmatpush.msra.mxu0 0.0
    %1241 = vmatpush.msra.mxu0 0.0
    %1242 = vmatpush.msra.mxu0 0.0
    %1243 = vmatpush.msra.mxu0 0.0
    %1244 = vmatpush.msra.mxu0 0.0
    %1245 = vmatpush.msra.mxu0 %v1225
    %1246 = vmatmul.f32.gmra.mxu0 %v1228
    %v1247 = vpop.f32.mrf.mxu0
    %v1248 = vadd.f32 0.0, %v1247
    %1249 = vdwg.mxu0
    %1250 = vrot.lane.b32.xlu0 %v1014, 56
    %v1251 = vpop.permute.xlu0 %1250
    %v1254 = vsel %vm128, %v1223, 0
    %1256 = vmatpush.msra.mxu0 0.0
    %1257 = vmatpush.msra.mxu0 0.0
    %1258 = vmatpush.msra.mxu0 0.0
    %1259 = vmatpush.msra.mxu0 0.0
    %1260 = vmatpush.msra.mxu0 0.0
    %1261 = vmatpush.msra.mxu0 0.0
    %1262 = vmatpush.msra.mxu0 0.0
    %1263 = vmatpush.msra.mxu0 0.0
    %1264 = vmatpush.msra.mxu0 0.0
    %1265 = vmatpush.msra.mxu0 0.0
    %1266 = vmatpush.msra.mxu0 0.0
    %1267 = vmatpush.msra.mxu0 0.0
    %1268 = vmatpush.msra.mxu0 0.0
    %1269 = vmatpush.msra.mxu0 0.0
    %1270 = vmatpush.msra.mxu0 0.0
    %1271 = vmatpush.msra.mxu0 %v1251
    %1272 = vmatmul.f32.gmra.mxu0 %v1254
    %v1273 = vpop.f32.mrf.mxu0
    %v1274 = vadd.f32 0.0, %v1273
    %1275 = vdwg.mxu0
    %s1276 = scalar_lea.vmem %s5, 40
    %v1277 = vld [vmem:[%s1276] sm:$0xff]
    %v1279 = vsel %vm128, %v1248, 0
    %v1282 = vsel %vm128, %v1274, 0
    %1284 = vmatpush.msra.mxu0 0.0
    %1285 = vmatpush.msra.mxu0 0.0
    %1286 = vmatpush.msra.mxu0 0.0
    %1287 = vmatpush.msra.mxu0 0.0
    %1288 = vmatpush.msra.mxu0 0.0
    %1289 = vmatpush.msra.mxu0 0.0
    %1290 = vmatpush.msra.mxu0 0.0
    %1291 = vmatpush.msra.mxu0 0.0
    %1292 = vmatpush.msra.mxu0 0.0
    %1293 = vmatpush.msra.mxu0 0.0
    %1294 = vmatpush.msra.mxu0 0.0
    %1295 = vmatpush.msra.mxu0 0.0
    %1296 = vmatpush.msra.mxu0 0.0
    %1297 = vmatpush.msra.mxu0 0.0
    %1298 = vmatpush.msra.mxu0 0.0
    %1299 = vmatpush.msra.mxu0 %v1277
    %1300 = vmatmul.f32.gmra.mxu0 %v1279
    %v1301 = vpop.f32.mrf.mxu0
    %v1302 = vadd.f32 0.0, %v1301
    %1303 = vmatmul.f32.gmra.mxu0 %v1282
    %v1304 = vpop.f32.mrf.mxu0
    %v1305 = vadd.f32 0.0, %v1304
    %1306 = vdwg.mxu0
    %v1308 = vsel %vm128, %v1116, 0
    %v1311 = vsel %vm128, %v1142, 0
    %1313 = vmatpush.msra.mxu0 0.0
    %1314 = vmatpush.msra.mxu0 0.0
    %1315 = vmatpush.msra.mxu0 0.0
    %1316 = vmatpush.msra.mxu0 0.0
    %1317 = vmatpush.msra.mxu0 0.0
    %1318 = vmatpush.msra.mxu0 0.0
    %1319 = vmatpush.msra.mxu0 0.0
    %1320 = vmatpush.msra.mxu0 0.0
    %1321 = vmatpush.msra.mxu0 0.0
    %1322 = vmatpush.msra.mxu0 0.0
    %1323 = vmatpush.msra.mxu0 0.0
    %1324 = vmatpush.msra.mxu0 0.0
    %1325 = vmatpush.msra.mxu0 0.0
    %1326 = vmatpush.msra.mxu0 0.0
    %1327 = vmatpush.msra.mxu0 0.0
    %1328 = vmatpush.msra.mxu0 %v1145
    %1329 = vmatmul.f32.gmra.mxu0 %v1308
    %v1330 = vpop.f32.mrf.mxu0
    %v1331 = vadd.f32 %v1302, %v1330
    %1332 = vmatmul.f32.gmra.mxu0 %v1311
    %v1333 = vpop.f32.mrf.mxu0
    %v1334 = vadd.f32 %v1305, %v1333
    %1335 = vdwg.mxu0
    %1336 = vrot.lane.b32.xlu0 %v1011, 112
    %v1337 = vpop.permute.xlu0 %1336
    %1338 = vrot.lane.b32.xlu0 %v1011, 80
    %v1339 = vpop.permute.xlu0 %1338
    %v1340 = vsel %vm128, %v1337, 0
    %v1342 = vsel %vm128, %v1339, 0
    %1344 = vmatpush.xpose.msra.mxu0 0.0
    %1345 = vmatpush.xpose.msra.mxu0 0.0
    %1346 = vmatpush.xpose.msra.mxu0 0.0
    %1347 = vmatpush.xpose.msra.mxu0 0.0
    %1348 = vmatpush.xpose.msra.mxu0 0.0
    %1349 = vmatpush.xpose.msra.mxu0 0.0
    %1350 = vmatpush.xpose.msra.mxu0 0.0
    %1351 = vmatpush.xpose.msra.mxu0 0.0
    %1352 = vmatpush.xpose.msra.mxu0 0.0
    %1353 = vmatpush.xpose.msra.mxu0 0.0
    %1354 = vmatpush.xpose.msra.mxu0 0.0
    %1355 = vmatpush.xpose.msra.mxu0 0.0
    %1356 = vmatpush.xpose.msra.mxu0 0.0
    %1357 = vmatpush.xpose.msra.mxu0 0.0
    %1358 = vmatpush.xpose.msra.mxu0 0.0
    %1359 = vmatpush.xpose.msra.mxu0 %v1342
    %1360 = vmatmul.f32.gmra.mxu0 %v1340
    %v1361 = vpop.f32.mrf.mxu0
    %v1362 = vadd.f32 %v90, %v1361
    %1363 = vdwg.mxu0
    %1364 = vrot.lane.b32.xlu0 %v1014, 112
    %v1365 = vpop.permute.xlu0 %1364
    %1366 = vrot.lane.b32.xlu0 %v1014, 80
    %v1367 = vpop.permute.xlu0 %1366
    %v1368 = vsel %vm128, %v1365, 0
    %v1370 = vsel %vm128, %v1367, 0
    %1372 = vmatpush.xpose.msra.mxu0 0.0
    %1373 = vmatpush.xpose.msra.mxu0 0.0
    %1374 = vmatpush.xpose.msra.mxu0 0.0
    %1375 = vmatpush.xpose.msra.mxu0 0.0
    %1376 = vmatpush.xpose.msra.mxu0 0.0
    %1377 = vmatpush.xpose.msra.mxu0 0.0
    %1378 = vmatpush.xpose.msra.mxu0 0.0
    %1379 = vmatpush.xpose.msra.mxu0 0.0
    %1380 = vmatpush.xpose.msra.mxu0 0.0
    %1381 = vmatpush.xpose.msra.mxu0 0.0
    %1382 = vmatpush.xpose.msra.mxu0 0.0
    %1383 = vmatpush.xpose.msra.mxu0 0.0
    %1384 = vmatpush.xpose.msra.mxu0 0.0
    %1385 = vmatpush.xpose.msra.mxu0 0.0
    %1386 = vmatpush.xpose.msra.mxu0 0.0
    %1387 = vmatpush.xpose.msra.mxu0 %v1370
    %1388 = vmatmul.f32.gmra.mxu0 %v1368
    %v1389 = vpop.f32.mrf.mxu0
    %v1390 = vadd.f32 %v90, %v1389
    %1391 = vdwg.mxu0
    %v1392 = vsel %vm128, %v1362, -inf
    %1393 = vmax.xlane.f32.xlu0 %v1392
    %v1394 = vpop.xlane.xlu0 %1393
    %v1395 = vsel %vm128, %v1390, -inf
    %1396 = vmax.xlane.f32.xlu0 %v1395
    %v1397 = vpop.xlane.xlu0 %1396
    %v1398 = vsub.f32 %v1362, %v1394
    %v1399 = vsub.f32 %v1390, %v1397
    %v1400 = vmul.f32 %v1398, 1.442695
    %v1401 = vpow.pop %v1400
    %v1402 = vmul.f32 %v1399, 1.442695
    %v1403 = vpow.pop %v1402
    %v1404 = vsel %vm128, %v1401, 0.0
    %1405 = vadd.xlane.f32.xlu0 %v1404
    %v1406 = vpop.xlane.xlu0 %1405
    %v1407 = vsel %vm128, %v1403, 0.0
    %1408 = vadd.xlane.f32.xlu0 %v1407
    %v1409 = vpop.xlane.xlu0 %1408
    %v1410 = vrcp.pop %v1406
    %v1411 = vrcp.pop %v1409
    %v1412 = vmul.f32 %v1401, %v1410
    %v1413 = vmul.f32 %v1403, %v1411
    %1414 = vrot.lane.b32.xlu0 %v1011, 48
    %v1415 = vpop.permute.xlu0 %1414
    %v1418 = vsel %vm128, %v1412, 0
    %1420 = vmatpush.msra.mxu0 0.0
    %1421 = vmatpush.msra.mxu0 0.0
    %1422 = vmatpush.msra.mxu0 0.0
    %1423 = vmatpush.msra.mxu0 0.0
    %1424 = vmatpush.msra.mxu0 0.0
    %1425 = vmatpush.msra.mxu0 0.0
    %1426 = vmatpush.msra.mxu0 0.0
    %1427 = vmatpush.msra.mxu0 0.0
    %1428 = vmatpush.msra.mxu0 0.0
    %1429 = vmatpush.msra.mxu0 0.0
    %1430 = vmatpush.msra.mxu0 0.0
    %1431 = vmatpush.msra.mxu0 0.0
    %1432 = vmatpush.msra.mxu0 0.0
    %1433 = vmatpush.msra.mxu0 0.0
    %1434 = vmatpush.msra.mxu0 0.0
    %1435 = vmatpush.msra.mxu0 %v1415
    %1436 = vmatmul.f32.gmra.mxu0 %v1418
    %v1437 = vpop.f32.mrf.mxu0
    %v1438 = vadd.f32 0.0, %v1437
    %1439 = vdwg.mxu0
    %1440 = vrot.lane.b32.xlu0 %v1014, 48
    %v1441 = vpop.permute.xlu0 %1440
    %v1444 = vsel %vm128, %v1413, 0
    %1446 = vmatpush.msra.mxu0 0.0
    %1447 = vmatpush.msra.mxu0 0.0
    %1448 = vmatpush.msra.mxu0 0.0
    %1449 = vmatpush.msra.mxu0 0.0
    %1450 = vmatpush.msra.mxu0 0.0
    %1451 = vmatpush.msra.mxu0 0.0
    %1452 = vmatpush.msra.mxu0 0.0
    %1453 = vmatpush.msra.mxu0 0.0
    %1454 = vmatpush.msra.mxu0 0.0
    %1455 = vmatpush.msra.mxu0 0.0
    %1456 = vmatpush.msra.mxu0 0.0
    %1457 = vmatpush.msra.mxu0 0.0
    %1458 = vmatpush.msra.mxu0 0.0
    %1459 = vmatpush.msra.mxu0 0.0
    %1460 = vmatpush.msra.mxu0 0.0
    %1461 = vmatpush.msra.mxu0 %v1441
    %1462 = vmatmul.f32.gmra.mxu0 %v1444
    %v1463 = vpop.f32.mrf.mxu0
    %v1464 = vadd.f32 0.0, %v1463
    %1465 = vdwg.mxu0
    %s1466 = scalar_lea.vmem %s5, 48
    %v1467 = vld [vmem:[%s1466] sm:$0xff]
    %v1469 = vsel %vm128, %v1438, 0
    %v1472 = vsel %vm128, %v1464, 0
    %1474 = vmatpush.msra.mxu0 0.0
    %1475 = vmatpush.msra.mxu0 0.0
    %1476 = vmatpush.msra.mxu0 0.0
    %1477 = vmatpush.msra.mxu0 0.0
    %1478 = vmatpush.msra.mxu0 0.0
    %1479 = vmatpush.msra.mxu0 0.0
    %1480 = vmatpush.msra.mxu0 0.0
    %1481 = vmatpush.msra.mxu0 0.0
    %1482 = vmatpush.msra.mxu0 0.0
    %1483 = vmatpush.msra.mxu0 0.0
    %1484 = vmatpush.msra.mxu0 0.0
    %1485 = vmatpush.msra.mxu0 0.0
    %1486 = vmatpush.msra.mxu0 0.0
    %1487 = vmatpush.msra.mxu0 0.0
    %1488 = vmatpush.msra.mxu0 0.0
    %1489 = vmatpush.msra.mxu0 %v1467
    %1490 = vmatmul.f32.gmra.mxu0 %v1469
    %v1491 = vpop.f32.mrf.mxu0
    %v1492 = vadd.f32 0.0, %v1491
    %1493 = vmatmul.f32.gmra.mxu0 %v1472
    %v1494 = vpop.f32.mrf.mxu0
    %v1495 = vadd.f32 0.0, %v1494
    %1496 = vdwg.mxu0
    %v1497 = vadd.f32 %v1331, %v1492
    %v1498 = vadd.f32 %v1334, %v1495
    %1499 = vrot.lane.b32.xlu0 %v1011, 104
    %v1500 = vpop.permute.xlu0 %1499
    %1501 = vrot.lane.b32.xlu0 %v1011, 72
    %v1502 = vpop.permute.xlu0 %1501
    %v1503 = vsel %vm128, %v1500, 0
    %v1505 = vsel %vm128, %v1502, 0
    %1507 = vmatpush.xpose.msra.mxu0 0.0
    %1508 = vmatpush.xpose.msra.mxu0 0.0
    %1509 = vmatpush.xpose.msra.mxu0 0.0
    %1510 = vmatpush.xpose.msra.mxu0 0.0
    %1511 = vmatpush.xpose.msra.mxu0 0.0
    %1512 = vmatpush.xpose.msra.mxu0 0.0
    %1513 = vmatpush.xpose.msra.mxu0 0.0
    %1514 = vmatpush.xpose.msra.mxu0 0.0
    %1515 = vmatpush.xpose.msra.mxu0 0.0
    %1516 = vmatpush.xpose.msra.mxu0 0.0
    %1517 = vmatpush.xpose.msra.mxu0 0.0
    %1518 = vmatpush.xpose.msra.mxu0 0.0
    %1519 = vmatpush.xpose.msra.mxu0 0.0
    %1520 = vmatpush.xpose.msra.mxu0 0.0
    %1521 = vmatpush.xpose.msra.mxu0 0.0
    %1522 = vmatpush.xpose.msra.mxu0 %v1505
    %1523 = vmatmul.f32.gmra.mxu0 %v1503
    %v1524 = vpop.f32.mrf.mxu0
    %v1525 = vadd.f32 %v90, %v1524
    %1526 = vdwg.mxu0
    %1527 = vrot.lane.b32.xlu0 %v1014, 104
    %v1528 = vpop.permute.xlu0 %1527
    %1529 = vrot.lane.b32.xlu0 %v1014, 72
    %v1530 = vpop.permute.xlu0 %1529
    %v1531 = vsel %vm128, %v1528, 0
    %v1533 = vsel %vm128, %v1530, 0
    %1535 = vmatpush.xpose.msra.mxu0 0.0
    %1536 = vmatpush.xpose.msra.mxu0 0.0
    %1537 = vmatpush.xpose.msra.mxu0 0.0
    %1538 = vmatpush.xpose.msra.mxu0 0.0
    %1539 = vmatpush.xpose.msra.mxu0 0.0
    %1540 = vmatpush.xpose.msra.mxu0 0.0
    %1541 = vmatpush.xpose.msra.mxu0 0.0
    %1542 = vmatpush.xpose.msra.mxu0 0.0
    %1543 = vmatpush.xpose.msra.mxu0 0.0
    %1544 = vmatpush.xpose.msra.mxu0 0.0
    %1545 = vmatpush.xpose.msra.mxu0 0.0
    %1546 = vmatpush.xpose.msra.mxu0 0.0
    %1547 = vmatpush.xpose.msra.mxu0 0.0
    %1548 = vmatpush.xpose.msra.mxu0 0.0
    %1549 = vmatpush.xpose.msra.mxu0 0.0
    %1550 = vmatpush.xpose.msra.mxu0 %v1533
    %1551 = vmatmul.f32.gmra.mxu0 %v1531
    %v1552 = vpop.f32.mrf.mxu0
    %v1553 = vadd.f32 %v90, %v1552
    %1554 = vdwg.mxu0
    %v1555 = vsel %vm128, %v1525, -inf
    %1556 = vmax.xlane.f32.xlu0 %v1555
    %v1557 = vpop.xlane.xlu0 %1556
    %v1558 = vsel %vm128, %v1553, -inf
    %1559 = vmax.xlane.f32.xlu0 %v1558
    %v1560 = vpop.xlane.xlu0 %1559
    %v1561 = vsub.f32 %v1525, %v1557
    %v1562 = vsub.f32 %v1553, %v1560
    %v1563 = vmul.f32 %v1561, 1.442695
    %v1564 = vpow.pop %v1563
    %v1565 = vmul.f32 %v1562, 1.442695
    %v1566 = vpow.pop %v1565
    %v1567 = vsel %vm128, %v1564, 0.0
    %1568 = vadd.xlane.f32.xlu0 %v1567
    %v1569 = vpop.xlane.xlu0 %1568
    %v1570 = vsel %vm128, %v1566, 0.0
    %1571 = vadd.xlane.f32.xlu0 %v1570
    %v1572 = vpop.xlane.xlu0 %1571
    %v1573 = vrcp.pop %v1569
    %v1574 = vrcp.pop %v1572
    %v1575 = vmul.f32 %v1564, %v1573
    %v1576 = vmul.f32 %v1566, %v1574
    %1577 = vrot.lane.b32.xlu0 %v1011, 40
    %v1578 = vpop.permute.xlu0 %1577
    %v1581 = vsel %vm128, %v1575, 0
    %1583 = vmatpush.msra.mxu0 0.0
    %1584 = vmatpush.msra.mxu0 0.0
    %1585 = vmatpush.msra.mxu0 0.0
    %1586 = vmatpush.msra.mxu0 0.0
    %1587 = vmatpush.msra.mxu0 0.0
    %1588 = vmatpush.msra.mxu0 0.0
    %1589 = vmatpush.msra.mxu0 0.0
    %1590 = vmatpush.msra.mxu0 0.0
    %1591 = vmatpush.msra.mxu0 0.0
    %1592 = vmatpush.msra.mxu0 0.0
    %1593 = vmatpush.msra.mxu0 0.0
    %1594 = vmatpush.msra.mxu0 0.0
    %1595 = vmatpush.msra.mxu0 0.0
    %1596 = vmatpush.msra.mxu0 0.0
    %1597 = vmatpush.msra.mxu0 0.0
    %1598 = vmatpush.msra.mxu0 %v1578
    %1599 = vmatmul.f32.gmra.mxu0 %v1581
    %v1600 = vpop.f32.mrf.mxu0
    %v1601 = vadd.f32 0.0, %v1600
    %1602 = vdwg.mxu0
    %1603 = vrot.lane.b32.xlu0 %v1014, 40
    %v1604 = vpop.permute.xlu0 %1603
    %v1607 = vsel %vm128, %v1576, 0
    %1609 = vmatpush.msra.mxu0 0.0
    %1610 = vmatpush.msra.mxu0 0.0
    %1611 = vmatpush.msra.mxu0 0.0
    %1612 = vmatpush.msra.mxu0 0.0
    %1613 = vmatpush.msra.mxu0 0.0
    %1614 = vmatpush.msra.mxu0 0.0
    %1615 = vmatpush.msra.mxu0 0.0
    %1616 = vmatpush.msra.mxu0 0.0
    %1617 = vmatpush.msra.mxu0 0.0
    %1618 = vmatpush.msra.mxu0 0.0
    %1619 = vmatpush.msra.mxu0 0.0
    %1620 = vmatpush.msra.mxu0 0.0
    %1621 = vmatpush.msra.mxu0 0.0
    %1622 = vmatpush.msra.mxu0 0.0
    %1623 = vmatpush.msra.mxu0 0.0
    %1624 = vmatpush.msra.mxu0 %v1604
    %1625 = vmatmul.f32.gmra.mxu0 %v1607
    %v1626 = vpop.f32.mrf.mxu0
    %v1627 = vadd.f32 0.0, %v1626
    %1628 = vdwg.mxu0
    %s1629 = scalar_lea.vmem %s5, 56
    %v1630 = vld [vmem:[%s1629] sm:$0xff]
    %v1632 = vsel %vm128, %v1601, 0
    %v1635 = vsel %vm128, %v1627, 0
    %1637 = vmatpush.msra.mxu0 0.0
    %1638 = vmatpush.msra.mxu0 0.0
    %1639 = vmatpush.msra.mxu0 0.0
    %1640 = vmatpush.msra.mxu0 0.0
    %1641 = vmatpush.msra.mxu0 0.0
    %1642 = vmatpush.msra.mxu0 0.0
    %1643 = vmatpush.msra.mxu0 0.0
    %1644 = vmatpush.msra.mxu0 0.0
    %1645 = vmatpush.msra.mxu0 0.0
    %1646 = vmatpush.msra.mxu0 0.0
    %1647 = vmatpush.msra.mxu0 0.0
    %1648 = vmatpush.msra.mxu0 0.0
    %1649 = vmatpush.msra.mxu0 0.0
    %1650 = vmatpush.msra.mxu0 0.0
    %1651 = vmatpush.msra.mxu0 0.0
    %1652 = vmatpush.msra.mxu0 %v1630
    %1653 = vmatmul.f32.gmra.mxu0 %v1632
    %v1654 = vpop.f32.mrf.mxu0
    %v1655 = vadd.f32 0.0, %v1654
    %1656 = vmatmul.f32.gmra.mxu0 %v1635
    %v1657 = vpop.f32.mrf.mxu0
    %v1658 = vadd.f32 0.0, %v1657
    %1659 = vdwg.mxu0
    %v1660 = vadd.f32 %v1497, %v1655
    %v1661 = vadd.f32 %v1498, %v1658
    %s1662 = scalar_lea.vmem %s6, 1
    %v1663 = vld [vmem:[%s1662] sm:$0x1]
    %v1665 = vperm.slane %v1663, 0
    %v1667 = vadd.f32 %v1660, %v1665
    %v1668 = vadd.f32 %v1661, %v1665
    %v1669 = vadd.f32 %v1667, %v980
    %v1670 = vadd.f32 %v1668, %v981
    %s1671 = scalar_lea.vmem %s7, 1
    %v1672 = vld [vmem:[%s1671] sm:$0x1]
    %s1673 = scalar_lea.vmem %s8, 1
    %v1674 = vld [vmem:[%s1673] sm:$0x1]
    %v1675 = vsel %vm95, %v1669, 0.0
    %1676 = vadd.xlane.f32.xlu0 %v1675
    %v1677 = vpop.xlane.xlu0 %1676
    %v1678 = vsel %vm95, %v1670, 0.0
    %1679 = vadd.xlane.f32.xlu0 %v1678
    %v1680 = vpop.xlane.xlu0 %1679
    %v1681 = vmul.f32 %v1677, %v793
    %v1682 = vmul.f32 %v1680, %v793
    %v1683 = vsub.f32 %v1669, %v1681
    %v1684 = vsub.f32 %v1670, %v1682
    %v1685 = vmul.f32 %v1683, %v1683
    %v1686 = vmul.f32 %v1684, %v1684
    %v1687 = vsel %vm95, %v1685, 0.0
    %1688 = vadd.xlane.f32.xlu0 %v1687
    %v1689 = vpop.xlane.xlu0 %1688
    %v1690 = vsel %vm95, %v1686, 0.0
    %1691 = vadd.xlane.f32.xlu0 %v1690
    %v1692 = vpop.xlane.xlu0 %1691
    %v1693 = vmul.f32 %v1689, %v793
    %v1694 = vmul.f32 %v1692, %v793
    %v1695 = vadd.f32 %v1693, 1e-05
    %v1696 = vadd.f32 %v1694, 1e-05
    %v1697 = vrsqrt.pop %v1695
    %v1698 = vmul.f32 %v1697, %v1695
    %v1699 = vmul.f32 %v1698, %v1697
    %v1700 = vmul.f32 0.5, %v1699
    %v1701 = vsub.f32 1.5, %v1700
    %v1702 = vmul.f32 %v1697, %v1701
    %vm1703 = vweird.f32 %v1695
    %vm1704 = vweird.f32 %v1697
    %vm1705 = vmor %vm1703, %vm1704
    %v1706 = vsel %vm1705, %v1697, %v1702
    %v1707 = vrsqrt.pop %v1696
    %v1708 = vmul.f32 %v1707, %v1696
    %v1709 = vmul.f32 %v1708, %v1707
    %v1710 = vmul.f32 0.5, %v1709
    %v1711 = vsub.f32 1.5, %v1710
    %v1712 = vmul.f32 %v1707, %v1711
    %vm1713 = vweird.f32 %v1696
    %vm1714 = vweird.f32 %v1707
    %vm1715 = vmor %vm1713, %vm1714
    %v1716 = vsel %vm1715, %v1707, %v1712
    %v1717 = vmul.f32 %v1683, %v1706
    %v1718 = vmul.f32 %v1684, %v1716
    %v1720 = vperm.slane %v1672, 0
    %v1722 = vmul.f32 %v1717, %v1720
    %v1723 = vmul.f32 %v1718, %v1720
    %v1725 = vperm.slane %v1674, 0
    %v1727 = vadd.f32 %v1722, %v1725
    %v1728 = vadd.f32 %v1723, %v1725
    %s1729 = scalar_lea.vmem %s9, 32
    %v1730 = vld [vmem:[%s1729] sm:$0xff]
    %v1731 = vld [vmem:[%s1729 + $0x8] sm:$0xff]
    %v1732 = vld [vmem:[%s1729 + $0x10] sm:$0xff]
    %v1733 = vld [vmem:[%s1729 + $0x18] sm:$0xff]
    %s1734 = scalar_lea.vmem %s10, 1
    %v1735 = vld [vmem:[%s1734] sm:$0x1]
    %v1737 = vperm.slane %v1735, 0
    %v1740 = vsel %vm95, %v1727, 0
    %v1743 = vsel %vm95, %v1728, 0
    %1745 = vmatpush.msra.mxu0 0.0
    %1746 = vmatpush.msra.mxu0 0.0
    %1747 = vmatpush.msra.mxu0 0.0
    %1748 = vmatpush.msra.mxu0 0.0
    %1749 = vmatpush.msra.mxu0 0.0
    %1750 = vmatpush.msra.mxu0 0.0
    %1751 = vmatpush.msra.mxu0 0.0
    %1752 = vmatpush.msra.mxu0 0.0
    %1753 = vmatpush.msra.mxu0 0.0
    %1754 = vmatpush.msra.mxu0 0.0
    %1755 = vmatpush.msra.mxu0 0.0
    %1756 = vmatpush.msra.mxu0 0.0
    %1757 = vmatpush.msra.mxu0 %v1733
    %1758 = vmatpush.msra.mxu0 %v1732
    %1759 = vmatpush.msra.mxu0 %v1731
    %1760 = vmatpush.msra.mxu0 %v1730
    %1761 = vmatmul.f32.gmra.mxu0 %v1740
    %v1762 = vpop.f32.mrf.mxu0
    %v1763 = vadd.f32 %v1737, %v1762
    %1764 = vmatmul.f32.gmra.mxu0 %v1743
    %v1765 = vpop.f32.mrf.mxu0
    %v1766 = vadd.f32 %v1737, %v1765
    %1767 = vdwg.mxu0
    %v1768 = vmax.f32 %v1763, 0.0
    %v1769 = vmax.f32 %v1766, 0.0
    %s1770 = scalar_lea.vmem %s11, 128
    %v1771 = vld [vmem:[%s1770] sm:$0xff]
    %v1772 = vld [vmem:[%s1770 + $0x8] sm:$0xff]
    %v1773 = vld [vmem:[%s1770 + $0x10] sm:$0xff]
    %v1774 = vld [vmem:[%s1770 + $0x18] sm:$0xff]
    %v1775 = vld [vmem:[%s1770 + $0x20] sm:$0xff]
    %v1776 = vld [vmem:[%s1770 + $0x28] sm:$0xff]
    %v1777 = vld [vmem:[%s1770 + $0x30] sm:$0xff]
    %v1778 = vld [vmem:[%s1770 + $0x38] sm:$0xff]
    %v1779 = vld [vmem:[%s1770 + $0x40] sm:$0xff]
    %v1780 = vld [vmem:[%s1770 + $0x48] sm:$0xff]
    %v1781 = vld [vmem:[%s1770 + $0x50] sm:$0xff]
    %v1782 = vld [vmem:[%s1770 + $0x58] sm:$0xff]
    %v1783 = vld [vmem:[%s1770 + $0x60] sm:$0xff]
    %v1784 = vld [vmem:[%s1770 + $0x68] sm:$0xff]
    %v1785 = vld [vmem:[%s1770 + $0x70] sm:$0xff]
    %v1786 = vld [vmem:[%s1770 + $0x78] sm:$0xff]
    %s1787 = scalar_lea.vmem %s12, 1
    %v1788 = vld [vmem:[%s1787] sm:$0x1]
    %v1790 = vperm.slane %v1788, 0
    %1792 = vmatpush.msra.mxu0 %v1786
    %1793 = vmatpush.msra.mxu0 %v1785
    %1794 = vmatpush.msra.mxu0 %v1784
    %1795 = vmatpush.msra.mxu0 %v1783
    %1796 = vmatpush.msra.mxu0 %v1782
    %1797 = vmatpush.msra.mxu0 %v1781
    %1798 = vmatpush.msra.mxu0 %v1780
    %1799 = vmatpush.msra.mxu0 %v1779
    %1800 = vmatpush.msra.mxu0 %v1778
    %1801 = vmatpush.msra.mxu0 %v1777
    %1802 = vmatpush.msra.mxu0 %v1776
    %1803 = vmatpush.msra.mxu0 %v1775
    %1804 = vmatpush.msra.mxu0 %v1774
    %1805 = vmatpush.msra.mxu0 %v1773
    %1806 = vmatpush.msra.mxu0 %v1772
    %1807 = vmatpush.msra.mxu0 %v1771
    %1808 = vmatmul.f32.gmra.mxu0 %v1768
    %v1809 = vpop.f32.mrf.mxu0
    %v1810 = vadd.f32 %v1790, %v1809
    %1811 = vmatmul.f32.gmra.mxu0 %v1769
    %v1812 = vpop.f32.mrf.mxu0
    %v1813 = vadd.f32 %v1790, %v1812
    %1814 = vdwg.mxu0
    %v1815 = vadd.f32 %v1810, %v1727
    %v1816 = vadd.f32 %v1813, %v1728
    %s1817 = scalar_lea.vmem %s13, 1
    %v1818 = vld [vmem:[%s1817] sm:$0x1]
    %s1819 = scalar_lea.vmem %s14, 1
    %v1820 = vld [vmem:[%s1819] sm:$0x1]
    %v1821 = vsel %vm95, %v1815, 0.0
    %1822 = vadd.xlane.f32.xlu0 %v1821
    %v1823 = vpop.xlane.xlu0 %1822
    %v1824 = vsel %vm95, %v1816, 0.0
    %1825 = vadd.xlane.f32.xlu0 %v1824
    %v1826 = vpop.xlane.xlu0 %1825
    %v1827 = vmul.f32 %v1823, %v793
    %v1828 = vmul.f32 %v1826, %v793
    %v1829 = vsub.f32 %v1815, %v1827
    %v1830 = vsub.f32 %v1816, %v1828
    %v1831 = vmul.f32 %v1829, %v1829
    %v1832 = vmul.f32 %v1830, %v1830
    %v1833 = vsel %vm95, %v1831, 0.0
    %1834 = vadd.xlane.f32.xlu0 %v1833
    %v1835 = vpop.xlane.xlu0 %1834
    %v1836 = vsel %vm95, %v1832, 0.0
    %1837 = vadd.xlane.f32.xlu0 %v1836
    %v1838 = vpop.xlane.xlu0 %1837
    %v1839 = vmul.f32 %v1835, %v793
    %v1840 = vmul.f32 %v1838, %v793
    %v1841 = vadd.f32 %v1839, 1e-05
    %v1842 = vadd.f32 %v1840, 1e-05
    %v1843 = vrsqrt.pop %v1841
    %v1844 = vmul.f32 %v1843, %v1841
    %v1845 = vmul.f32 %v1844, %v1843
    %v1846 = vmul.f32 0.5, %v1845
    %v1847 = vsub.f32 1.5, %v1846
    %v1848 = vmul.f32 %v1843, %v1847
    %vm1849 = vweird.f32 %v1841
    %vm1850 = vweird.f32 %v1843
    %vm1851 = vmor %vm1849, %vm1850
    %v1852 = vsel %vm1851, %v1843, %v1848
    %v1853 = vrsqrt.pop %v1842
    %v1854 = vmul.f32 %v1853, %v1842
    %v1855 = vmul.f32 %v1854, %v1853
    %v1856 = vmul.f32 0.5, %v1855
    %v1857 = vsub.f32 1.5, %v1856
    %v1858 = vmul.f32 %v1853, %v1857
    %vm1859 = vweird.f32 %v1842
    %vm1860 = vweird.f32 %v1853
    %vm1861 = vmor %vm1859, %vm1860
    %v1862 = vsel %vm1861, %v1853, %v1858
    %v1863 = vmul.f32 %v1829, %v1852
    %v1864 = vmul.f32 %v1830, %v1862
    %v1866 = vperm.slane %v1818, 0
    %v1868 = vmul.f32 %v1863, %v1866
    %v1869 = vmul.f32 %v1864, %v1866
    %v1871 = vperm.slane %v1820, 0
    %v1873 = vadd.f32 %v1868, %v1871
    %v1874 = vadd.f32 %v1869, %v1871
    %s1875 = scalar_lea.vmem %s4, 64
    %v1876 = vld [vmem:[%s1875] sm:$0xff]
    %v1877 = vld [vmem:[%s1875 + $0x8] sm:$0xff]
    %v1878 = vld [vmem:[%s1875 + $0x10] sm:$0xff]
    %v1879 = vld [vmem:[%s1875 + $0x18] sm:$0xff]
    %v1881 = vsel %vm95, %v1873, 0
    %v1884 = vsel %vm95, %v1874, 0
    %1886 = vmatpush.msra.mxu0 0.0
    %1887 = vmatpush.msra.mxu0 0.0
    %1888 = vmatpush.msra.mxu0 0.0
    %1889 = vmatpush.msra.mxu0 0.0
    %1890 = vmatpush.msra.mxu0 0.0
    %1891 = vmatpush.msra.mxu0 0.0
    %1892 = vmatpush.msra.mxu0 0.0
    %1893 = vmatpush.msra.mxu0 0.0
    %1894 = vmatpush.msra.mxu0 0.0
    %1895 = vmatpush.msra.mxu0 0.0
    %1896 = vmatpush.msra.mxu0 0.0
    %1897 = vmatpush.msra.mxu0 0.0
    %1898 = vmatpush.msra.mxu0 %v1879
    %1899 = vmatpush.msra.mxu0 %v1878
    %1900 = vmatpush.msra.mxu0 %v1877
    %1901 = vmatpush.msra.mxu0 %v1876
    %1902 = vmatmul.f32.gmra.mxu0 %v1881
    %v1903 = vpop.f32.mrf.mxu0
    %v1904 = vadd.f32 0.0, %v1903
    %1905 = vmatmul.f32.gmra.mxu0 %v1884
    %v1906 = vpop.f32.mrf.mxu0
    %v1907 = vadd.f32 0.0, %v1906
    %1908 = vdwg.mxu0
    %1910 = vrot.lane.b32.xlu0 %v1904, 96
    %v1911 = vpop.permute.xlu0 %1910
    %v1912 = vsel %vm128, %v1904, 0
    %v1914 = vsel %vm128, %v1911, 0
    %1916 = vmatpush.xpose.msra.mxu0 0.0
    %1917 = vmatpush.xpose.msra.mxu0 0.0
    %1918 = vmatpush.xpose.msra.mxu0 0.0
    %1919 = vmatpush.xpose.msra.mxu0 0.0
    %1920 = vmatpush.xpose.msra.mxu0 0.0
    %1921 = vmatpush.xpose.msra.mxu0 0.0
    %1922 = vmatpush.xpose.msra.mxu0 0.0
    %1923 = vmatpush.xpose.msra.mxu0 0.0
    %1924 = vmatpush.xpose.msra.mxu0 0.0
    %1925 = vmatpush.xpose.msra.mxu0 0.0
    %1926 = vmatpush.xpose.msra.mxu0 0.0
    %1927 = vmatpush.xpose.msra.mxu0 0.0
    %1928 = vmatpush.xpose.msra.mxu0 0.0
    %1929 = vmatpush.xpose.msra.mxu0 0.0
    %1930 = vmatpush.xpose.msra.mxu0 0.0
    %1931 = vmatpush.xpose.msra.mxu0 %v1914
    %1932 = vmatmul.f32.gmra.mxu0 %v1912
    %v1933 = vpop.f32.mrf.mxu0
    %v1934 = vadd.f32 %v90, %v1933
    %1935 = vdwg.mxu0
    %1937 = vrot.lane.b32.xlu0 %v1907, 96
    %v1938 = vpop.permute.xlu0 %1937
    %v1939 = vsel %vm128, %v1907, 0
    %v1941 = vsel %vm128, %v1938, 0
    %1943 = vmatpush.xpose.msra.mxu0 0.0
    %1944 = vmatpush.xpose.msra.mxu0 0.0
    %1945 = vmatpush.xpose.msra.mxu0 0.0
    %1946 = vmatpush.xpose.msra.mxu0 0.0
    %1947 = vmatpush.xpose.msra.mxu0 0.0
    %1948 = vmatpush.xpose.msra.mxu0 0.0
    %1949 = vmatpush.xpose.msra.mxu0 0.0
    %1950 = vmatpush.xpose.msra.mxu0 0.0
    %1951 = vmatpush.xpose.msra.mxu0 0.0
    %1952 = vmatpush.xpose.msra.mxu0 0.0
    %1953 = vmatpush.xpose.msra.mxu0 0.0
    %1954 = vmatpush.xpose.msra.mxu0 0.0
    %1955 = vmatpush.xpose.msra.mxu0 0.0
    %1956 = vmatpush.xpose.msra.mxu0 0.0
    %1957 = vmatpush.xpose.msra.mxu0 0.0
    %1958 = vmatpush.xpose.msra.mxu0 %v1941
    %1959 = vmatmul.f32.gmra.mxu0 %v1939
    %v1960 = vpop.f32.mrf.mxu0
    %v1961 = vadd.f32 %v90, %v1960
    %1962 = vdwg.mxu0
    %v1963 = vsel %vm128, %v1934, -inf
    %1964 = vmax.xlane.f32.xlu0 %v1963
    %v1965 = vpop.xlane.xlu0 %1964
    %v1966 = vsel %vm128, %v1961, -inf
    %1967 = vmax.xlane.f32.xlu0 %v1966
    %v1968 = vpop.xlane.xlu0 %1967
    %v1969 = vsub.f32 %v1934, %v1965
    %v1970 = vsub.f32 %v1961, %v1968
    %v1971 = vmul.f32 %v1969, 1.442695
    %v1972 = vpow.pop %v1971
    %v1973 = vmul.f32 %v1970, 1.442695
    %v1974 = vpow.pop %v1973
    %v1975 = vsel %vm128, %v1972, 0.0
    %1976 = vadd.xlane.f32.xlu0 %v1975
    %v1977 = vpop.xlane.xlu0 %1976
    %v1978 = vsel %vm128, %v1974, 0.0
    %1979 = vadd.xlane.f32.xlu0 %v1978
    %v1980 = vpop.xlane.xlu0 %1979
    %v1981 = vrcp.pop %v1977
    %v1982 = vrcp.pop %v1980
    %v1983 = vmul.f32 %v1972, %v1981
    %v1984 = vmul.f32 %v1974, %v1982
    %1985 = vrot.lane.b32.xlu0 %v1904, 64
    %v1986 = vpop.permute.xlu0 %1985
    %v1989 = vsel %vm128, %v1983, 0
    %1991 = vmatpush.msra.mxu0 0.0
    %1992 = vmatpush.msra.mxu0 0.0
    %1993 = vmatpush.msra.mxu0 0.0
    %1994 = vmatpush.msra.mxu0 0.0
    %1995 = vmatpush.msra.mxu0 0.0
    %1996 = vmatpush.msra.mxu0 0.0
    %1997 = vmatpush.msra.mxu0 0.0
    %1998 = vmatpush.msra.mxu0 0.0
    %1999 = vmatpush.msra.mxu0 0.0
    %2000 = vmatpush.msra.mxu0 0.0
    %2001 = vmatpush.msra.mxu0 0.0
    %2002 = vmatpush.msra.mxu0 0.0
    %2003 = vmatpush.msra.mxu0 0.0
    %2004 = vmatpush.msra.mxu0 0.0
    %2005 = vmatpush.msra.mxu0 0.0
    %2006 = vmatpush.msra.mxu0 %v1986
    %2007 = vmatmul.f32.gmra.mxu0 %v1989
    %v2008 = vpop.f32.mrf.mxu0
    %v2009 = vadd.f32 0.0, %v2008
    %2010 = vdwg.mxu0
    %2011 = vrot.lane.b32.xlu0 %v1907, 64
    %v2012 = vpop.permute.xlu0 %2011
    %v2015 = vsel %vm128, %v1984, 0
    %2017 = vmatpush.msra.mxu0 0.0
    %2018 = vmatpush.msra.mxu0 0.0
    %2019 = vmatpush.msra.mxu0 0.0
    %2020 = vmatpush.msra.mxu0 0.0
    %2021 = vmatpush.msra.mxu0 0.0
    %2022 = vmatpush.msra.mxu0 0.0
    %2023 = vmatpush.msra.mxu0 0.0
    %2024 = vmatpush.msra.mxu0 0.0
    %2025 = vmatpush.msra.mxu0 0.0
    %2026 = vmatpush.msra.mxu0 0.0
    %2027 = vmatpush.msra.mxu0 0.0
    %2028 = vmatpush.msra.mxu0 0.0
    %2029 = vmatpush.msra.mxu0 0.0
    %2030 = vmatpush.msra.mxu0 0.0
    %2031 = vmatpush.msra.mxu0 0.0
    %2032 = vmatpush.msra.mxu0 %v2012
    %2033 = vmatmul.f32.gmra.mxu0 %v2015
    %v2034 = vpop.f32.mrf.mxu0
    %v2035 = vadd.f32 0.0, %v2034
    %2036 = vdwg.mxu0
    %s2037 = scalar_lea.vmem %s5, 64
    %v2038 = vld [vmem:[%s2037] sm:$0xff]
    %2039 = vrot.lane.b32.xlu0 %v1904, 120
    %v2040 = vpop.permute.xlu0 %2039
    %2041 = vrot.lane.b32.xlu0 %v1904, 88
    %v2042 = vpop.permute.xlu0 %2041
    %v2043 = vsel %vm128, %v2040, 0
    %v2045 = vsel %vm128, %v2042, 0
    %2047 = vmatpush.xpose.msra.mxu0 0.0
    %2048 = vmatpush.xpose.msra.mxu0 0.0
    %2049 = vmatpush.xpose.msra.mxu0 0.0
    %2050 = vmatpush.xpose.msra.mxu0 0.0
    %2051 = vmatpush.xpose.msra.mxu0 0.0
    %2052 = vmatpush.xpose.msra.mxu0 0.0
    %2053 = vmatpush.xpose.msra.mxu0 0.0
    %2054 = vmatpush.xpose.msra.mxu0 0.0
    %2055 = vmatpush.xpose.msra.mxu0 0.0
    %2056 = vmatpush.xpose.msra.mxu0 0.0
    %2057 = vmatpush.xpose.msra.mxu0 0.0
    %2058 = vmatpush.xpose.msra.mxu0 0.0
    %2059 = vmatpush.xpose.msra.mxu0 0.0
    %2060 = vmatpush.xpose.msra.mxu0 0.0
    %2061 = vmatpush.xpose.msra.mxu0 0.0
    %2062 = vmatpush.xpose.msra.mxu0 %v2045
    %2063 = vmatmul.f32.gmra.mxu0 %v2043
    %v2064 = vpop.f32.mrf.mxu0
    %v2065 = vadd.f32 %v90, %v2064
    %2066 = vdwg.mxu0
    %2067 = vrot.lane.b32.xlu0 %v1907, 120
    %v2068 = vpop.permute.xlu0 %2067
    %2069 = vrot.lane.b32.xlu0 %v1907, 88
    %v2070 = vpop.permute.xlu0 %2069
    %v2071 = vsel %vm128, %v2068, 0
    %v2073 = vsel %vm128, %v2070, 0
    %2075 = vmatpush.xpose.msra.mxu0 0.0
    %2076 = vmatpush.xpose.msra.mxu0 0.0
    %2077 = vmatpush.xpose.msra.mxu0 0.0
    %2078 = vmatpush.xpose.msra.mxu0 0.0
    %2079 = vmatpush.xpose.msra.mxu0 0.0
    %2080 = vmatpush.xpose.msra.mxu0 0.0
    %2081 = vmatpush.xpose.msra.mxu0 0.0
    %2082 = vmatpush.xpose.msra.mxu0 0.0
    %2083 = vmatpush.xpose.msra.mxu0 0.0
    %2084 = vmatpush.xpose.msra.mxu0 0.0
    %2085 = vmatpush.xpose.msra.mxu0 0.0
    %2086 = vmatpush.xpose.msra.mxu0 0.0
    %2087 = vmatpush.xpose.msra.mxu0 0.0
    %2088 = vmatpush.xpose.msra.mxu0 0.0
    %2089 = vmatpush.xpose.msra.mxu0 0.0
    %2090 = vmatpush.xpose.msra.mxu0 %v2073
    %2091 = vmatmul.f32.gmra.mxu0 %v2071
    %v2092 = vpop.f32.mrf.mxu0
    %v2093 = vadd.f32 %v90, %v2092
    %2094 = vdwg.mxu0
    %v2095 = vsel %vm128, %v2065, -inf
    %2096 = vmax.xlane.f32.xlu0 %v2095
    %v2097 = vpop.xlane.xlu0 %2096
    %v2098 = vsel %vm128, %v2093, -inf
    %2099 = vmax.xlane.f32.xlu0 %v2098
    %v2100 = vpop.xlane.xlu0 %2099
    %v2101 = vsub.f32 %v2065, %v2097
    %v2102 = vsub.f32 %v2093, %v2100
    %v2103 = vmul.f32 %v2101, 1.442695
    %v2104 = vpow.pop %v2103
    %v2105 = vmul.f32 %v2102, 1.442695
    %v2106 = vpow.pop %v2105
    %v2107 = vsel %vm128, %v2104, 0.0
    %2108 = vadd.xlane.f32.xlu0 %v2107
    %v2109 = vpop.xlane.xlu0 %2108
    %v2110 = vsel %vm128, %v2106, 0.0
    %2111 = vadd.xlane.f32.xlu0 %v2110
    %v2112 = vpop.xlane.xlu0 %2111
    %v2113 = vrcp.pop %v2109
    %v2114 = vrcp.pop %v2112
    %v2115 = vmul.f32 %v2104, %v2113
    %v2116 = vmul.f32 %v2106, %v2114
    %2117 = vrot.lane.b32.xlu0 %v1904, 56
    %v2118 = vpop.permute.xlu0 %2117
    %v2121 = vsel %vm128, %v2115, 0
    %2123 = vmatpush.msra.mxu0 0.0
    %2124 = vmatpush.msra.mxu0 0.0
    %2125 = vmatpush.msra.mxu0 0.0
    %2126 = vmatpush.msra.mxu0 0.0
    %2127 = vmatpush.msra.mxu0 0.0
    %2128 = vmatpush.msra.mxu0 0.0
    %2129 = vmatpush.msra.mxu0 0.0
    %2130 = vmatpush.msra.mxu0 0.0
    %2131 = vmatpush.msra.mxu0 0.0
    %2132 = vmatpush.msra.mxu0 0.0
    %2133 = vmatpush.msra.mxu0 0.0
    %2134 = vmatpush.msra.mxu0 0.0
    %2135 = vmatpush.msra.mxu0 0.0
    %2136 = vmatpush.msra.mxu0 0.0
    %2137 = vmatpush.msra.mxu0 0.0
    %2138 = vmatpush.msra.mxu0 %v2118
    %2139 = vmatmul.f32.gmra.mxu0 %v2121
    %v2140 = vpop.f32.mrf.mxu0
    %v2141 = vadd.f32 0.0, %v2140
    %2142 = vdwg.mxu0
    %2143 = vrot.lane.b32.xlu0 %v1907, 56
    %v2144 = vpop.permute.xlu0 %2143
    %v2147 = vsel %vm128, %v2116, 0
    %2149 = vmatpush.msra.mxu0 0.0
    %2150 = vmatpush.msra.mxu0 0.0
    %2151 = vmatpush.msra.mxu0 0.0
    %2152 = vmatpush.msra.mxu0 0.0
    %2153 = vmatpush.msra.mxu0 0.0
    %2154 = vmatpush.msra.mxu0 0.0
    %2155 = vmatpush.msra.mxu0 0.0
    %2156 = vmatpush.msra.mxu0 0.0
    %2157 = vmatpush.msra.mxu0 0.0
    %2158 = vmatpush.msra.mxu0 0.0
    %2159 = vmatpush.msra.mxu0 0.0
    %2160 = vmatpush.msra.mxu0 0.0
    %2161 = vmatpush.msra.mxu0 0.0
    %2162 = vmatpush.msra.mxu0 0.0
    %2163 = vmatpush.msra.mxu0 0.0
    %2164 = vmatpush.msra.mxu0 %v2144
    %2165 = vmatmul.f32.gmra.mxu0 %v2147
    %v2166 = vpop.f32.mrf.mxu0
    %v2167 = vadd.f32 0.0, %v2166
    %2168 = vdwg.mxu0
    %s2169 = scalar_lea.vmem %s5, 72
    %v2170 = vld [vmem:[%s2169] sm:$0xff]
    %v2172 = vsel %vm128, %v2141, 0
    %v2175 = vsel %vm128, %v2167, 0
    %2177 = vmatpush.msra.mxu0 0.0
    %2178 = vmatpush.msra.mxu0 0.0
    %2179 = vmatpush.msra.mxu0 0.0
    %2180 = vmatpush.msra.mxu0 0.0
    %2181 = vmatpush.msra.mxu0 0.0
    %2182 = vmatpush.msra.mxu0 0.0
    %2183 = vmatpush.msra.mxu0 0.0
    %2184 = vmatpush.msra.mxu0 0.0
    %2185 = vmatpush.msra.mxu0 0.0
    %2186 = vmatpush.msra.mxu0 0.0
    %2187 = vmatpush.msra.mxu0 0.0
    %2188 = vmatpush.msra.mxu0 0.0
    %2189 = vmatpush.msra.mxu0 0.0
    %2190 = vmatpush.msra.mxu0 0.0
    %2191 = vmatpush.msra.mxu0 0.0
    %2192 = vmatpush.msra.mxu0 %v2170
    %2193 = vmatmul.f32.gmra.mxu0 %v2172
    %v2194 = vpop.f32.mrf.mxu0
    %v2195 = vadd.f32 0.0, %v2194
    %2196 = vmatmul.f32.gmra.mxu0 %v2175
    %v2197 = vpop.f32.mrf.mxu0
    %v2198 = vadd.f32 0.0, %v2197
    %2199 = vdwg.mxu0
    %v2201 = vsel %vm128, %v2009, 0
    %v2204 = vsel %vm128, %v2035, 0
    %2206 = vmatpush.msra.mxu0 0.0
    %2207 = vmatpush.msra.mxu0 0.0
    %2208 = vmatpush.msra.mxu0 0.0
    %2209 = vmatpush.msra.mxu0 0.0
    %2210 = vmatpush.msra.mxu0 0.0
    %2211 = vmatpush.msra.mxu0 0.0
    %2212 = vmatpush.msra.mxu0 0.0
    %2213 = vmatpush.msra.mxu0 0.0
    %2214 = vmatpush.msra.mxu0 0.0
    %2215 = vmatpush.msra.mxu0 0.0
    %2216 = vmatpush.msra.mxu0 0.0
    %2217 = vmatpush.msra.mxu0 0.0
    %2218 = vmatpush.msra.mxu0 0.0
    %2219 = vmatpush.msra.mxu0 0.0
    %2220 = vmatpush.msra.mxu0 0.0
    %2221 = vmatpush.msra.mxu0 %v2038
    %2222 = vmatmul.f32.gmra.mxu0 %v2201
    %v2223 = vpop.f32.mrf.mxu0
    %v2224 = vadd.f32 %v2195, %v2223
    %2225 = vmatmul.f32.gmra.mxu0 %v2204
    %v2226 = vpop.f32.mrf.mxu0
    %v2227 = vadd.f32 %v2198, %v2226
    %2228 = vdwg.mxu0
    %2229 = vrot.lane.b32.xlu0 %v1904, 112
    %v2230 = vpop.permute.xlu0 %2229
    %2231 = vrot.lane.b32.xlu0 %v1904, 80
    %v2232 = vpop.permute.xlu0 %2231
    %v2233 = vsel %vm128, %v2230, 0
    %v2235 = vsel %vm128, %v2232, 0
    %2237 = vmatpush.xpose.msra.mxu0 0.0
    %2238 = vmatpush.xpose.msra.mxu0 0.0
    %2239 = vmatpush.xpose.msra.mxu0 0.0
    %2240 = vmatpush.xpose.msra.mxu0 0.0
    %2241 = vmatpush.xpose.msra.mxu0 0.0
    %2242 = vmatpush.xpose.msra.mxu0 0.0
    %2243 = vmatpush.xpose.msra.mxu0 0.0
    %2244 = vmatpush.xpose.msra.mxu0 0.0
    %2245 = vmatpush.xpose.msra.mxu0 0.0
    %2246 = vmatpush.xpose.msra.mxu0 0.0
    %2247 = vmatpush.xpose.msra.mxu0 0.0
    %2248 = vmatpush.xpose.msra.mxu0 0.0
    %2249 = vmatpush.xpose.msra.mxu0 0.0
    %2250 = vmatpush.xpose.msra.mxu0 0.0
    %2251 = vmatpush.xpose.msra.mxu0 0.0
    %2252 = vmatpush.xpose.msra.mxu0 %v2235
    %2253 = vmatmul.f32.gmra.mxu0 %v2233
    %v2254 = vpop.f32.mrf.mxu0
    %v2255 = vadd.f32 %v90, %v2254
    %2256 = vdwg.mxu0
    %2257 = vrot.lane.b32.xlu0 %v1907, 112
    %v2258 = vpop.permute.xlu0 %2257
    %2259 = vrot.lane.b32.xlu0 %v1907, 80
    %v2260 = vpop.permute.xlu0 %2259
    %v2261 = vsel %vm128, %v2258, 0
    %v2263 = vsel %vm128, %v2260, 0
    %2265 = vmatpush.xpose.msra.mxu0 0.0
    %2266 = vmatpush.xpose.msra.mxu0 0.0
    %2267 = vmatpush.xpose.msra.mxu0 0.0
    %2268 = vmatpush.xpose.msra.mxu0 0.0
    %2269 = vmatpush.xpose.msra.mxu0 0.0
    %2270 = vmatpush.xpose.msra.mxu0 0.0
    %2271 = vmatpush.xpose.msra.mxu0 0.0
    %2272 = vmatpush.xpose.msra.mxu0 0.0
    %2273 = vmatpush.xpose.msra.mxu0 0.0
    %2274 = vmatpush.xpose.msra.mxu0 0.0
    %2275 = vmatpush.xpose.msra.mxu0 0.0
    %2276 = vmatpush.xpose.msra.mxu0 0.0
    %2277 = vmatpush.xpose.msra.mxu0 0.0
    %2278 = vmatpush.xpose.msra.mxu0 0.0
    %2279 = vmatpush.xpose.msra.mxu0 0.0
    %2280 = vmatpush.xpose.msra.mxu0 %v2263
    %2281 = vmatmul.f32.gmra.mxu0 %v2261
    %v2282 = vpop.f32.mrf.mxu0
    %v2283 = vadd.f32 %v90, %v2282
    %2284 = vdwg.mxu0
    %v2285 = vsel %vm128, %v2255, -inf
    %2286 = vmax.xlane.f32.xlu0 %v2285
    %v2287 = vpop.xlane.xlu0 %2286
    %v2288 = vsel %vm128, %v2283, -inf
    %2289 = vmax.xlane.f32.xlu0 %v2288
    %v2290 = vpop.xlane.xlu0 %2289
    %v2291 = vsub.f32 %v2255, %v2287
    %v2292 = vsub.f32 %v2283, %v2290
    %v2293 = vmul.f32 %v2291, 1.442695
    %v2294 = vpow.pop %v2293
    %v2295 = vmul.f32 %v2292, 1.442695
    %v2296 = vpow.pop %v2295
    %v2297 = vsel %vm128, %v2294, 0.0
    %2298 = vadd.xlane.f32.xlu0 %v2297
    %v2299 = vpop.xlane.xlu0 %2298
    %v2300 = vsel %vm128, %v2296, 0.0
    %2301 = vadd.xlane.f32.xlu0 %v2300
    %v2302 = vpop.xlane.xlu0 %2301
    %v2303 = vrcp.pop %v2299
    %v2304 = vrcp.pop %v2302
    %v2305 = vmul.f32 %v2294, %v2303
    %v2306 = vmul.f32 %v2296, %v2304
    %2307 = vrot.lane.b32.xlu0 %v1904, 48
    %v2308 = vpop.permute.xlu0 %2307
    %v2311 = vsel %vm128, %v2305, 0
    %2313 = vmatpush.msra.mxu0 0.0
    %2314 = vmatpush.msra.mxu0 0.0
    %2315 = vmatpush.msra.mxu0 0.0
    %2316 = vmatpush.msra.mxu0 0.0
    %2317 = vmatpush.msra.mxu0 0.0
    %2318 = vmatpush.msra.mxu0 0.0
    %2319 = vmatpush.msra.mxu0 0.0
    %2320 = vmatpush.msra.mxu0 0.0
    %2321 = vmatpush.msra.mxu0 0.0
    %2322 = vmatpush.msra.mxu0 0.0
    %2323 = vmatpush.msra.mxu0 0.0
    %2324 = vmatpush.msra.mxu0 0.0
    %2325 = vmatpush.msra.mxu0 0.0
    %2326 = vmatpush.msra.mxu0 0.0
    %2327 = vmatpush.msra.mxu0 0.0
    %2328 = vmatpush.msra.mxu0 %v2308
    %2329 = vmatmul.f32.gmra.mxu0 %v2311
    %v2330 = vpop.f32.mrf.mxu0
    %v2331 = vadd.f32 0.0, %v2330
    %2332 = vdwg.mxu0
    %2333 = vrot.lane.b32.xlu0 %v1907, 48
    %v2334 = vpop.permute.xlu0 %2333
    %v2337 = vsel %vm128, %v2306, 0
    %2339 = vmatpush.msra.mxu0 0.0
    %2340 = vmatpush.msra.mxu0 0.0
    %2341 = vmatpush.msra.mxu0 0.0
    %2342 = vmatpush.msra.mxu0 0.0
    %2343 = vmatpush.msra.mxu0 0.0
    %2344 = vmatpush.msra.mxu0 0.0
    %2345 = vmatpush.msra.mxu0 0.0
    %2346 = vmatpush.msra.mxu0 0.0
    %2347 = vmatpush.msra.mxu0 0.0
    %2348 = vmatpush.msra.mxu0 0.0
    %2349 = vmatpush.msra.mxu0 0.0
    %2350 = vmatpush.msra.mxu0 0.0
    %2351 = vmatpush.msra.mxu0 0.0
    %2352 = vmatpush.msra.mxu0 0.0
    %2353 = vmatpush.msra.mxu0 0.0
    %2354 = vmatpush.msra.mxu0 %v2334
    %2355 = vmatmul.f32.gmra.mxu0 %v2337
    %v2356 = vpop.f32.mrf.mxu0
    %v2357 = vadd.f32 0.0, %v2356
    %2358 = vdwg.mxu0
    %s2359 = scalar_lea.vmem %s5, 80
    %v2360 = vld [vmem:[%s2359] sm:$0xff]
    %v2362 = vsel %vm128, %v2331, 0
    %v2365 = vsel %vm128, %v2357, 0
    %2367 = vmatpush.msra.mxu0 0.0
    %2368 = vmatpush.msra.mxu0 0.0
    %2369 = vmatpush.msra.mxu0 0.0
    %2370 = vmatpush.msra.mxu0 0.0
    %2371 = vmatpush.msra.mxu0 0.0
    %2372 = vmatpush.msra.mxu0 0.0
    %2373 = vmatpush.msra.mxu0 0.0
    %2374 = vmatpush.msra.mxu0 0.0
    %2375 = vmatpush.msra.mxu0 0.0
    %2376 = vmatpush.msra.mxu0 0.0
    %2377 = vmatpush.msra.mxu0 0.0
    %2378 = vmatpush.msra.mxu0 0.0
    %2379 = vmatpush.msra.mxu0 0.0
    %2380 = vmatpush.msra.mxu0 0.0
    %2381 = vmatpush.msra.mxu0 0.0
    %2382 = vmatpush.msra.mxu0 %v2360
    %2383 = vmatmul.f32.gmra.mxu0 %v2362
    %v2384 = vpop.f32.mrf.mxu0
    %v2385 = vadd.f32 0.0, %v2384
    %2386 = vmatmul.f32.gmra.mxu0 %v2365
    %v2387 = vpop.f32.mrf.mxu0
    %v2388 = vadd.f32 0.0, %v2387
    %2389 = vdwg.mxu0
    %v2390 = vadd.f32 %v2224, %v2385
    %v2391 = vadd.f32 %v2227, %v2388
    %2392 = vrot.lane.b32.xlu0 %v1904, 104
    %v2393 = vpop.permute.xlu0 %2392
    %2394 = vrot.lane.b32.xlu0 %v1904, 72
    %v2395 = vpop.permute.xlu0 %2394
    %v2396 = vsel %vm128, %v2393, 0
    %v2398 = vsel %vm128, %v2395, 0
    %2400 = vmatpush.xpose.msra.mxu0 0.0
    %2401 = vmatpush.xpose.msra.mxu0 0.0
    %2402 = vmatpush.xpose.msra.mxu0 0.0
    %2403 = vmatpush.xpose.msra.mxu0 0.0
    %2404 = vmatpush.xpose.msra.mxu0 0.0
    %2405 = vmatpush.xpose.msra.mxu0 0.0
    %2406 = vmatpush.xpose.msra.mxu0 0.0
    %2407 = vmatpush.xpose.msra.mxu0 0.0
    %2408 = vmatpush.xpose.msra.mxu0 0.0
    %2409 = vmatpush.xpose.msra.mxu0 0.0
    %2410 = vmatpush.xpose.msra.mxu0 0.0
    %2411 = vmatpush.xpose.msra.mxu0 0.0
    %2412 = vmatpush.xpose.msra.mxu0 0.0
    %2413 = vmatpush.xpose.msra.mxu0 0.0
    %2414 = vmatpush.xpose.msra.mxu0 0.0
    %2415 = vmatpush.xpose.msra.mxu0 %v2398
    %2416 = vmatmul.f32.gmra.mxu0 %v2396
    %v2417 = vpop.f32.mrf.mxu0
    %v2418 = vadd.f32 %v90, %v2417
    %2419 = vdwg.mxu0
    %2420 = vrot.lane.b32.xlu0 %v1907, 104
    %v2421 = vpop.permute.xlu0 %2420
    %2422 = vrot.lane.b32.xlu0 %v1907, 72
    %v2423 = vpop.permute.xlu0 %2422
    %v2424 = vsel %vm128, %v2421, 0
    %v2426 = vsel %vm128, %v2423, 0
    %2428 = vmatpush.xpose.msra.mxu0 0.0
    %2429 = vmatpush.xpose.msra.mxu0 0.0
    %2430 = vmatpush.xpose.msra.mxu0 0.0
    %2431 = vmatpush.xpose.msra.mxu0 0.0
    %2432 = vmatpush.xpose.msra.mxu0 0.0
    %2433 = vmatpush.xpose.msra.mxu0 0.0
    %2434 = vmatpush.xpose.msra.mxu0 0.0
    %2435 = vmatpush.xpose.msra.mxu0 0.0
    %2436 = vmatpush.xpose.msra.mxu0 0.0
    %2437 = vmatpush.xpose.msra.mxu0 0.0
    %2438 = vmatpush.xpose.msra.mxu0 0.0
    %2439 = vmatpush.xpose.msra.mxu0 0.0
    %2440 = vmatpush.xpose.msra.mxu0 0.0
    %2441 = vmatpush.xpose.msra.mxu0 0.0
    %2442 = vmatpush.xpose.msra.mxu0 0.0
    %2443 = vmatpush.xpose.msra.mxu0 %v2426
    %2444 = vmatmul.f32.gmra.mxu0 %v2424
    %v2445 = vpop.f32.mrf.mxu0
    %v2446 = vadd.f32 %v90, %v2445
    %2447 = vdwg.mxu0
    %v2448 = vsel %vm128, %v2418, -inf
    %2449 = vmax.xlane.f32.xlu0 %v2448
    %v2450 = vpop.xlane.xlu0 %2449
    %v2451 = vsel %vm128, %v2446, -inf
    %2452 = vmax.xlane.f32.xlu0 %v2451
    %v2453 = vpop.xlane.xlu0 %2452
    %v2454 = vsub.f32 %v2418, %v2450
    %v2455 = vsub.f32 %v2446, %v2453
    %v2456 = vmul.f32 %v2454, 1.442695
    %v2457 = vpow.pop %v2456
    %v2458 = vmul.f32 %v2455, 1.442695
    %v2459 = vpow.pop %v2458
    %v2460 = vsel %vm128, %v2457, 0.0
    %2461 = vadd.xlane.f32.xlu0 %v2460
    %v2462 = vpop.xlane.xlu0 %2461
    %v2463 = vsel %vm128, %v2459, 0.0
    %2464 = vadd.xlane.f32.xlu0 %v2463
    %v2465 = vpop.xlane.xlu0 %2464
    %v2466 = vrcp.pop %v2462
    %v2467 = vrcp.pop %v2465
    %v2468 = vmul.f32 %v2457, %v2466
    %v2469 = vmul.f32 %v2459, %v2467
    %2470 = vrot.lane.b32.xlu0 %v1904, 40
    %v2471 = vpop.permute.xlu0 %2470
    %v2474 = vsel %vm128, %v2468, 0
    %2476 = vmatpush.msra.mxu0 0.0
    %2477 = vmatpush.msra.mxu0 0.0
    %2478 = vmatpush.msra.mxu0 0.0
    %2479 = vmatpush.msra.mxu0 0.0
    %2480 = vmatpush.msra.mxu0 0.0
    %2481 = vmatpush.msra.mxu0 0.0
    %2482 = vmatpush.msra.mxu0 0.0
    %2483 = vmatpush.msra.mxu0 0.0
    %2484 = vmatpush.msra.mxu0 0.0
    %2485 = vmatpush.msra.mxu0 0.0
    %2486 = vmatpush.msra.mxu0 0.0
    %2487 = vmatpush.msra.mxu0 0.0
    %2488 = vmatpush.msra.mxu0 0.0
    %2489 = vmatpush.msra.mxu0 0.0
    %2490 = vmatpush.msra.mxu0 0.0
    %2491 = vmatpush.msra.mxu0 %v2471
    %2492 = vmatmul.f32.gmra.mxu0 %v2474
    %v2493 = vpop.f32.mrf.mxu0
    %v2494 = vadd.f32 0.0, %v2493
    %2495 = vdwg.mxu0
    %2496 = vrot.lane.b32.xlu0 %v1907, 40
    %v2497 = vpop.permute.xlu0 %2496
    %v2500 = vsel %vm128, %v2469, 0
    %2502 = vmatpush.msra.mxu0 0.0
    %2503 = vmatpush.msra.mxu0 0.0
    %2504 = vmatpush.msra.mxu0 0.0
    %2505 = vmatpush.msra.mxu0 0.0
    %2506 = vmatpush.msra.mxu0 0.0
    %2507 = vmatpush.msra.mxu0 0.0
    %2508 = vmatpush.msra.mxu0 0.0
    %2509 = vmatpush.msra.mxu0 0.0
    %2510 = vmatpush.msra.mxu0 0.0
    %2511 = vmatpush.msra.mxu0 0.0
    %2512 = vmatpush.msra.mxu0 0.0
    %2513 = vmatpush.msra.mxu0 0.0
    %2514 = vmatpush.msra.mxu0 0.0
    %2515 = vmatpush.msra.mxu0 0.0
    %2516 = vmatpush.msra.mxu0 0.0
    %2517 = vmatpush.msra.mxu0 %v2497
    %2518 = vmatmul.f32.gmra.mxu0 %v2500
    %v2519 = vpop.f32.mrf.mxu0
    %v2520 = vadd.f32 0.0, %v2519
    %2521 = vdwg.mxu0
    %s2522 = scalar_lea.vmem %s5, 88
    %v2523 = vld [vmem:[%s2522] sm:$0xff]
    %v2525 = vsel %vm128, %v2494, 0
    %v2528 = vsel %vm128, %v2520, 0
    %2530 = vmatpush.msra.mxu0 0.0
    %2531 = vmatpush.msra.mxu0 0.0
    %2532 = vmatpush.msra.mxu0 0.0
    %2533 = vmatpush.msra.mxu0 0.0
    %2534 = vmatpush.msra.mxu0 0.0
    %2535 = vmatpush.msra.mxu0 0.0
    %2536 = vmatpush.msra.mxu0 0.0
    %2537 = vmatpush.msra.mxu0 0.0
    %2538 = vmatpush.msra.mxu0 0.0
    %2539 = vmatpush.msra.mxu0 0.0
    %2540 = vmatpush.msra.mxu0 0.0
    %2541 = vmatpush.msra.mxu0 0.0
    %2542 = vmatpush.msra.mxu0 0.0
    %2543 = vmatpush.msra.mxu0 0.0
    %2544 = vmatpush.msra.mxu0 0.0
    %2545 = vmatpush.msra.mxu0 %v2523
    %2546 = vmatmul.f32.gmra.mxu0 %v2525
    %v2547 = vpop.f32.mrf.mxu0
    %v2548 = vadd.f32 0.0, %v2547
    %2549 = vmatmul.f32.gmra.mxu0 %v2528
    %v2550 = vpop.f32.mrf.mxu0
    %v2551 = vadd.f32 0.0, %v2550
    %2552 = vdwg.mxu0
    %v2553 = vadd.f32 %v2390, %v2548
    %v2554 = vadd.f32 %v2391, %v2551
    %s2555 = scalar_lea.vmem %s6, 2
    %v2556 = vld [vmem:[%s2555] sm:$0x1]
    %v2558 = vperm.slane %v2556, 0
    %v2560 = vadd.f32 %v2553, %v2558
    %v2561 = vadd.f32 %v2554, %v2558
    %v2562 = vadd.f32 %v2560, %v1873
    %v2563 = vadd.f32 %v2561, %v1874
    %s2564 = scalar_lea.vmem %s7, 2
    %v2565 = vld [vmem:[%s2564] sm:$0x1]
    %s2566 = scalar_lea.vmem %s8, 2
    %v2567 = vld [vmem:[%s2566] sm:$0x1]
    %v2568 = vsel %vm95, %v2562, 0.0
    %2569 = vadd.xlane.f32.xlu0 %v2568
    %v2570 = vpop.xlane.xlu0 %2569
    %v2571 = vsel %vm95, %v2563, 0.0
    %2572 = vadd.xlane.f32.xlu0 %v2571
    %v2573 = vpop.xlane.xlu0 %2572
    %v2574 = vmul.f32 %v2570, %v793
    %v2575 = vmul.f32 %v2573, %v793
    %v2576 = vsub.f32 %v2562, %v2574
    %v2577 = vsub.f32 %v2563, %v2575
    %v2578 = vmul.f32 %v2576, %v2576
    %v2579 = vmul.f32 %v2577, %v2577
    %v2580 = vsel %vm95, %v2578, 0.0
    %2581 = vadd.xlane.f32.xlu0 %v2580
    %v2582 = vpop.xlane.xlu0 %2581
    %v2583 = vsel %vm95, %v2579, 0.0
    %2584 = vadd.xlane.f32.xlu0 %v2583
    %v2585 = vpop.xlane.xlu0 %2584
    %v2586 = vmul.f32 %v2582, %v793
    %v2587 = vmul.f32 %v2585, %v793
    %v2588 = vadd.f32 %v2586, 1e-05
    %v2589 = vadd.f32 %v2587, 1e-05
    %v2590 = vrsqrt.pop %v2588
    %v2591 = vmul.f32 %v2590, %v2588
    %v2592 = vmul.f32 %v2591, %v2590
    %v2593 = vmul.f32 0.5, %v2592
    %v2594 = vsub.f32 1.5, %v2593
    %v2595 = vmul.f32 %v2590, %v2594
    %vm2596 = vweird.f32 %v2588
    %vm2597 = vweird.f32 %v2590
    %vm2598 = vmor %vm2596, %vm2597
    %v2599 = vsel %vm2598, %v2590, %v2595
    %v2600 = vrsqrt.pop %v2589
    %v2601 = vmul.f32 %v2600, %v2589
    %v2602 = vmul.f32 %v2601, %v2600
    %v2603 = vmul.f32 0.5, %v2602
    %v2604 = vsub.f32 1.5, %v2603
    %v2605 = vmul.f32 %v2600, %v2604
    %vm2606 = vweird.f32 %v2589
    %vm2607 = vweird.f32 %v2600
    %vm2608 = vmor %vm2606, %vm2607
    %v2609 = vsel %vm2608, %v2600, %v2605
    %v2610 = vmul.f32 %v2576, %v2599
    %v2611 = vmul.f32 %v2577, %v2609
    %v2613 = vperm.slane %v2565, 0
    %v2615 = vmul.f32 %v2610, %v2613
    %v2616 = vmul.f32 %v2611, %v2613
    %v2618 = vperm.slane %v2567, 0
    %v2620 = vadd.f32 %v2615, %v2618
    %v2621 = vadd.f32 %v2616, %v2618
    %s2622 = scalar_lea.vmem %s9, 64
    %v2623 = vld [vmem:[%s2622] sm:$0xff]
    %v2624 = vld [vmem:[%s2622 + $0x8] sm:$0xff]
    %v2625 = vld [vmem:[%s2622 + $0x10] sm:$0xff]
    %v2626 = vld [vmem:[%s2622 + $0x18] sm:$0xff]
    %s2627 = scalar_lea.vmem %s10, 2
    %v2628 = vld [vmem:[%s2627] sm:$0x1]
    %v2630 = vperm.slane %v2628, 0
    %v2633 = vsel %vm95, %v2620, 0
    %v2636 = vsel %vm95, %v2621, 0
    %2638 = vmatpush.msra.mxu0 0.0
    %2639 = vmatpush.msra.mxu0 0.0
    %2640 = vmatpush.msra.mxu0 0.0
    %2641 = vmatpush.msra.mxu0 0.0
    %2642 = vmatpush.msra.mxu0 0.0
    %2643 = vmatpush.msra.mxu0 0.0
    %2644 = vmatpush.msra.mxu0 0.0
    %2645 = vmatpush.msra.mxu0 0.0
    %2646 = vmatpush.msra.mxu0 0.0
    %2647 = vmatpush.msra.mxu0 0.0
    %2648 = vmatpush.msra.mxu0 0.0
    %2649 = vmatpush.msra.mxu0 0.0
    %2650 = vmatpush.msra.mxu0 %v2626
    %2651 = vmatpush.msra.mxu0 %v2625
    %2652 = vmatpush.msra.mxu0 %v2624
    %2653 = vmatpush.msra.mxu0 %v2623
    %2654 = vmatmul.f32.gmra.mxu0 %v2633
    %v2655 = vpop.f32.mrf.mxu0
    %v2656 = vadd.f32 %v2630, %v2655
    %2657 = vmatmul.f32.gmra.mxu0 %v2636
    %v2658 = vpop.f32.mrf.mxu0
    %v2659 = vadd.f32 %v2630, %v2658
    %2660 = vdwg.mxu0
    %v2661 = vmax.f32 %v2656, 0.0
    %v2662 = vmax.f32 %v2659, 0.0
    %s2663 = scalar_lea.vmem %s11, 256
    %v2664 = vld [vmem:[%s2663] sm:$0xff]
    %v2665 = vld [vmem:[%s2663 + $0x8] sm:$0xff]
    %v2666 = vld [vmem:[%s2663 + $0x10] sm:$0xff]
    %v2667 = vld [vmem:[%s2663 + $0x18] sm:$0xff]
    %v2668 = vld [vmem:[%s2663 + $0x20] sm:$0xff]
    %v2669 = vld [vmem:[%s2663 + $0x28] sm:$0xff]
    %v2670 = vld [vmem:[%s2663 + $0x30] sm:$0xff]
    %v2671 = vld [vmem:[%s2663 + $0x38] sm:$0xff]
    %v2672 = vld [vmem:[%s2663 + $0x40] sm:$0xff]
    %v2673 = vld [vmem:[%s2663 + $0x48] sm:$0xff]
    %v2674 = vld [vmem:[%s2663 + $0x50] sm:$0xff]
    %v2675 = vld [vmem:[%s2663 + $0x58] sm:$0xff]
    %v2676 = vld [vmem:[%s2663 + $0x60] sm:$0xff]
    %v2677 = vld [vmem:[%s2663 + $0x68] sm:$0xff]
    %v2678 = vld [vmem:[%s2663 + $0x70] sm:$0xff]
    %v2679 = vld [vmem:[%s2663 + $0x78] sm:$0xff]
    %s2680 = scalar_lea.vmem %s12, 2
    %v2681 = vld [vmem:[%s2680] sm:$0x1]
    %v2683 = vperm.slane %v2681, 0
    %2685 = vmatpush.msra.mxu0 %v2679
    %2686 = vmatpush.msra.mxu0 %v2678
    %2687 = vmatpush.msra.mxu0 %v2677
    %2688 = vmatpush.msra.mxu0 %v2676
    %2689 = vmatpush.msra.mxu0 %v2675
    %2690 = vmatpush.msra.mxu0 %v2674
    %2691 = vmatpush.msra.mxu0 %v2673
    %2692 = vmatpush.msra.mxu0 %v2672
    %2693 = vmatpush.msra.mxu0 %v2671
    %2694 = vmatpush.msra.mxu0 %v2670
    %2695 = vmatpush.msra.mxu0 %v2669
    %2696 = vmatpush.msra.mxu0 %v2668
    %2697 = vmatpush.msra.mxu0 %v2667
    %2698 = vmatpush.msra.mxu0 %v2666
    %2699 = vmatpush.msra.mxu0 %v2665
    %2700 = vmatpush.msra.mxu0 %v2664
    %2701 = vmatmul.f32.gmra.mxu0 %v2661
    %v2702 = vpop.f32.mrf.mxu0
    %v2703 = vadd.f32 %v2683, %v2702
    %2704 = vmatmul.f32.gmra.mxu0 %v2662
    %v2705 = vpop.f32.mrf.mxu0
    %v2706 = vadd.f32 %v2683, %v2705
    %2707 = vdwg.mxu0
    %v2708 = vadd.f32 %v2703, %v2620
    %v2709 = vadd.f32 %v2706, %v2621
    %s2710 = scalar_lea.vmem %s13, 2
    %v2711 = vld [vmem:[%s2710] sm:$0x1]
    %s2712 = scalar_lea.vmem %s14, 2
    %v2713 = vld [vmem:[%s2712] sm:$0x1]
    %v2714 = vsel %vm95, %v2708, 0.0
    %2715 = vadd.xlane.f32.xlu0 %v2714
    %v2716 = vpop.xlane.xlu0 %2715
    %v2717 = vsel %vm95, %v2709, 0.0
    %2718 = vadd.xlane.f32.xlu0 %v2717
    %v2719 = vpop.xlane.xlu0 %2718
    %v2720 = vmul.f32 %v2716, %v793
    %v2721 = vmul.f32 %v2719, %v793
    %v2722 = vsub.f32 %v2708, %v2720
    %v2723 = vsub.f32 %v2709, %v2721
    %v2724 = vmul.f32 %v2722, %v2722
    %v2725 = vmul.f32 %v2723, %v2723
    %v2726 = vsel %vm95, %v2724, 0.0
    %2727 = vadd.xlane.f32.xlu0 %v2726
    %v2728 = vpop.xlane.xlu0 %2727
    %v2729 = vsel %vm95, %v2725, 0.0
    %2730 = vadd.xlane.f32.xlu0 %v2729
    %v2731 = vpop.xlane.xlu0 %2730
    %v2732 = vmul.f32 %v2728, %v793
    %v2733 = vmul.f32 %v2731, %v793
    %v2734 = vadd.f32 %v2732, 1e-05
    %v2735 = vadd.f32 %v2733, 1e-05
    %v2736 = vrsqrt.pop %v2734
    %v2737 = vmul.f32 %v2736, %v2734
    %v2738 = vmul.f32 %v2737, %v2736
    %v2739 = vmul.f32 0.5, %v2738
    %v2740 = vsub.f32 1.5, %v2739
    %v2741 = vmul.f32 %v2736, %v2740
    %vm2742 = vweird.f32 %v2734
    %vm2743 = vweird.f32 %v2736
    %vm2744 = vmor %vm2742, %vm2743
    %v2745 = vsel %vm2744, %v2736, %v2741
    %v2746 = vrsqrt.pop %v2735
    %v2747 = vmul.f32 %v2746, %v2735
    %v2748 = vmul.f32 %v2747, %v2746
    %v2749 = vmul.f32 0.5, %v2748
    %v2750 = vsub.f32 1.5, %v2749
    %v2751 = vmul.f32 %v2746, %v2750
    %vm2752 = vweird.f32 %v2735
    %vm2753 = vweird.f32 %v2746
    %vm2754 = vmor %vm2752, %vm2753
    %v2755 = vsel %vm2754, %v2746, %v2751
    %v2756 = vmul.f32 %v2722, %v2745
    %v2757 = vmul.f32 %v2723, %v2755
    %v2759 = vperm.slane %v2711, 0
    %v2761 = vmul.f32 %v2756, %v2759
    %v2762 = vmul.f32 %v2757, %v2759
    %v2764 = vperm.slane %v2713, 0
    %v2766 = vadd.f32 %v2761, %v2764
    %v2767 = vadd.f32 %v2762, %v2764
    %2768 = vst.msk [vmem:[#allocation2] sm:$0xff] %vm95, %v2766
    %2769 = vst.msk [vmem:[#allocation2 + $0x8] sm:$0xff] %vm95, %v2767
    // Predicated region
    $region62: #{tpu_custom_call.1} parent=1 // pred_check
      _
    $region63: #{tpu_custom_call.1} parent=1 // pred_check_branch
      %2771 = sbr.rel (0) target = $region65
    $region64: #{tpu_custom_call.1} parent=1 // pred_region
      %2773 = vsyncadd [#allocation3], 0
      %s2774 = sshll.u32 [#allocation2], 4
      %s2775 = int_to_ptr.vmem [resolvable:$true] %s2774
      %s2776 = sshll.u32 %s15, 4
      %s2777 = int_to_ptr.hbm [resolvable:$true] %s2776
      %2782 = dma.vmem_to_hbm [thread:$0]  %s2775, 256, %s2777, [#allocation3], 128, 128, 8
    $region65: #{tpu_custom_call.1} parent=1 // pred_fallthru
      _
    // Predicated region
    $region66: #{tpu_custom_call.1} parent=1 // pred_check
      _
    $region67: #{tpu_custom_call.1} parent=1 // pred_check_branch
      %2784 = sbr.rel (0) target = $region69
    $region68: #{tpu_custom_call.1} parent=1 // pred_region
      %2786 = dma.done [#allocation3], 256
    $region69: #{tpu_custom_call.1} parent=1 // pred_fallthru
      _
    %2787 = vsyncpa [#allocation3], 1

</llo_original>
